<compile_context>
chip_gen: v7x
topology: tpu7x:2x2x1
jax: 0.10.0
libtpu: 0.0.40
codegen_flags: <defaults>
</compile_context>

<pallas_src>
import functools

import numpy as np

import jax
import jax.numpy as jnp
from jax.experimental import pallas as pl
from jax.experimental.pallas import tpu as pltpu


# ---------------------------------------------------------------------------
# tiling helpers
# ---------------------------------------------------------------------------
_LINEAR_ROW_TILE_CAP = 256    # token rows per linear block
_LINEAR_COL_TILE_CAP = 512    # output-feature columns per linear block (weight streaming)
_ATTN_Q_TILE_CAP = 128        # query rows per attention block
_ATTN_KV_TILE_CAP = 128       # key/value rows per attention block


def _round_up(x: int, m: int) -> int:
    return ((x + m - 1) // m) * m


def _pick_lane_tile(dim: int, cap: int) -> int:
    """Largest multiple-of-128 divisor of `dim` <= cap; full dim if dim <= cap."""
    if dim <= cap:
        return dim
    t = cap - (cap % 128)
    while t >= 128:
        if dim % t == 0:
            return t
        t -= 128
    # TODO(synk): pad N for pathological output widths with no dense divisor.
    return dim


def _pick_seq_tile(dim: int, cap: int) -> int:
    """Largest multiple-of-8 divisor of `dim` <= cap; full dim if dim <= cap."""
    if dim <= cap:
        return dim
    t = cap - (cap % 8)
    while t >= 8:
        if dim % t == 0:
            return t
        t -= 8
    # TODO(synk): pad the sequence for pathological lengths with no dense divisor.
    return dim


# ---------------------------------------------------------------------------
# Pallas kernels
# ---------------------------------------------------------------------------
def _fused_linear_kernel(*refs, has_ln, has_res, activation, eps):
    """[LN ->] x @ W + b [-> GELU] [-> res + dp * (.)]. bf16 MXU operands, f32 accumulate."""
    it = iter(refs)
    x_ref = next(it)
    if has_ln:
        ln_w_ref = next(it)
        ln_b_ref = next(it)
    w_ref = next(it)
    b_ref = next(it)
    if has_res:
        res_ref = next(it)
        dp_ref = next(it)
    o_ref = next(it)

    x = x_ref[...].astype(jnp.float32)                       # (tm, K)
    if has_ln:
        mu = jnp.mean(x, axis=-1, keepdims=True)
        xc = x - mu
        var = jnp.mean(xc * xc, axis=-1, keepdims=True)
        x = xc * jax.lax.rsqrt(var + eps) * ln_w_ref[...] + ln_b_ref[...]

    acc = jnp.dot(x.astype(jnp.bfloat16), w_ref[...],        # bf16 x bf16 -> f32
                  preferred_element_type=jnp.float32)
    acc = acc + b_ref[...]                                    # (1, tn) f32 bias
    if activation == "gelu":
        # TODO(synk): PyTorch nn.GELU defaults to exact erf; tanh approx used (EUP-friendly).
        acc = jax.nn.gelu(acc, approximate=True)
    if has_res:
        acc = res_ref[...].astype(jnp.float32) + dp_ref[...] * acc
    o_ref[...] = acc.astype(o_ref.dtype)


def _flash_attention_kernel(q_ref, k_ref, v_ref, o_ref, m_sc, l_sc, acc_sc,
                            *, scale, num_heads):
    """Online-softmax attention; all heads of one batch sample per grid step.

    q_ref: (tq, H, hd), k_ref/v_ref: (tk, H, hd), o_ref: (tq, H, hd) — all sliced
    straight out of the (B, N, 3, H, hd) QKV buffer / (B, N, H, hd) output, so no
    JAX-side transpose ever materializes. Per-head 2D MXU dots inside.
    """
    kv_i = pl.program_id(2)

    @pl.when(kv_i == 0)
    def _():
        m_sc[...] = jnp.full_like(m_sc, -jnp.inf)
        l_sc[...] = jnp.zeros_like(l_sc)
        acc_sc[...] = jnp.zeros_like(acc_sc)

    qb = q_ref[...]
    kb = k_ref[...]
    vb = v_ref[...]

    for h in range(num_heads):                                # static unroll over heads
        q = qb[:, h, :].astype(jnp.bfloat16)                  # (tq, hd)
        k = kb[:, h, :].astype(jnp.bfloat16)                  # (tk, hd)
        v = vb[:, h, :].astype(jnp.bfloat16)                  # (tk, hd)

        s = jax.lax.dot_general(q, k, (((1,), (1,)), ((), ())),
                                preferred_element_type=jnp.float32) * scale  # (tq, tk)

        m_prev = m_sc[h]                                      # (tq, 1)
        m_new = jnp.maximum(m_prev, jnp.max(s, axis=-1, keepdims=True))
        alpha = jnp.exp(m_prev - m_new)
        p = jnp.exp(s - m_new)
        l_sc[h] = alpha * l_sc[h] + jnp.sum(p, axis=-1, keepdims=True)
        acc_sc[h] = alpha * acc_sc[h] + jnp.dot(p.astype(jnp.bfloat16), v,
                                                preferred_element_type=jnp.float32)
        m_sc[h] = m_new

    @pl.when(kv_i == pl.num_programs(2) - 1)
    def _():
        for h in range(num_heads):
            inv = pl.reciprocal(l_sc[h], approx=True)         # EUP, free next to exp
            o_ref[:, h, :] = (acc_sc[h] * inv).astype(o_ref.dtype)


# ---------------------------------------------------------------------------
# Pallas wrappers
# ---------------------------------------------------------------------------
def pallas_linear(x2d, w, b, *, ln=None, activation=None, residual=None, dp=None,
                  eps=1e-6):
    M, K = x2d.shape
    Kw, N = w.shape
    assert K == Kw
    has_ln = ln is not None
    has_res = residual is not None

    tm = min(_LINEAR_ROW_TILE_CAP, _round_up(M, 8))
    Mp = _round_up(M, tm)
    tn = _pick_lane_tile(N, _LINEAR_COL_TILE_CAP)

    if Mp != M:                                               # pad rows (sliced off below)
        pad = Mp - M
        x2d = jnp.pad(x2d, ((0, pad), (0, 0)))
        if has_res:
            residual = jnp.pad(residual, ((0, pad), (0, 0)))
            dp = jnp.pad(dp, ((0, pad), (0, 0)))

    in_specs = [pl.BlockSpec((tm, K), lambda i, j: (i, 0))]   # activation rows (full K)
    args = [x2d]
    if has_ln:
        ln_w, ln_b = ln
        in_specs += [pl.BlockSpec((1, K), lambda i, j: (0, 0)),
                     pl.BlockSpec((1, K), lambda i, j: (0, 0))]
        args += [ln_w.reshape(1, K).astype(jnp.float32),
                 ln_b.reshape(1, K).astype(jnp.float32)]
    in_specs += [pl.BlockSpec((K, tn), lambda i, j: (0, j)),  # streamed bf16 weight tile
                 pl.BlockSpec((1, tn), lambda i, j: (0, j))]  # f32 bias tile
    args += [w.astype(jnp.bfloat16), b.reshape(1, N).astype(jnp.float32)]
    if has_res:
        in_specs += [pl.BlockSpec((tm, tn), lambda i, j: (i, j)),
                     pl.BlockSpec((tm, 1), lambda i, j: (i, 0))]
        args += [residual, dp.astype(jnp.float32)]

    # VMEM footprint of the double-buffered blocks (bf16 weight tile, f32 activations).
    est = 2 * (tm * K * 4 + K * tn * 2 + tn * 4 + tm * tn * 4)
    if has_res:
        est += 2 * (tm * tn * 4 + tm * 4)
    if has_ln:
        est += 2 * (2 * K * 4)
    vmem_limit = int(min(max(est + (4 << 20), 32 << 20), 48 << 20))

    kernel = functools.partial(_fused_linear_kernel, has_ln=has_ln, has_res=has_res,
                               activation=activation, eps=eps)
    out = pl.pallas_call(
        kernel,
        out_shape=jax.ShapeDtypeStruct((Mp, N), x2d.dtype),
        grid_spec=pltpu.PrefetchScalarGridSpec(
            num_scalar_prefetch=0,
            grid=(Mp // tm, N // tn),
            in_specs=in_specs,
            out_specs=pl.BlockSpec((tm, tn), lambda i, j: (i, j)),
        ),
        compiler_params=pltpu.CompilerParams(
            dimension_semantics=("parallel", "parallel"),
            vmem_limit_bytes=vmem_limit),
    )(*args)
    return out[:M] if Mp != M else out


def pallas_attention(qkv5, scale):
    """qkv5: (B, N, 3, H, hd) view of the QKV linear output -> (B, N, H, hd)."""
    B, N, _, H, hd = qkv5.shape
    tq = _pick_seq_tile(N, _ATTN_Q_TILE_CAP)
    tk = _pick_seq_tile(N, _ATTN_KV_TILE_CAP)

    kernel = functools.partial(_flash_attention_kernel, scale=scale, num_heads=H)
    return pl.pallas_call(
        kernel,
        out_shape=jax.ShapeDtypeStruct((B, N, H, hd), qkv5.dtype),
        grid_spec=pltpu.PrefetchScalarGridSpec(
            num_scalar_prefetch=0,
            grid=(B, N // tq, N // tk),
            in_specs=[
                pl.BlockSpec((pl.Squeezed(), tq, pl.Squeezed(), H, hd),
                             lambda b, qi, ki: (b, qi, 0, 0, 0)),   # Q
                pl.BlockSpec((pl.Squeezed(), tk, pl.Squeezed(), H, hd),
                             lambda b, qi, ki: (b, ki, 1, 0, 0)),   # K
                pl.BlockSpec((pl.Squeezed(), tk, pl.Squeezed(), H, hd),
                             lambda b, qi, ki: (b, ki, 2, 0, 0)),   # V
            ],
            out_specs=pl.BlockSpec((pl.Squeezed(), tq, H, hd),
                                   lambda b, qi, ki: (b, qi, 0, 0)),
            scratch_shapes=[
                pltpu.VMEM((H, tq, 1), jnp.float32),    # running max
                pltpu.VMEM((H, tq, 1), jnp.float32),    # running denom
                pltpu.VMEM((H, tq, hd), jnp.float32),   # accumulator
            ],
        ),
        compiler_params=pltpu.CompilerParams(
            dimension_semantics=("parallel", "parallel", "arbitrary")),
    )(qkv5, qkv5, qkv5)


# ---------------------------------------------------------------------------
# op dispatch (use_pallas=True -> Pallas kernels; False -> matching pure-JAX reference)
# ---------------------------------------------------------------------------
def op_linear(x2d, w, b, *, ln=None, activation=None, residual=None, dp=None,
              eps=1e-6, use_pallas):
    if use_pallas:
        return pallas_linear(x2d, w, b, ln=ln, activation=activation,
                             residual=residual, dp=dp, eps=eps)
    x = x2d.astype(jnp.float32)
    if ln is not None:
        ln_w, ln_b = ln
        mu = jnp.mean(x, axis=-1, keepdims=True)
        xc = x - mu
        var = jnp.mean(xc * xc, axis=-1, keepdims=True)
        x = xc * jax.lax.rsqrt(var + eps) * ln_w + ln_b
    y = jnp.dot(x.astype(jnp.bfloat16), w.astype(jnp.bfloat16),
                preferred_element_type=jnp.float32) + b
    if activation == "gelu":
        y = jax.nn.gelu(y, approximate=True)
    if residual is not None:
        y = residual.astype(jnp.float32) + dp * y
    return y.astype(x2d.dtype)


def op_attention(qkv5, scale, *, use_pallas):
    if use_pallas:
        return pallas_attention(qkv5, scale)
    q = qkv5[:, :, 0].astype(jnp.bfloat16)                    # (B, N, H, hd)
    k = qkv5[:, :, 1].astype(jnp.bfloat16)
    v = qkv5[:, :, 2].astype(jnp.bfloat16)
    s = jnp.einsum("bqhd,bkhd->bhqk", q, k, preferred_element_type=jnp.float32) * scale
    s = s - jnp.max(s, axis=-1, keepdims=True)
    p = jnp.exp(s)
    p = p / jnp.sum(p, axis=-1, keepdims=True)
    o = jnp.einsum("bhqk,bkhd->bqhd", p.astype(jnp.bfloat16), v,
                   preferred_element_type=jnp.float32)
    return o.astype(qkv5.dtype)


# ---------------------------------------------------------------------------
# model glue (reshapes / pos-embed / pooling / RNG are plain JAX)
# ---------------------------------------------------------------------------
def get_sinusoid_encoding_table(n_position, d_hid):
    pos = np.arange(n_position, dtype=np.float64)[:, None]
    hid = np.arange(d_hid, dtype=np.float64)[None, :]
    angle = pos / np.power(10000.0, 2.0 * (hid // 2) / d_hid)
    table = np.zeros((n_position, d_hid), dtype=np.float64)
    table[:, 0::2] = np.sin(angle[:, 0::2])
    table[:, 1::2] = np.cos(angle[:, 1::2])
    return jnp.asarray(table[None], dtype=jnp.float32)        # (1, N, E)


def _extract_tubelet_patches(x, cfg):
    """(B, C, T, H, W) -> (B, num_patches, C*tubelet*p*p); matches Conv3d-as-patchify."""
    B, C, T, H, W = x.shape
    ts, p = cfg["tubelet"], cfg["patch"]
    x = x.reshape(B, C, T // ts, ts, H // p, p, W // p, p)
    x = x.transpose(0, 2, 4, 6, 1, 3, 5, 7)                   # (B, T', H', W', C, ts, p, p)
    return x.reshape(B, (T // ts) * (H // p) * (W // p), C * ts * p * p)


def make_droppath_scales(key, batch, depth, drop_path_rate, training):
    """Per-sample DropPath scale (keep/keep_prob) for both residual branches per block."""
    dpr = np.linspace(0.0, drop_path_rate, depth)
    keys = jax.random.split(key, depth * 2)
    scales = []
    for i in range(depth):
        p_i = float(dpr[i])
        pair = []
        for j in range(2):
            if training and p_i > 0.0:
                keep_prob = 1.0 - p_i
                u = jax.random.uniform(keys[2 * i + j], (batch,), dtype=jnp.float32)
                keep = jnp.floor(keep_prob + u)               # 0.0 or 1.0 per sample
                pair.append(keep / keep_prob)
            else:
                pair.append(jnp.ones((batch,), jnp.float32))
        scales.append((pair[0], pair[1]))
    return scales


def block_forward(p, x, dp_pair, *, cfg, use_pallas):
    B, N, C = x.shape
    H = cfg["num_heads"]
    hd = C // H
    eps = cfg["eps"]
    M = B * N
    x2d = x.reshape(M, C)

    # --- attention branch: norm1 fused into QKV; residual+DropPath fused into proj ---
    qkv_bias = jnp.concatenate([p["q_bias"], jnp.zeros_like(p["v_bias"]), p["v_bias"]])
    qkv = op_linear(x2d, p["qkv_w"], qkv_bias, ln=(p["norm1_w"], p["norm1_b"]),
                    eps=eps, use_pallas=use_pallas)           # (M, 3C)
    qkv5 = qkv.reshape(B, N, 3, H, hd)                        # free view, no transpose
    attn = op_attention(qkv5, scale=hd ** -0.5, use_pallas=use_pallas)  # (B, N, H, hd)

    dp0 = jnp.broadcast_to(dp_pair[0].astype(jnp.float32)[:, None], (B, N)).reshape(M, 1)
    x2d = op_linear(attn.reshape(M, C), p["proj_w"], p["proj_b"],
                    residual=x2d, dp=dp0, use_pallas=use_pallas)

    # --- MLP branch: norm2+GELU fused into fc1; residual+DropPath fused into fc2 ---
    h1 = op_linear(x2d, p["fc1_w"], p["fc1_b"], ln=(p["norm2_w"], p["norm2_b"]),
                   eps=eps, activation="gelu", use_pallas=use_pallas)
    dp1 = jnp.broadcast_to(dp_pair[1].astype(jnp.float32)[:, None], (B, N)).reshape(M, 1)
    x2d = op_linear(h1, p["fc2_w"], p["fc2_b"], residual=x2d, dp=dp1,
                    use_pallas=use_pallas)
    return x2d.reshape(B, N, C)


def vit_forward(params, x, dp_scales, *, cfg, use_pallas):
    B = x.shape[0]
    E = cfg["embed_dim"]
    eps = cfg["eps"]

    patches = _extract_tubelet_patches(x, cfg)                # (B, Np, Kp)
    Np, Kp = patches.shape[1], patches.shape[2]
    h = op_linear(patches.reshape(B * Np, Kp), params["patch_w"], params["patch_b"],
                  use_pallas=use_pallas).reshape(B, Np, E)

    # fixed sinusoid positional embedding; pos_drop is identity at drop_rate=0
    h = h + params["pos_embed"].astype(h.dtype)

    for li, blk in enumerate(params["blocks"]):
        h = block_forward(blk, h, dp_scales[li], cfg=cfg, use_pallas=use_pallas)

    # use_mean_pooling=True: norm == Identity; fc_norm is fused into the head linear
    pooled = jnp.mean(h, axis=1)                              # (B, E)
    logits = op_linear(pooled, params["head_w"], params["head_b"],
                       ln=(params["fc_norm_w"], params["fc_norm_b"]), eps=eps,
                       use_pallas=use_pallas)
    return logits


def init_params(key, cfg):
    E = cfg["embed_dim"]
    depth = cfg["depth"]
    hidden = int(E * cfg["mlp_ratio"])
    Kp = cfg["in_chans"] * cfg["tubelet"] * cfg["patch"] * cfg["patch"]
    n_t = cfg["frames"] // cfg["tubelet"]
    n_s = cfg["img_size"] // cfg["patch"]
    num_patches = n_t * n_s * n_s

    keys = iter(jax.random.split(key, 16 + depth * 12))

    def nrm(shape, std=0.02):
        return std * jax.random.normal(next(keys), shape, jnp.float32)

    def wmat(shape):                                           # matmul weights live in bf16
        return nrm(shape).astype(jnp.bfloat16)

    params = {
        "patch_w": wmat((Kp, E)),
        "patch_b": nrm((E,)),
        "pos_embed": get_sinusoid_encoding_table(num_patches, E),
        "fc_norm_w": jnp.ones((E,), jnp.float32),
        "fc_norm_b": jnp.zeros((E,), jnp.float32),
        "head_w": wmat((E, cfg["num_classes"])),
        "head_b": jnp.zeros((cfg["num_classes"],), jnp.float32),
        "blocks": [],
    }
    for _ in range(depth):
        params["blocks"].append({
            "norm1_w": jnp.ones((E,), jnp.float32),
            "norm1_b": jnp.zeros((E,), jnp.float32),
            "qkv_w": wmat((E, 3 * E)),
            "q_bias": nrm((E,)),
            "v_bias": nrm((E,)),
            "proj_w": wmat((E, E)),
            "proj_b": nrm((E,)),
            "norm2_w": jnp.ones((E,), jnp.float32),
            "norm2_b": jnp.zeros((E,), jnp.float32),
            "fc1_w": wmat((E, hidden)),
            "fc1_b": nrm((hidden,)),
            "fc2_w": wmat((hidden, E)),
            "fc2_b": nrm((E,)),
        })
    return params


# ---------------------------------------------------------------------------
# demo / self-check
# ---------------------------------------------------------------------------
if __name__ == "__main__":
    cfg = dict(
        img_size=16, patch=8, in_chans=3, frames=4, tubelet=2,   # -> 2*2*2 = 8 tokens
        embed_dim=64, depth=2, num_heads=2, mlp_ratio=4.0,
        num_classes=10, drop_path_rate=0.25, eps=1e-6,
    )

    root = jax.random.PRNGKey(0)
    k_param, k_x, k_dp = jax.random.split(root, 3)

    params = init_params(k_param, cfg)
    x = jax.random.normal(
        k_x, (2, cfg["in_chans"], cfg["frames"], cfg["img_size"], cfg["img_size"]),
        dtype=jnp.float32)

    # training=True with drop_path_rate>0 so the fused residual+DropPath epilogue is exercised;
    # drop_rate / attn_drop_rate / fc_drop_rate are 0 (identity) in this config.
    dp_scales = make_droppath_scales(k_dp, batch=2, depth=cfg["depth"],
                                     drop_path_rate=cfg["drop_path_rate"], training=True)

    fwd_pallas = jax.jit(functools.partial(vit_forward, cfg=cfg, use_pallas=True))
    fwd_ref = jax.jit(functools.partial(vit_forward, cfg=cfg, use_pallas=False))

    out = jax.block_until_ready(fwd_pallas(params, x, dp_scales))
    ref = jax.block_until_ready(fwd_ref(params, x, dp_scales))

    assert out.shape == (2, cfg["num_classes"]), out.shape
    assert bool(jnp.all(jnp.isfinite(out))), "non-finite output"
    assert bool(jnp.allclose(out, ref, atol=2e-2, rtol=2e-2)), (
        "Pallas forward does not match the pure-JAX reference")

    print("KERNEL_OK")
</pallas_src>

<mosaic_0001>
module attributes {stable_mosaic.version = 11 : i64} {
  func.func @_fused_linear_kernel(%arg0: i32, %arg1: i32, %arg2: memref<16x384xf32, #tpu.memory_space<vmem>>, %arg3: memref<384x64xbf16, #tpu.memory_space<vmem>>, %arg4: memref<1x64xf32, #tpu.memory_space<vmem>>, %arg5: memref<16x64xf32, #tpu.memory_space<vmem>>) attributes {dimension_semantics = [#tpu.dimension_semantics<parallel>, #tpu.dimension_semantics<parallel>], iteration_bounds = array<i64: 1, 1>, scalar_prefetch = 0 : i64, scratch_operands = 0 : i64, tpu.core_type = #tpu.core_type<tc>, window_params = [{transform_indices = @transform_0, window_bounds = array<i64: 16, 384>}, {transform_indices = @transform_1, window_bounds = array<i64: 384, 64>}, {transform_indices = @transform_2, window_bounds = array<i64: 1, 64>}, {transform_indices = @transform_3, window_bounds = array<i64: 16, 64>}]} {
    %c0 = arith.constant 0 : index
    %c0_0 = arith.constant 0 : index
    %0 = vector.load %arg2[%c0, %c0_0] : memref<16x384xf32, #tpu.memory_space<vmem>>, vector<16x384xf32>
    %1 = arith.truncf %0 : vector<16x384xf32> to vector<16x384xbf16>
    %c0_1 = arith.constant 0 : index
    %c0_2 = arith.constant 0 : index
    %2 = vector.load %arg3[%c0_1, %c0_2] : memref<384x64xbf16, #tpu.memory_space<vmem>>, vector<384x64xbf16>
    %cst = arith.constant dense<0.000000e+00> : vector<16x64xf32>
    %3 = tpu.matmul %1, %2, %cst {dimension_numbers = #tpu.dot_dimension_numbers<[1], [0], [0], [1], [0, 0, 1, 1], [], []>} : vector<16x384xbf16>, vector<384x64xbf16>, vector<16x64xf32> -> vector<16x64xf32>
    %c0_3 = arith.constant 0 : index
    %c0_4 = arith.constant 0 : index
    %4 = vector.load %arg4[%c0_3, %c0_4] : memref<1x64xf32, #tpu.memory_space<vmem>>, vector<1x64xf32>
    %5 = vector.broadcast %4 : vector<1x64xf32> to vector<16x64xf32>
    %6 = arith.addf %3, %5 : vector<16x64xf32>
    %c0_5 = arith.constant 0 : index
    %c0_6 = arith.constant 0 : index
    %7 = vector.load %arg5[%c0_5, %c0_6] : memref<16x64xf32, #tpu.memory_space<vmem>>, vector<16x64xf32>
    tpu.vector_store %arg5[%c0_5, %c0_6], %6 {strides = array<i32>} : memref<16x64xf32, #tpu.memory_space<vmem>>, vector<16x64xf32>,
    return
  }
  func.func @transform_0(%arg0: i32, %arg1: i32) -> (i32, i32) {
    %c0_i32 = arith.constant 0 : i32
    %c0_i32_0 = arith.constant 0 : i32
    return %arg0, %c0_i32 : i32, i32
  }
  func.func @transform_1(%arg0: i32, %arg1: i32) -> (i32, i32) {
    %c0_i32 = arith.constant 0 : i32
    %c0_i32_0 = arith.constant 0 : i32
    return %c0_i32, %arg1 : i32, i32
  }
  func.func @transform_2(%arg0: i32, %arg1: i32) -> (i32, i32) {
    %c0_i32 = arith.constant 0 : i32
    %c0_i32_0 = arith.constant 0 : i32
    return %c0_i32, %arg1 : i32, i32
  }
  func.func @transform_3(%arg0: i32, %arg1: i32) -> (i32, i32) {
    %c0_i32 = arith.constant 0 : i32
    return %arg0, %arg1 : i32, i32
  }
}

module attributes {stable_mosaic.version = 11 : i64} {
  func.func @_fused_linear_kernel(%arg0: i32, %arg1: i32, %arg2: memref<16x64xf32, #tpu.memory_space<vmem>>, %arg3: memref<1x64xf32, #tpu.memory_space<vmem>>, %arg4: memref<1x64xf32, #tpu.memory_space<vmem>>, %arg5: memref<64x192xbf16, #tpu.memory_space<vmem>>, %arg6: memref<1x192xf32, #tpu.memory_space<vmem>>, %arg7: memref<16x192xf32, #tpu.memory_space<vmem>>) attributes {dimension_semantics = [#tpu.dimension_semantics<parallel>, #tpu.dimension_semantics<parallel>], iteration_bounds = array<i64: 1, 1>, scalar_prefetch = 0 : i64, scratch_operands = 0 : i64, tpu.core_type = #tpu.core_type<tc>, window_params = [{transform_indices = @transform_0, window_bounds = array<i64: 16, 64>}, {pipeline_mode = #tpu.pipeline_mode<synchronous>, transform_indices = @transform_1, window_bounds = array<i64: 1, 64>}, {pipeline_mode = #tpu.pipeline_mode<synchronous>, transform_indices = @transform_2, window_bounds = array<i64: 1, 64>}, {transform_indices = @transform_3, window_bounds = array<i64: 64, 192>}, {transform_indices = @transform_4, window_bounds = array<i64: 1, 192>}, {transform_indices = @transform_5, window_bounds = array<i64: 16, 192>}]} {
    %c0 = arith.constant 0 : index
    %c0_0 = arith.constant 0 : index
    %0 = vector.load %arg2[%c0, %c0_0] : memref<16x64xf32, #tpu.memory_space<vmem>>, vector<16x64xf32>
    %cst = arith.constant dense<0.000000e+00> : vector<16xf32>
    %1 = vector.multi_reduction <add>, %0, %cst [1] : vector<16x64xf32> to vector<16xf32>
    %2 = vector.shape_cast %1 : vector<16xf32> to vector<16x1xf32>
    %cst_1 = arith.constant 6.400000e+01 : f32
    %3 = vector.broadcast %cst_1 : f32 to vector<16x1xf32>
    %4 = arith.divf %2, %3 : vector<16x1xf32>
    %5 = vector.broadcast %4 : vector<16x1xf32> to vector<16x64xf32>
    %6 = arith.subf %0, %5 : vector<16x64xf32>
    %7 = arith.mulf %6, %6 : vector<16x64xf32>
    %cst_2 = arith.constant dense<0.000000e+00> : vector<16xf32>
    %8 = vector.multi_reduction <add>, %7, %cst_2 [1] : vector<16x64xf32> to vector<16xf32>
    %9 = vector.shape_cast %8 : vector<16xf32> to vector<16x1xf32>
    %cst_3 = arith.constant 6.400000e+01 : f32
    %10 = vector.broadcast %cst_3 : f32 to vector<16x1xf32>
    %11 = arith.divf %9, %10 : vector<16x1xf32>
    %cst_4 = arith.constant 9.99999997E-7 : f32
    %12 = vector.broadcast %cst_4 : f32 to vector<16x1xf32>
    %13 = arith.addf %11, %12 : vector<16x1xf32>
    %14 = math.rsqrt %13 : vector<16x1xf32>
    %15 = vector.broadcast %14 : vector<16x1xf32> to vector<16x64xf32>
    %16 = arith.mulf %6, %15 : vector<16x64xf32>
    %c0_5 = arith.constant 0 : index
    %c0_6 = arith.constant 0 : index
    %17 = vector.load %arg3[%c0_5, %c0_6] : memref<1x64xf32, #tpu.memory_space<vmem>>, vector<1x64xf32>
    %18 = vector.broadcast %17 : vector<1x64xf32> to vector<16x64xf32>
    %19 = arith.mulf %16, %18 : vector<16x64xf32>
    %c0_7 = arith.constant 0 : index
    %c0_8 = arith.constant 0 : index
    %20 = vector.load %arg4[%c0_7, %c0_8] : memref<1x64xf32, #tpu.memory_space<vmem>>, vector<1x64xf32>
    %21 = vector.broadcast %20 : vector<1x64xf32> to vector<16x64xf32>
    %22 = arith.addf %19, %21 : vector<16x64xf32>
    %23 = arith.truncf %22 : vector<16x64xf32> to vector<16x64xbf16>
    %c0_9 = arith.constant 0 : index
    %c0_10 = arith.constant 0 : index
    %24 = vector.load %arg5[%c0_9, %c0_10] : memref<64x192xbf16, #tpu.memory_space<vmem>>, vector<64x192xbf16>
    %cst_11 = arith.constant dense<0.000000e+00> : vector<16x192xf32>
    %25 = tpu.matmul %23, %24, %cst_11 {dimension_numbers = #tpu.dot_dimension_numbers<[1], [0], [0], [1], [0, 0, 1, 1], [], []>} : vector<16x64xbf16>, vector<64x192xbf16>, vector<16x192xf32> -> vector<16x192xf32>
    %c0_12 = arith.constant 0 : index
    %c0_13 = arith.constant 0 : index
    %26 = vector.load %arg6[%c0_12, %c0_13] : memref<1x192xf32, #tpu.memory_space<vmem>>, vector<1x192xf32>
    %27 = vector.broadcast %26 : vector<1x192xf32> to vector<16x192xf32>
    %28 = arith.addf %25, %27 : vector<16x192xf32>
    %c0_14 = arith.constant 0 : index
    %c0_15 = arith.constant 0 : index
    %29 = vector.load %arg7[%c0_14, %c0_15] : memref<16x192xf32, #tpu.memory_space<vmem>>, vector<16x192xf32>
    tpu.vector_store %arg7[%c0_14, %c0_15], %28 {strides = array<i32>} : memref<16x192xf32, #tpu.memory_space<vmem>>, vector<16x192xf32>,
    return
  }
  func.func @transform_0(%arg0: i32, %arg1: i32) -> (i32, i32) {
    %c0_i32 = arith.constant 0 : i32
    %c0_i32_0 = arith.constant 0 : i32
    return %arg0, %c0_i32 : i32, i32
  }
  func.func @transform_1(%arg0: i32, %arg1: i32) -> (i32, i32) {
    %c0_i32 = arith.constant 0 : i32
    %c0_i32_0 = arith.constant 0 : i32
    %c0_i32_1 = arith.constant 0 : i32
    return %c0_i32, %c0_i32_0 : i32, i32
  }
  func.func @transform_2(%arg0: i32, %arg1: i32) -> (i32, i32) {
    %c0_i32 = arith.constant 0 : i32
    %c0_i32_0 = arith.constant 0 : i32
    %c0_i32_1 = arith.constant 0 : i32
    return %c0_i32, %c0_i32_0 : i32, i32
  }
  func.func @transform_3(%arg0: i32, %arg1: i32) -> (i32, i32) {
    %c0_i32 = arith.constant 0 : i32
    %c0_i32_0 = arith.constant 0 : i32
    return %c0_i32, %arg1 : i32, i32
  }
  func.func @transform_4(%arg0: i32, %arg1: i32) -> (i32, i32) {
    %c0_i32 = arith.constant 0 : i32
    %c0_i32_0 = arith.constant 0 : i32
    return %c0_i32, %arg1 : i32, i32
  }
  func.func @transform_5(%arg0: i32, %arg1: i32) -> (i32, i32) {
    %c0_i32 = arith.constant 0 : i32
    return %arg0, %arg1 : i32, i32
  }
}

module attributes {stable_mosaic.version = 11 : i64} {
  func.func @_flash_attention_kernel(%arg0: i32, %arg1: i32, %arg2: i32, %arg3: memref<1x8x1x2x32xf32, #tpu.memory_space<vmem>>, %arg4: memref<1x8x1x2x32xf32, #tpu.memory_space<vmem>>, %arg5: memref<1x8x1x2x32xf32, #tpu.memory_space<vmem>>, %arg6: memref<1x8x2x32xf32, #tpu.memory_space<vmem>>, %arg7: memref<2x8x1xf32, #tpu.memory_space<vmem>>, %arg8: memref<2x8x1xf32, #tpu.memory_space<vmem>>, %arg9: memref<2x8x32xf32, #tpu.memory_space<vmem>>) attributes {dimension_semantics = [#tpu.dimension_semantics<parallel>, #tpu.dimension_semantics<parallel>, #tpu.dimension_semantics<arbitrary>], iteration_bounds = array<i64: 2, 1, 1>, scalar_prefetch = 0 : i64, scratch_operands = 3 : i64, tpu.core_type = #tpu.core_type<tc>, window_params = [{transform_indices = @transform_0, window_bounds = array<i64: 1, 8, 1, 2, 32>}, {transform_indices = @transform_1, window_bounds = array<i64: 1, 8, 1, 2, 32>}, {transform_indices = @transform_2, window_bounds = array<i64: 1, 8, 1, 2, 32>}, {transform_indices = @transform_3, window_bounds = array<i64: 1, 8, 2, 32>}]} {
    %c0_i32 = arith.constant 0 : i32
    %0 = arith.cmpi eq, %arg2, %c0_i32 : i32
    %1 = arith.extui %0 : i1 to i32
    %c0_i32_0 = arith.constant 0 : i32
    %2 = arith.cmpi ne, %1, %c0_i32_0 : i32
    scf.if %2 {
      %cst_61 = arith.constant 0xFF800000 : f32
      %100 = vector.broadcast %cst_61 : f32 to vector<2x8x1xf32>
      %c0_62 = arith.constant 0 : index
      %c0_63 = arith.constant 0 : index
      %c0_64 = arith.constant 0 : index
      %101 = vector.load %arg7[%c0_62, %c0_63, %c0_64] : memref<2x8x1xf32, #tpu.memory_space<vmem>>, vector<2x8x1xf32>
      tpu.vector_store %arg7[%c0_62, %c0_63, %c0_64], %100 {strides = array<i32>} : memref<2x8x1xf32, #tpu.memory_space<vmem>>, vector<2x8x1xf32>,
      %cst_65 = arith.constant 0.000000e+00 : f32
      %102 = vector.broadcast %cst_65 : f32 to vector<2x8x1xf32>
      %c0_66 = arith.constant 0 : index
      %c0_67 = arith.constant 0 : index
      %c0_68 = arith.constant 0 : index
      %103 = vector.load %arg8[%c0_66, %c0_67, %c0_68] : memref<2x8x1xf32, #tpu.memory_space<vmem>>, vector<2x8x1xf32>
      tpu.vector_store %arg8[%c0_66, %c0_67, %c0_68], %102 {strides = array<i32>} : memref<2x8x1xf32, #tpu.memory_space<vmem>>, vector<2x8x1xf32>,
      %cst_69 = arith.constant 0.000000e+00 : f32
      %104 = vector.broadcast %cst_69 : f32 to vector<2x8x32xf32>
      %c0_70 = arith.constant 0 : index
      %c0_71 = arith.constant 0 : index
      %c0_72 = arith.constant 0 : index
      %105 = vector.load %arg9[%c0_70, %c0_71, %c0_72] : memref<2x8x32xf32, #tpu.memory_space<vmem>>, vector<2x8x32xf32>
      tpu.vector_store %arg9[%c0_70, %c0_71, %c0_72], %104 {strides = array<i32>} : memref<2x8x32xf32, #tpu.memory_space<vmem>>, vector<2x8x32xf32>,
    } else {
    }
    %c0 = arith.constant 0 : index
    %c0_1 = arith.constant 0 : index
    %c0_2 = arith.constant 0 : index
    %c0_3 = arith.constant 0 : index
    %c0_4 = arith.constant 0 : index
    %3 = vector.load %arg3[%c0, %c0_1, %c0_2, %c0_3, %c0_4] : memref<1x8x1x2x32xf32, #tpu.memory_space<vmem>>, vector<1x8x1x2x32xf32>
    %4 = vector.shape_cast %3 : vector<1x8x1x2x32xf32> to vector<8x2x32xf32>
    %c0_5 = arith.constant 0 : index
    %c0_6 = arith.constant 0 : index
    %c0_7 = arith.constant 0 : index
    %c0_8 = arith.constant 0 : index
    %c0_9 = arith.constant 0 : index
    %5 = vector.load %arg4[%c0_5, %c0_6, %c0_7, %c0_8, %c0_9] : memref<1x8x1x2x32xf32, #tpu.memory_space<vmem>>, vector<1x8x1x2x32xf32>
    %6 = vector.shape_cast %5 : vector<1x8x1x2x32xf32> to vector<8x2x32xf32>
    %c0_10 = arith.constant 0 : index
    %c0_11 = arith.constant 0 : index
    %c0_12 = arith.constant 0 : index
    %c0_13 = arith.constant 0 : index
    %c0_14 = arith.constant 0 : index
    %7 = vector.load %arg5[%c0_10, %c0_11, %c0_12, %c0_13, %c0_14] : memref<1x8x1x2x32xf32, #tpu.memory_space<vmem>>, vector<1x8x1x2x32xf32>
    %8 = vector.shape_cast %7 : vector<1x8x1x2x32xf32> to vector<8x2x32xf32>
    %9 = vector.extract_strided_slice %4 {offsets = [0, 0, 0], sizes = [8, 1, 32], strides = [1, 1, 1]} : vector<8x2x32xf32> to vector<8x1x32xf32>
    %10 = vector.shape_cast %9 : vector<8x1x32xf32> to vector<8x32xf32>
    %11 = arith.truncf %10 : vector<8x32xf32> to vector<8x32xbf16>
    %12 = vector.extract_strided_slice %6 {offsets = [0, 0, 0], sizes = [8, 1, 32], strides = [1, 1, 1]} : vector<8x2x32xf32> to vector<8x1x32xf32>
    %13 = vector.shape_cast %12 : vector<8x1x32xf32> to vector<8x32xf32>
    %14 = arith.truncf %13 : vector<8x32xf32> to vector<8x32xbf16>
    %15 = vector.extract_strided_slice %8 {offsets = [0, 0, 0], sizes = [8, 1, 32], strides = [1, 1, 1]} : vector<8x2x32xf32> to vector<8x1x32xf32>
    %16 = vector.shape_cast %15 : vector<8x1x32xf32> to vector<8x32xf32>
    %17 = arith.truncf %16 : vector<8x32xf32> to vector<8x32xbf16>
    %cst = arith.constant dense<0.000000e+00> : vector<8x8xf32>
    %18 = tpu.matmul %11, %14, %cst {dimension_numbers = #tpu.dot_dimension_numbers<[1], [1], [0], [0], [0, 0, 1, 0], [], []>} : vector<8x32xbf16>, vector<8x32xbf16>, vector<8x8xf32> -> vector<8x8xf32>
    %cst_15 = arith.constant 0.176776692 : f32
    %19 = vector.broadcast %cst_15 : f32 to vector<8x8xf32>
    %20 = arith.mulf %18, %19 : vector<8x8xf32>
    %c0_16 = arith.constant 0 : index
    %c0_17 = arith.constant 0 : index
    %c0_18 = arith.constant 0 : index
    %21 = vector.load %arg7[%c0_16, %c0_17, %c0_18] : memref<2x8x1xf32, #tpu.memory_space<vmem>>, vector<1x8x1xf32>
    %22 = vector.shape_cast %21 : vector<1x8x1xf32> to vector<8x1xf32>
    %cst_19 = arith.constant dense<0xFF800000> : vector<8xf32>
    %23 = vector.multi_reduction <maximumf>, %20, %cst_19 [1] : vector<8x8xf32> to vector<8xf32>
    %24 = vector.shape_cast %23 : vector<8xf32> to vector<8x1xf32>
    %25 = arith.maximumf %22, %24 : vector<8x1xf32>
    %26 = arith.subf %22, %25 : vector<8x1xf32>
    %27 = math.exp %26 : vector<8x1xf32>
    %28 = vector.broadcast %25 : vector<8x1xf32> to vector<8x8xf32>
    %29 = arith.subf %20, %28 : vector<8x8xf32>
    %30 = math.exp %29 : vector<8x8xf32>
    %c0_20 = arith.constant 0 : index
    %c0_21 = arith.constant 0 : index
    %c0_22 = arith.constant 0 : index
    %31 = vector.load %arg8[%c0_20, %c0_21, %c0_22] : memref<2x8x1xf32, #tpu.memory_space<vmem>>, vector<1x8x1xf32>
    %32 = vector.shape_cast %31 : vector<1x8x1xf32> to vector<8x1xf32>
    %33 = arith.mulf %27, %32 : vector<8x1xf32>
    %cst_23 = arith.constant dense<0.000000e+00> : vector<8xf32>
    %34 = vector.multi_reduction <add>, %30, %cst_23 [1] : vector<8x8xf32> to vector<8xf32>
    %35 = vector.shape_cast %34 : vector<8xf32> to vector<8x1xf32>
    %36 = arith.addf %33, %35 : vector<8x1xf32>
    %c0_24 = arith.constant 0 : index
    %c0_25 = arith.constant 0 : index
    %c0_26 = arith.constant 0 : index
    %37 = vector.load %arg8[%c0_24, %c0_25, %c0_26] : memref<2x8x1xf32, #tpu.memory_space<vmem>>, vector<1x8x1xf32>
    %38 = vector.shape_cast %37 : vector<1x8x1xf32> to vector<8x1xf32>
    %39 = vector.shape_cast %36 : vector<8x1xf32> to vector<1x8x1xf32>
    tpu.vector_store %arg8[%c0_24, %c0_25, %c0_26], %39 {strides = array<i32>} : memref<2x8x1xf32, #tpu.memory_space<vmem>>, vector<1x8x1xf32>,
    %c0_27 = arith.constant 0 : index
    %c0_28 = arith.constant 0 : index
    %c0_29 = arith.constant 0 : index
    %40 = vector.load %arg9[%c0_27, %c0_28, %c0_29] : memref<2x8x32xf32, #tpu.memory_space<vmem>>, vector<1x8x32xf32>
    %41 = vector.shape_cast %40 : vector<1x8x32xf32> to vector<8x32xf32>
    %42 = vector.broadcast %27 : vector<8x1xf32> to vector<8x32xf32>
    %43 = arith.mulf %42, %41 : vector<8x32xf32>
    %44 = arith.truncf %30 : vector<8x8xf32> to vector<8x8xbf16>
    %cst_30 = arith.constant dense<0.000000e+00> : vector<8x32xf32>
    %45 = tpu.matmul %44, %17, %cst_30 {dimension_numbers = #tpu.dot_dimension_numbers<[1], [0], [0], [1], [0, 0, 1, 1], [], []>} : vector<8x8xbf16>, vector<8x32xbf16>, vector<8x32xf32> -> vector<8x32xf32>
    %46 = arith.addf %43, %45 : vector<8x32xf32>
    %c0_31 = arith.constant 0 : index
    %c0_32 = arith.constant 0 : index
    %c0_33 = arith.constant 0 : index
    %47 = vector.load %arg9[%c0_31, %c0_32, %c0_33] : memref<2x8x32xf32, #tpu.memory_space<vmem>>, vector<1x8x32xf32>
    %48 = vector.shape_cast %47 : vector<1x8x32xf32> to vector<8x32xf32>
    %49 = vector.shape_cast %46 : vector<8x32xf32> to vector<1x8x32xf32>
    tpu.vector_store %arg9[%c0_31, %c0_32, %c0_33], %49 {strides = array<i32>} : memref<2x8x32xf32, #tpu.memory_space<vmem>>, vector<1x8x32xf32>,
    %c0_34 = arith.constant 0 : index
    %c0_35 = arith.constant 0 : index
    %c0_36 = arith.constant 0 : index
    %50 = vector.load %arg7[%c0_34, %c0_35, %c0_36] : memref<2x8x1xf32, #tpu.memory_space<vmem>>, vector<1x8x1xf32>
    %51 = vector.shape_cast %50 : vector<1x8x1xf32> to vector<8x1xf32>
    %52 = vector.shape_cast %25 : vector<8x1xf32> to vector<1x8x1xf32>
    tpu.vector_store %arg7[%c0_34, %c0_35, %c0_36], %52 {strides = array<i32>} : memref<2x8x1xf32, #tpu.memory_space<vmem>>, vector<1x8x1xf32>,
    %53 = vector.extract_strided_slice %4 {offsets = [0, 1, 0], sizes = [8, 1, 32], strides = [1, 1, 1]} : vector<8x2x32xf32> to vector<8x1x32xf32>
    %54 = vector.shape_cast %53 : vector<8x1x32xf32> to vector<8x32xf32>
    %55 = arith.truncf %54 : vector<8x32xf32> to vector<8x32xbf16>
    %56 = vector.extract_strided_slice %6 {offsets = [0, 1, 0], sizes = [8, 1, 32], strides = [1, 1, 1]} : vector<8x2x32xf32> to vector<8x1x32xf32>
    %57 = vector.shape_cast %56 : vector<8x1x32xf32> to vector<8x32xf32>
    %58 = arith.truncf %57 : vector<8x32xf32> to vector<8x32xbf16>
    %59 = vector.extract_strided_slice %8 {offsets = [0, 1, 0], sizes = [8, 1, 32], strides = [1, 1, 1]} : vector<8x2x32xf32> to vector<8x1x32xf32>
    %60 = vector.shape_cast %59 : vector<8x1x32xf32> to vector<8x32xf32>
    %61 = arith.truncf %60 : vector<8x32xf32> to vector<8x32xbf16>
    %cst_37 = arith.constant dense<0.000000e+00> : vector<8x8xf32>
    %62 = tpu.matmul %55, %58, %cst_37 {dimension_numbers = #tpu.dot_dimension_numbers<[1], [1], [0], [0], [0, 0, 1, 0], [], []>} : vector<8x32xbf16>, vector<8x32xbf16>, vector<8x8xf32> -> vector<8x8xf32>
    %cst_38 = arith.constant 0.176776692 : f32
    %63 = vector.broadcast %cst_38 : f32 to vector<8x8xf32>
    %64 = arith.mulf %62, %63 : vector<8x8xf32>
    %c1 = arith.constant 1 : index
    %c0_39 = arith.constant 0 : index
    %c0_40 = arith.constant 0 : index
    %65 = vector.load %arg7[%c1, %c0_39, %c0_40] : memref<2x8x1xf32, #tpu.memory_space<vmem>>, vector<1x8x1xf32>
    %66 = vector.shape_cast %65 : vector<1x8x1xf32> to vector<8x1xf32>
    %cst_41 = arith.constant dense<0xFF800000> : vector<8xf32>
    %67 = vector.multi_reduction <maximumf>, %64, %cst_41 [1] : vector<8x8xf32> to vector<8xf32>
    %68 = vector.shape_cast %67 : vector<8xf32> to vector<8x1xf32>
    %69 = arith.maximumf %66, %68 : vector<8x1xf32>
    %70 = arith.subf %66, %69 : vector<8x1xf32>
    %71 = math.exp %70 : vector<8x1xf32>
    %72 = vector.broadcast %69 : vector<8x1xf32> to vector<8x8xf32>
    %73 = arith.subf %64, %72 : vector<8x8xf32>
    %74 = math.exp %73 : vector<8x8xf32>
    %c1_42 = arith.constant 1 : index
    %c0_43 = arith.constant 0 : index
    %c0_44 = arith.constant 0 : index
    %75 = vector.load %arg8[%c1_42, %c0_43, %c0_44] : memref<2x8x1xf32, #tpu.memory_space<vmem>>, vector<1x8x1xf32>
    %76 = vector.shape_cast %75 : vector<1x8x1xf32> to vector<8x1xf32>
    %77 = arith.mulf %71, %76 : vector<8x1xf32>
    %cst_45 = arith.constant dense<0.000000e+00> : vector<8xf32>
    %78 = vector.multi_reduction <add>, %74, %cst_45 [1] : vector<8x8xf32> to vector<8xf32>
    %79 = vector.shape_cast %78 : vector<8xf32> to vector<8x1xf32>
    %80 = arith.addf %77, %79 : vector<8x1xf32>
    %c1_46 = arith.constant 1 : index
    %c0_47 = arith.constant 0 : index
    %c0_48 = arith.constant 0 : index
    %81 = vector.load %arg8[%c1_46, %c0_47, %c0_48] : memref<2x8x1xf32, #tpu.memory_space<vmem>>, vector<1x8x1xf32>
    %82 = vector.shape_cast %81 : vector<1x8x1xf32> to vector<8x1xf32>
    %83 = vector.shape_cast %80 : vector<8x1xf32> to vector<1x8x1xf32>
    tpu.vector_store %arg8[%c1_46, %c0_47, %c0_48], %83 {strides = array<i32>} : memref<2x8x1xf32, #tpu.memory_space<vmem>>, vector<1x8x1xf32>,
    %c1_49 = arith.constant 1 : index
    %c0_50 = arith.constant 0 : index
    %c0_51 = arith.constant 0 : index
    %84 = vector.load %arg9[%c1_49, %c0_50, %c0_51] : memref<2x8x32xf32, #tpu.memory_space<vmem>>, vector<1x8x32xf32>
    %85 = vector.shape_cast %84 : vector<1x8x32xf32> to vector<8x32xf32>
    %86 = vector.broadcast %71 : vector<8x1xf32> to vector<8x32xf32>
    %87 = arith.mulf %86, %85 : vector<8x32xf32>
    %88 = arith.truncf %74 : vector<8x8xf32> to vector<8x8xbf16>
    %cst_52 = arith.constant dense<0.000000e+00> : vector<8x32xf32>
    %89 = tpu.matmul %88, %61, %cst_52 {dimension_numbers = #tpu.dot_dimension_numbers<[1], [0], [0], [1], [0, 0, 1, 1], [], []>} : vector<8x8xbf16>, vector<8x32xbf16>, vector<8x32xf32> -> vector<8x32xf32>
    %90 = arith.addf %87, %89 : vector<8x32xf32>
    %c1_53 = arith.constant 1 : index
    %c0_54 = arith.constant 0 : index
    %c0_55 = arith.constant 0 : index
    %91 = vector.load %arg9[%c1_53, %c0_54, %c0_55] : memref<2x8x32xf32, #tpu.memory_space<vmem>>, vector<1x8x32xf32>
    %92 = vector.shape_cast %91 : vector<1x8x32xf32> to vector<8x32xf32>
    %93 = vector.shape_cast %90 : vector<8x32xf32> to vector<1x8x32xf32>
    tpu.vector_store %arg9[%c1_53, %c0_54, %c0_55], %93 {strides = array<i32>} : memref<2x8x32xf32, #tpu.memory_space<vmem>>, vector<1x8x32xf32>,
    %c1_56 = arith.constant 1 : index
    %c0_57 = arith.constant 0 : index
    %c0_58 = arith.constant 0 : index
    %94 = vector.load %arg7[%c1_56, %c0_57, %c0_58] : memref<2x8x1xf32, #tpu.memory_space<vmem>>, vector<1x8x1xf32>
    %95 = vector.shape_cast %94 : vector<1x8x1xf32> to vector<8x1xf32>
    %96 = vector.shape_cast %69 : vector<8x1xf32> to vector<1x8x1xf32>
    tpu.vector_store %arg7[%c1_56, %c0_57, %c0_58], %96 {strides = array<i32>} : memref<2x8x1xf32, #tpu.memory_space<vmem>>, vector<1x8x1xf32>,
    %c0_i32_59 = arith.constant 0 : i32
    %97 = arith.cmpi eq, %arg2, %c0_i32_59 : i32
    %98 = arith.extui %97 : i1 to i32
    %c0_i32_60 = arith.constant 0 : i32
    %99 = arith.cmpi ne, %98, %c0_i32_60 : i32
    scf.if %99 {
      %c0_61 = arith.constant 0 : index
      %c0_62 = arith.constant 0 : index
      %c0_63 = arith.constant 0 : index
      %100 = vector.load %arg8[%c0_61, %c0_62, %c0_63] : memref<2x8x1xf32, #tpu.memory_space<vmem>>, vector<1x8x1xf32>
      %101 = vector.shape_cast %100 : vector<1x8x1xf32> to vector<8x1xf32>
      %102 = tpu.reciprocal %101 {approx = true} : vector<8x1xf32> -> vector<8x1xf32>
      %c0_64 = arith.constant 0 : index
      %c0_65 = arith.constant 0 : index
      %c0_66 = arith.constant 0 : index
      %103 = vector.load %arg9[%c0_64, %c0_65, %c0_66] : memref<2x8x32xf32, #tpu.memory_space<vmem>>, vector<1x8x32xf32>
      %104 = vector.shape_cast %103 : vector<1x8x32xf32> to vector<8x32xf32>
      %105 = vector.broadcast %102 : vector<8x1xf32> to vector<8x32xf32>
      %106 = arith.mulf %104, %105 : vector<8x32xf32>
      %c0_67 = arith.constant 0 : index
      %c0_68 = arith.constant 0 : index
      %c0_69 = arith.constant 0 : index
      %c0_70 = arith.constant 0 : index
      %107 = vector.load %arg6[%c0_67, %c0_68, %c0_69, %c0_70] : memref<1x8x2x32xf32, #tpu.memory_space<vmem>>, vector<1x8x1x32xf32>
      %108 = vector.shape_cast %107 : vector<1x8x1x32xf32> to vector<8x32xf32>
      %109 = vector.shape_cast %106 : vector<8x32xf32> to vector<1x8x1x32xf32>
      tpu.vector_store %arg6[%c0_67, %c0_68, %c0_69, %c0_70], %109 {strides = array<i32>} : memref<1x8x2x32xf32, #tpu.memory_space<vmem>>, vector<1x8x1x32xf32>,
      %c1_71 = arith.constant 1 : index
      %c0_72 = arith.constant 0 : index
      %c0_73 = arith.constant 0 : index
      %110 = vector.load %arg8[%c1_71, %c0_72, %c0_73] : memref<2x8x1xf32, #tpu.memory_space<vmem>>, vector<1x8x1xf32>
      %111 = vector.shape_cast %110 : vector<1x8x1xf32> to vector<8x1xf32>
      %112 = tpu.reciprocal %111 {approx = true} : vector<8x1xf32> -> vector<8x1xf32>
      %c1_74 = arith.constant 1 : index
      %c0_75 = arith.constant 0 : index
      %c0_76 = arith.constant 0 : index
      %113 = vector.load %arg9[%c1_74, %c0_75, %c0_76] : memref<2x8x32xf32, #tpu.memory_space<vmem>>, vector<1x8x32xf32>
      %114 = vector.shape_cast %113 : vector<1x8x32xf32> to vector<8x32xf32>
      %115 = vector.broadcast %112 : vector<8x1xf32> to vector<8x32xf32>
      %116 = arith.mulf %114, %115 : vector<8x32xf32>
      %c0_77 = arith.constant 0 : index
      %c0_78 = arith.constant 0 : index
      %c1_79 = arith.constant 1 : index
      %c0_80 = arith.constant 0 : index
      %117 = vector.load %arg6[%c0_77, %c0_78, %c1_79, %c0_80] : memref<1x8x2x32xf32, #tpu.memory_space<vmem>>, vector<1x8x1x32xf32>
      %118 = vector.shape_cast %117 : vector<1x8x1x32xf32> to vector<8x32xf32>
      %119 = vector.shape_cast %116 : vector<8x32xf32> to vector<1x8x1x32xf32>
      tpu.vector_store %arg6[%c0_77, %c0_78, %c1_79, %c0_80], %119 {strides = array<i32>} : memref<1x8x2x32xf32, #tpu.memory_space<vmem>>, vector<1x8x1x32xf32>,
    } else {
    }
    return
  }
  func.func @transform_0(%arg0: i32, %arg1: i32, %arg2: i32) -> (i32, i32, i32, i32, i32) {
    %c0_i32 = arith.constant 0 : i32
    %c0_i32_0 = arith.constant 0 : i32
    %c0_i32_1 = arith.constant 0 : i32
    %c0_i32_2 = arith.constant 0 : i32
    return %arg0, %arg1, %c0_i32, %c0_i32_0, %c0_i32_1 : i32, i32, i32, i32, i32
  }
  func.func @transform_1(%arg0: i32, %arg1: i32, %arg2: i32) -> (i32, i32, i32, i32, i32) {
    %c1_i32 = arith.constant 1 : i32
    %c0_i32 = arith.constant 0 : i32
    %c0_i32_0 = arith.constant 0 : i32
    %c0_i32_1 = arith.constant 0 : i32
    return %arg0, %arg2, %c1_i32, %c0_i32, %c0_i32_0 : i32, i32, i32, i32, i32
  }
  func.func @transform_2(%arg0: i32, %arg1: i32, %arg2: i32) -> (i32, i32, i32, i32, i32) {
    %c2_i32 = arith.constant 2 : i32
    %c0_i32 = arith.constant 0 : i32
    %c0_i32_0 = arith.constant 0 : i32
    %c0_i32_1 = arith.constant 0 : i32
    return %arg0, %arg2, %c2_i32, %c0_i32, %c0_i32_0 : i32, i32, i32, i32, i32
  }
  func.func @transform_3(%arg0: i32, %arg1: i32, %arg2: i32) -> (i32, i32, i32, i32) {
    %c0_i32 = arith.constant 0 : i32
    %c0_i32_0 = arith.constant 0 : i32
    %c0_i32_1 = arith.constant 0 : i32
    return %arg0, %arg1, %c0_i32, %c0_i32_0 : i32, i32, i32, i32
  }
}

module attributes {stable_mosaic.version = 11 : i64} {
  func.func @_fused_linear_kernel(%arg0: i32, %arg1: i32, %arg2: memref<16x64xf32, #tpu.memory_space<vmem>>, %arg3: memref<64x64xbf16, #tpu.memory_space<vmem>>, %arg4: memref<1x64xf32, #tpu.memory_space<vmem>>, %arg5: memref<16x64xf32, #tpu.memory_space<vmem>>, %arg6: memref<16x1xf32, #tpu.memory_space<vmem>>, %arg7: memref<16x64xf32, #tpu.memory_space<vmem>>) attributes {dimension_semantics = [#tpu.dimension_semantics<parallel>, #tpu.dimension_semantics<parallel>], iteration_bounds = array<i64: 1, 1>, scalar_prefetch = 0 : i64, scratch_operands = 0 : i64, tpu.core_type = #tpu.core_type<tc>, window_params = [{transform_indices = @transform_0, window_bounds = array<i64: 16, 64>}, {transform_indices = @transform_1, window_bounds = array<i64: 64, 64>}, {transform_indices = @transform_2, window_bounds = array<i64: 1, 64>}, {transform_indices = @transform_3, window_bounds = array<i64: 16, 64>}, {transform_indices = @transform_4, window_bounds = array<i64: 16, 1>}, {transform_indices = @transform_5, window_bounds = array<i64: 16, 64>}]} {
    %c0 = arith.constant 0 : index
    %c0_0 = arith.constant 0 : index
    %0 = vector.load %arg2[%c0, %c0_0] : memref<16x64xf32, #tpu.memory_space<vmem>>, vector<16x64xf32>
    %1 = arith.truncf %0 : vector<16x64xf32> to vector<16x64xbf16>
    %c0_1 = arith.constant 0 : index
    %c0_2 = arith.constant 0 : index
    %2 = vector.load %arg3[%c0_1, %c0_2] : memref<64x64xbf16, #tpu.memory_space<vmem>>, vector<64x64xbf16>
    %cst = arith.constant dense<0.000000e+00> : vector<16x64xf32>
    %3 = tpu.matmul %1, %2, %cst {dimension_numbers = #tpu.dot_dimension_numbers<[1], [0], [0], [1], [0, 0, 1, 1], [], []>} : vector<16x64xbf16>, vector<64x64xbf16>, vector<16x64xf32> -> vector<16x64xf32>
    %c0_3 = arith.constant 0 : index
    %c0_4 = arith.constant 0 : index
    %4 = vector.load %arg4[%c0_3, %c0_4] : memref<1x64xf32, #tpu.memory_space<vmem>>, vector<1x64xf32>
    %5 = vector.broadcast %4 : vector<1x64xf32> to vector<16x64xf32>
    %6 = arith.addf %3, %5 : vector<16x64xf32>
    %c0_5 = arith.constant 0 : index
    %c0_6 = arith.constant 0 : index
    %7 = vector.load %arg5[%c0_5, %c0_6] : memref<16x64xf32, #tpu.memory_space<vmem>>, vector<16x64xf32>
    %c0_7 = arith.constant 0 : index
    %c0_8 = arith.constant 0 : index
    %8 = vector.load %arg6[%c0_7, %c0_8] : memref<16x1xf32, #tpu.memory_space<vmem>>, vector<16x1xf32>
    %9 = vector.broadcast %8 : vector<16x1xf32> to vector<16x64xf32>
    %10 = arith.mulf %9, %6 : vector<16x64xf32>
    %11 = arith.addf %7, %10 : vector<16x64xf32>
    %c0_9 = arith.constant 0 : index
    %c0_10 = arith.constant 0 : index
    %12 = vector.load %arg7[%c0_9, %c0_10] : memref<16x64xf32, #tpu.memory_space<vmem>>, vector<16x64xf32>
    tpu.vector_store %arg7[%c0_9, %c0_10], %11 {strides = array<i32>} : memref<16x64xf32, #tpu.memory_space<vmem>>, vector<16x64xf32>,
    return
  }
  func.func @transform_0(%arg0: i32, %arg1: i32) -> (i32, i32) {
    %c0_i32 = arith.constant 0 : i32
    %c0_i32_0 = arith.constant 0 : i32
    return %arg0, %c0_i32 : i32, i32
  }
  func.func @transform_1(%arg0: i32, %arg1: i32) -> (i32, i32) {
    %c0_i32 = arith.constant 0 : i32
    %c0_i32_0 = arith.constant 0 : i32
    return %c0_i32, %arg1 : i32, i32
  }
  func.func @transform_2(%arg0: i32, %arg1: i32) -> (i32, i32) {
    %c0_i32 = arith.constant 0 : i32
    %c0_i32_0 = arith.constant 0 : i32
    return %c0_i32, %arg1 : i32, i32
  }
  func.func @transform_3(%arg0: i32, %arg1: i32) -> (i32, i32) {
    %c0_i32 = arith.constant 0 : i32
    return %arg0, %arg1 : i32, i32
  }
  func.func @transform_4(%arg0: i32, %arg1: i32) -> (i32, i32) {
    %c0_i32 = arith.constant 0 : i32
    %c0_i32_0 = arith.constant 0 : i32
    return %arg0, %c0_i32 : i32, i32
  }
  func.func @transform_5(%arg0: i32, %arg1: i32) -> (i32, i32) {
    %c0_i32 = arith.constant 0 : i32
    return %arg0, %arg1 : i32, i32
  }
}

module attributes {stable_mosaic.version = 11 : i64} {
  func.func @_fused_linear_kernel(%arg0: i32, %arg1: i32, %arg2: memref<16x64xf32, #tpu.memory_space<vmem>>, %arg3: memref<1x64xf32, #tpu.memory_space<vmem>>, %arg4: memref<1x64xf32, #tpu.memory_space<vmem>>, %arg5: memref<64x256xbf16, #tpu.memory_space<vmem>>, %arg6: memref<1x256xf32, #tpu.memory_space<vmem>>, %arg7: memref<16x256xf32, #tpu.memory_space<vmem>>) attributes {dimension_semantics = [#tpu.dimension_semantics<parallel>, #tpu.dimension_semantics<parallel>], iteration_bounds = array<i64: 1, 1>, scalar_prefetch = 0 : i64, scratch_operands = 0 : i64, tpu.core_type = #tpu.core_type<tc>, window_params = [{transform_indices = @transform_0, window_bounds = array<i64: 16, 64>}, {pipeline_mode = #tpu.pipeline_mode<synchronous>, transform_indices = @transform_1, window_bounds = array<i64: 1, 64>}, {pipeline_mode = #tpu.pipeline_mode<synchronous>, transform_indices = @transform_2, window_bounds = array<i64: 1, 64>}, {transform_indices = @transform_3, window_bounds = array<i64: 64, 256>}, {transform_indices = @transform_4, window_bounds = array<i64: 1, 256>}, {transform_indices = @transform_5, window_bounds = array<i64: 16, 256>}]} {
    %c0 = arith.constant 0 : index
    %c0_0 = arith.constant 0 : index
    %0 = vector.load %arg2[%c0, %c0_0] : memref<16x64xf32, #tpu.memory_space<vmem>>, vector<16x64xf32>
    %cst = arith.constant dense<0.000000e+00> : vector<16xf32>
    %1 = vector.multi_reduction <add>, %0, %cst [1] : vector<16x64xf32> to vector<16xf32>
    %2 = vector.shape_cast %1 : vector<16xf32> to vector<16x1xf32>
    %cst_1 = arith.constant 6.400000e+01 : f32
    %3 = vector.broadcast %cst_1 : f32 to vector<16x1xf32>
    %4 = arith.divf %2, %3 : vector<16x1xf32>
    %5 = vector.broadcast %4 : vector<16x1xf32> to vector<16x64xf32>
    %6 = arith.subf %0, %5 : vector<16x64xf32>
    %7 = arith.mulf %6, %6 : vector<16x64xf32>
    %cst_2 = arith.constant dense<0.000000e+00> : vector<16xf32>
    %8 = vector.multi_reduction <add>, %7, %cst_2 [1] : vector<16x64xf32> to vector<16xf32>
    %9 = vector.shape_cast %8 : vector<16xf32> to vector<16x1xf32>
    %cst_3 = arith.constant 6.400000e+01 : f32
    %10 = vector.broadcast %cst_3 : f32 to vector<16x1xf32>
    %11 = arith.divf %9, %10 : vector<16x1xf32>
    %cst_4 = arith.constant 9.99999997E-7 : f32
    %12 = vector.broadcast %cst_4 : f32 to vector<16x1xf32>
    %13 = arith.addf %11, %12 : vector<16x1xf32>
    %14 = math.rsqrt %13 : vector<16x1xf32>
    %15 = vector.broadcast %14 : vector<16x1xf32> to vector<16x64xf32>
    %16 = arith.mulf %6, %15 : vector<16x64xf32>
    %c0_5 = arith.constant 0 : index
    %c0_6 = arith.constant 0 : index
    %17 = vector.load %arg3[%c0_5, %c0_6] : memref<1x64xf32, #tpu.memory_space<vmem>>, vector<1x64xf32>
    %18 = vector.broadcast %17 : vector<1x64xf32> to vector<16x64xf32>
    %19 = arith.mulf %16, %18 : vector<16x64xf32>
    %c0_7 = arith.constant 0 : index
    %c0_8 = arith.constant 0 : index
    %20 = vector.load %arg4[%c0_7, %c0_8] : memref<1x64xf32, #tpu.memory_space<vmem>>, vector<1x64xf32>
    %21 = vector.broadcast %20 : vector<1x64xf32> to vector<16x64xf32>
    %22 = arith.addf %19, %21 : vector<16x64xf32>
    %23 = arith.truncf %22 : vector<16x64xf32> to vector<16x64xbf16>
    %c0_9 = arith.constant 0 : index
    %c0_10 = arith.constant 0 : index
    %24 = vector.load %arg5[%c0_9, %c0_10] : memref<64x256xbf16, #tpu.memory_space<vmem>>, vector<64x256xbf16>
    %cst_11 = arith.constant dense<0.000000e+00> : vector<16x256xf32>
    %25 = tpu.matmul %23, %24, %cst_11 {dimension_numbers = #tpu.dot_dimension_numbers<[1], [0], [0], [1], [0, 0, 1, 1], [], []>} : vector<16x64xbf16>, vector<64x256xbf16>, vector<16x256xf32> -> vector<16x256xf32>
    %c0_12 = arith.constant 0 : index
    %c0_13 = arith.constant 0 : index
    %26 = vector.load %arg6[%c0_12, %c0_13] : memref<1x256xf32, #tpu.memory_space<vmem>>, vector<1x256xf32>
    %27 = vector.broadcast %26 : vector<1x256xf32> to vector<16x256xf32>
    %28 = arith.addf %25, %27 : vector<16x256xf32>
    %29 = arith.mulf %28, %28 : vector<16x256xf32>
    %30 = arith.mulf %28, %29 : vector<16x256xf32>
    %cst_14 = arith.constant 4.471500e-02 : f32
    %31 = vector.broadcast %cst_14 : f32 to vector<16x256xf32>
    %32 = arith.mulf %31, %30 : vector<16x256xf32>
    %33 = arith.addf %28, %32 : vector<16x256xf32>
    %cst_15 = arith.constant 0.797884583 : f32
    %34 = vector.broadcast %cst_15 : f32 to vector<16x256xf32>
    %35 = arith.mulf %34, %33 : vector<16x256xf32>
    %36 = math.tanh %35 : vector<16x256xf32>
    %cst_16 = arith.constant 1.000000e+00 : f32
    %37 = vector.broadcast %cst_16 : f32 to vector<16x256xf32>
    %38 = arith.addf %37, %36 : vector<16x256xf32>
    %cst_17 = arith.constant 5.000000e-01 : f32
    %39 = vector.broadcast %cst_17 : f32 to vector<16x256xf32>
    %40 = arith.mulf %39, %38 : vector<16x256xf32>
    %41 = arith.mulf %28, %40 : vector<16x256xf32>
    %c0_18 = arith.constant 0 : index
    %c0_19 = arith.constant 0 : index
    %42 = vector.load %arg7[%c0_18, %c0_19] : memref<16x256xf32, #tpu.memory_space<vmem>>, vector<16x256xf32>
    tpu.vector_store %arg7[%c0_18, %c0_19], %41 {strides = array<i32>} : memref<16x256xf32, #tpu.memory_space<vmem>>, vector<16x256xf32>,
    return
  }
  func.func @transform_0(%arg0: i32, %arg1: i32) -> (i32, i32) {
    %c0_i32 = arith.constant 0 : i32
    %c0_i32_0 = arith.constant 0 : i32
    return %arg0, %c0_i32 : i32, i32
  }
  func.func @transform_1(%arg0: i32, %arg1: i32) -> (i32, i32) {
    %c0_i32 = arith.constant 0 : i32
    %c0_i32_0 = arith.constant 0 : i32
    %c0_i32_1 = arith.constant 0 : i32
    return %c0_i32, %c0_i32_0 : i32, i32
  }
  func.func @transform_2(%arg0: i32, %arg1: i32) -> (i32, i32) {
    %c0_i32 = arith.constant 0 : i32
    %c0_i32_0 = arith.constant 0 : i32
    %c0_i32_1 = arith.constant 0 : i32
    return %c0_i32, %c0_i32_0 : i32, i32
  }
  func.func @transform_3(%arg0: i32, %arg1: i32) -> (i32, i32) {
    %c0_i32 = arith.constant 0 : i32
    %c0_i32_0 = arith.constant 0 : i32
    return %c0_i32, %arg1 : i32, i32
  }
  func.func @transform_4(%arg0: i32, %arg1: i32) -> (i32, i32) {
    %c0_i32 = arith.constant 0 : i32
    %c0_i32_0 = arith.constant 0 : i32
    return %c0_i32, %arg1 : i32, i32
  }
  func.func @transform_5(%arg0: i32, %arg1: i32) -> (i32, i32) {
    %c0_i32 = arith.constant 0 : i32
    return %arg0, %arg1 : i32, i32
  }
}

module attributes {stable_mosaic.version = 11 : i64} {
  func.func @_fused_linear_kernel(%arg0: i32, %arg1: i32, %arg2: memref<16x256xf32, #tpu.memory_space<vmem>>, %arg3: memref<256x64xbf16, #tpu.memory_space<vmem>>, %arg4: memref<1x64xf32, #tpu.memory_space<vmem>>, %arg5: memref<16x64xf32, #tpu.memory_space<vmem>>, %arg6: memref<16x1xf32, #tpu.memory_space<vmem>>, %arg7: memref<16x64xf32, #tpu.memory_space<vmem>>) attributes {dimension_semantics = [#tpu.dimension_semantics<parallel>, #tpu.dimension_semantics<parallel>], iteration_bounds = array<i64: 1, 1>, scalar_prefetch = 0 : i64, scratch_operands = 0 : i64, tpu.core_type = #tpu.core_type<tc>, window_params = [{transform_indices = @transform_0, window_bounds = array<i64: 16, 256>}, {transform_indices = @transform_1, window_bounds = array<i64: 256, 64>}, {transform_indices = @transform_2, window_bounds = array<i64: 1, 64>}, {transform_indices = @transform_3, window_bounds = array<i64: 16, 64>}, {transform_indices = @transform_4, window_bounds = array<i64: 16, 1>}, {transform_indices = @transform_5, window_bounds = array<i64: 16, 64>}]} {
    %c0 = arith.constant 0 : index
    %c0_0 = arith.constant 0 : index
    %0 = vector.load %arg2[%c0, %c0_0] : memref<16x256xf32, #tpu.memory_space<vmem>>, vector<16x256xf32>
    %1 = arith.truncf %0 : vector<16x256xf32> to vector<16x256xbf16>
    %c0_1 = arith.constant 0 : index
    %c0_2 = arith.constant 0 : index
    %2 = vector.load %arg3[%c0_1, %c0_2] : memref<256x64xbf16, #tpu.memory_space<vmem>>, vector<256x64xbf16>
    %cst = arith.constant dense<0.000000e+00> : vector<16x64xf32>
    %3 = tpu.matmul %1, %2, %cst {dimension_numbers = #tpu.dot_dimension_numbers<[1], [0], [0], [1], [0, 0, 1, 1], [], []>} : vector<16x256xbf16>, vector<256x64xbf16>, vector<16x64xf32> -> vector<16x64xf32>
    %c0_3 = arith.constant 0 : index
    %c0_4 = arith.constant 0 : index
    %4 = vector.load %arg4[%c0_3, %c0_4] : memref<1x64xf32, #tpu.memory_space<vmem>>, vector<1x64xf32>
    %5 = vector.broadcast %4 : vector<1x64xf32> to vector<16x64xf32>
    %6 = arith.addf %3, %5 : vector<16x64xf32>
    %c0_5 = arith.constant 0 : index
    %c0_6 = arith.constant 0 : index
    %7 = vector.load %arg5[%c0_5, %c0_6] : memref<16x64xf32, #tpu.memory_space<vmem>>, vector<16x64xf32>
    %c0_7 = arith.constant 0 : index
    %c0_8 = arith.constant 0 : index
    %8 = vector.load %arg6[%c0_7, %c0_8] : memref<16x1xf32, #tpu.memory_space<vmem>>, vector<16x1xf32>
    %9 = vector.broadcast %8 : vector<16x1xf32> to vector<16x64xf32>
    %10 = arith.mulf %9, %6 : vector<16x64xf32>
    %11 = arith.addf %7, %10 : vector<16x64xf32>
    %c0_9 = arith.constant 0 : index
    %c0_10 = arith.constant 0 : index
    %12 = vector.load %arg7[%c0_9, %c0_10] : memref<16x64xf32, #tpu.memory_space<vmem>>, vector<16x64xf32>
    tpu.vector_store %arg7[%c0_9, %c0_10], %11 {strides = array<i32>} : memref<16x64xf32, #tpu.memory_space<vmem>>, vector<16x64xf32>,
    return
  }
  func.func @transform_0(%arg0: i32, %arg1: i32) -> (i32, i32) {
    %c0_i32 = arith.constant 0 : i32
    %c0_i32_0 = arith.constant 0 : i32
    return %arg0, %c0_i32 : i32, i32
  }
  func.func @transform_1(%arg0: i32, %arg1: i32) -> (i32, i32) {
    %c0_i32 = arith.constant 0 : i32
    %c0_i32_0 = arith.constant 0 : i32
    return %c0_i32, %arg1 : i32, i32
  }
  func.func @transform_2(%arg0: i32, %arg1: i32) -> (i32, i32) {
    %c0_i32 = arith.constant 0 : i32
    %c0_i32_0 = arith.constant 0 : i32
    return %c0_i32, %arg1 : i32, i32
  }
  func.func @transform_3(%arg0: i32, %arg1: i32) -> (i32, i32) {
    %c0_i32 = arith.constant 0 : i32
    return %arg0, %arg1 : i32, i32
  }
  func.func @transform_4(%arg0: i32, %arg1: i32) -> (i32, i32) {
    %c0_i32 = arith.constant 0 : i32
    %c0_i32_0 = arith.constant 0 : i32
    return %arg0, %c0_i32 : i32, i32
  }
  func.func @transform_5(%arg0: i32, %arg1: i32) -> (i32, i32) {
    %c0_i32 = arith.constant 0 : i32
    return %arg0, %arg1 : i32, i32
  }
}

module attributes {stable_mosaic.version = 11 : i64} {
  func.func @_fused_linear_kernel(%arg0: i32, %arg1: i32, %arg2: memref<8x64xf32, #tpu.memory_space<vmem>>, %arg3: memref<1x64xf32, #tpu.memory_space<vmem>>, %arg4: memref<1x64xf32, #tpu.memory_space<vmem>>, %arg5: memref<64x10xbf16, #tpu.memory_space<vmem>>, %arg6: memref<1x10xf32, #tpu.memory_space<vmem>>, %arg7: memref<8x10xf32, #tpu.memory_space<vmem>>) attributes {dimension_semantics = [#tpu.dimension_semantics<parallel>, #tpu.dimension_semantics<parallel>], iteration_bounds = array<i64: 1, 1>, scalar_prefetch = 0 : i64, scratch_operands = 0 : i64, tpu.core_type = #tpu.core_type<tc>, window_params = [{transform_indices = @transform_0, window_bounds = array<i64: 8, 64>}, {pipeline_mode = #tpu.pipeline_mode<synchronous>, transform_indices = @transform_1, window_bounds = array<i64: 1, 64>}, {pipeline_mode = #tpu.pipeline_mode<synchronous>, transform_indices = @transform_2, window_bounds = array<i64: 1, 64>}, {transform_indices = @transform_3, window_bounds = array<i64: 64, 10>}, {transform_indices = @transform_4, window_bounds = array<i64: 1, 10>}, {transform_indices = @transform_5, window_bounds = array<i64: 8, 10>}]} {
    %c0 = arith.constant 0 : index
    %c0_0 = arith.constant 0 : index
    %0 = vector.load %arg2[%c0, %c0_0] : memref<8x64xf32, #tpu.memory_space<vmem>>, vector<8x64xf32>
    %cst = arith.constant dense<0.000000e+00> : vector<8xf32>
    %1 = vector.multi_reduction <add>, %0, %cst [1] : vector<8x64xf32> to vector<8xf32>
    %2 = vector.shape_cast %1 : vector<8xf32> to vector<8x1xf32>
    %cst_1 = arith.constant 6.400000e+01 : f32
    %3 = vector.broadcast %cst_1 : f32 to vector<8x1xf32>
    %4 = arith.divf %2, %3 : vector<8x1xf32>
    %5 = vector.broadcast %4 : vector<8x1xf32> to vector<8x64xf32>
    %6 = arith.subf %0, %5 : vector<8x64xf32>
    %7 = arith.mulf %6, %6 : vector<8x64xf32>
    %cst_2 = arith.constant dense<0.000000e+00> : vector<8xf32>
    %8 = vector.multi_reduction <add>, %7, %cst_2 [1] : vector<8x64xf32> to vector<8xf32>
    %9 = vector.shape_cast %8 : vector<8xf32> to vector<8x1xf32>
    %cst_3 = arith.constant 6.400000e+01 : f32
    %10 = vector.broadcast %cst_3 : f32 to vector<8x1xf32>
    %11 = arith.divf %9, %10 : vector<8x1xf32>
    %cst_4 = arith.constant 9.99999997E-7 : f32
    %12 = vector.broadcast %cst_4 : f32 to vector<8x1xf32>
    %13 = arith.addf %11, %12 : vector<8x1xf32>
    %14 = math.rsqrt %13 : vector<8x1xf32>
    %15 = vector.broadcast %14 : vector<8x1xf32> to vector<8x64xf32>
    %16 = arith.mulf %6, %15 : vector<8x64xf32>
    %c0_5 = arith.constant 0 : index
    %c0_6 = arith.constant 0 : index
    %17 = vector.load %arg3[%c0_5, %c0_6] : memref<1x64xf32, #tpu.memory_space<vmem>>, vector<1x64xf32>
    %18 = vector.broadcast %17 : vector<1x64xf32> to vector<8x64xf32>
    %19 = arith.mulf %16, %18 : vector<8x64xf32>
    %c0_7 = arith.constant 0 : index
    %c0_8 = arith.constant 0 : index
    %20 = vector.load %arg4[%c0_7, %c0_8] : memref<1x64xf32, #tpu.memory_space<vmem>>, vector<1x64xf32>
    %21 = vector.broadcast %20 : vector<1x64xf32> to vector<8x64xf32>
    %22 = arith.addf %19, %21 : vector<8x64xf32>
    %23 = arith.truncf %22 : vector<8x64xf32> to vector<8x64xbf16>
    %c0_9 = arith.constant 0 : index
    %c0_10 = arith.constant 0 : index
    %24 = vector.load %arg5[%c0_9, %c0_10] : memref<64x10xbf16, #tpu.memory_space<vmem>>, vector<64x10xbf16>
    %cst_11 = arith.constant dense<0.000000e+00> : vector<8x10xf32>
    %25 = tpu.matmul %23, %24, %cst_11 {dimension_numbers = #tpu.dot_dimension_numbers<[1], [0], [0], [1], [0, 0, 1, 1], [], []>} : vector<8x64xbf16>, vector<64x10xbf16>, vector<8x10xf32> -> vector<8x10xf32>
    %c0_12 = arith.constant 0 : index
    %c0_13 = arith.constant 0 : index
    %26 = vector.load %arg6[%c0_12, %c0_13] : memref<1x10xf32, #tpu.memory_space<vmem>>, vector<1x10xf32>
    %27 = vector.broadcast %26 : vector<1x10xf32> to vector<8x10xf32>
    %28 = arith.addf %25, %27 : vector<8x10xf32>
    %c0_14 = arith.constant 0 : index
    %c0_15 = arith.constant 0 : index
    %29 = vector.load %arg7[%c0_14, %c0_15] : memref<8x10xf32, #tpu.memory_space<vmem>>, vector<8x10xf32>
    tpu.vector_store %arg7[%c0_14, %c0_15], %28 {strides = array<i32>} : memref<8x10xf32, #tpu.memory_space<vmem>>, vector<8x10xf32>,
    return
  }
  func.func @transform_0(%arg0: i32, %arg1: i32) -> (i32, i32) {
    %c0_i32 = arith.constant 0 : i32
    %c0_i32_0 = arith.constant 0 : i32
    return %arg0, %c0_i32 : i32, i32
  }
  func.func @transform_1(%arg0: i32, %arg1: i32) -> (i32, i32) {
    %c0_i32 = arith.constant 0 : i32
    %c0_i32_0 = arith.constant 0 : i32
    %c0_i32_1 = arith.constant 0 : i32
    return %c0_i32, %c0_i32_0 : i32, i32
  }
  func.func @transform_2(%arg0: i32, %arg1: i32) -> (i32, i32) {
    %c0_i32 = arith.constant 0 : i32
    %c0_i32_0 = arith.constant 0 : i32
    %c0_i32_1 = arith.constant 0 : i32
    return %c0_i32, %c0_i32_0 : i32, i32
  }
  func.func @transform_3(%arg0: i32, %arg1: i32) -> (i32, i32) {
    %c0_i32 = arith.constant 0 : i32
    %c0_i32_0 = arith.constant 0 : i32
    return %c0_i32, %arg1 : i32, i32
  }
  func.func @transform_4(%arg0: i32, %arg1: i32) -> (i32, i32) {
    %c0_i32 = arith.constant 0 : i32
    %c0_i32_0 = arith.constant 0 : i32
    return %c0_i32, %arg1 : i32, i32
  }
  func.func @transform_5(%arg0: i32, %arg1: i32) -> (i32, i32) {
    %c0_i32 = arith.constant 0 : i32
    return %arg0, %arg1 : i32, i32
  }
}

</mosaic_0001>

<llo_original>
// kernel: vit_forward.13
$region0: #{vit_forward.13}
  #allocation0 [shape = 'u32[]', space=smem, size = 0x4, offset = 0x4, fixed_abs, tag = 'smem constant byte address 0x4 - core index']
  #allocation1 [shape = 'u32[144,128]{1,0:T(1,128)}', space=vmem, size = 0x12000, scoped, tag = 'internal scratch']
  %s0 = inlined_call_operand.vmem [shape: f32[16,64], index: 0, kind: input, shape index: {}]
  %s1 = inlined_call_operand.vmem [shape: f32[1,64], index: 1, kind: input, shape index: {}]
  %s2 = inlined_call_operand.vmem [shape: f32[1,64], index: 2, kind: input, shape index: {}]
  %s3 = inlined_call_operand.vmem [shape: bf16[64,192], index: 3, kind: input, shape index: {}]
  %s4 = inlined_call_operand.vmem [shape: f32[1,192], index: 4, kind: input, shape index: {}]
  %s5 = inlined_call_operand.vmem [shape: f32[16,192], index: 5, kind: output, shape index: {}]
  %s6 = sld [smem:[#allocation0]]
  $region30: #{vit_forward.13} parent=0
    _
  %s8 = ssub.s32 1, %s6
  %s9 = scalar_select 0, %s8, %s6
  // Predicated region
  $region2: #{vit_forward.13} parent=0 // pred_check
    _
  $region3: #{vit_forward.13} parent=0 // pred_check_branch
    %11 = sbr.rel (0) target = $region5
  $region4: #{vit_forward.13} parent=0 // pred_region
    _
  $region5: #{vit_forward.13} parent=0 // pred_fallthru
    _
  // Predicated region
  $region6: #{vit_forward.13} parent=0 // pred_check
    _
  $region7: #{vit_forward.13} parent=0 // pred_check_branch
    %13 = sbr.rel (0) target = $region9
  $region8: #{vit_forward.13} parent=0 // pred_region
    _
  $region9: #{vit_forward.13} parent=0 // pred_fallthru
    _
  // Predicated region
  $region10: #{vit_forward.13} parent=0 // pred_check
    _
  $region11: #{vit_forward.13} parent=0 // pred_check_branch
    %15 = sbr.rel (0) target = $region13
  $region12: #{vit_forward.13} parent=0 // pred_region
    _
  $region13: #{vit_forward.13} parent=0 // pred_fallthru
    _
  // Predicated region
  $region14: #{vit_forward.13} parent=0 // pred_check
    _
  $region15: #{vit_forward.13} parent=0 // pred_check_branch
    %17 = sbr.rel (0) target = $region17
  $region16: #{vit_forward.13} parent=0 // pred_region
    _
  $region17: #{vit_forward.13} parent=0 // pred_fallthru
    _
  // Predicated region
  $region18: #{vit_forward.13} parent=0 // pred_check
    _
  $region19: #{vit_forward.13} parent=0 // pred_check_branch
    %19 = sbr.rel (0) target = $region21
  $region20: #{vit_forward.13} parent=0 // pred_region
    _
  $region21: #{vit_forward.13} parent=0 // pred_fallthru
    _
  %v21 = vld [vmem:[%s0] sm:$0xff]
  %v22 = vld [vmem:[%s0 + $0x8] sm:$0xff]
  %vm23 = vcmask 523264
  %v24 = vsel %vm23, %v21, 0.0
  %25 = vadd.xlane.f32.xlu0 %v24
  %v26 = vpop.xlane.xlu0 %25
  %v27 = vsel %vm23, %v22, 0.0
  %28 = vadd.xlane.f32.xlu0 %v27
  %v29 = vpop.xlane.xlu0 %28
  %v30 = vrcp.pop 64.0
  %v31 = vmul.f32 %v26, %v30
  %v32 = vmul.f32 %v29, %v30
  %v33 = vsub.f32 %v21, %v31
  %v34 = vsub.f32 %v22, %v32
  %v35 = vmul.f32 %v33, %v33
  %v36 = vmul.f32 %v34, %v34
  %v37 = vsel %vm23, %v35, 0.0
  %38 = vadd.xlane.f32.xlu0 %v37
  %v39 = vpop.xlane.xlu0 %38
  %v40 = vsel %vm23, %v36, 0.0
  %41 = vadd.xlane.f32.xlu0 %v40
  %v42 = vpop.xlane.xlu0 %41
  %v43 = vmul.f32 %v39, %v30
  %v44 = vmul.f32 %v42, %v30
  %v45 = vadd.f32 %v43, 1e-06
  %v46 = vadd.f32 %v44, 1e-06
  %v47 = vrsqrt.pop %v45
  %v48 = vrsqrt.pop %v46
  %v49 = vmul.f32 %v33, %v47
  %v50 = vmul.f32 %v34, %v48
  %v51 = vld [vmem:[%s1] sm:$0x1]
  %v53 = vlaneseq
  %v54 = vshrl.u32 %v53, 7
  %v55 = vsub.s32 0, %v54
  %v56 = vrot.slane %v51, %v55
  %v58 = vmul.f32 %v49, %v56
  %v59 = vmul.f32 %v50, %v56
  %v60 = vld [vmem:[%s2] sm:$0x1]
  %v62 = vlaneseq
  %v63 = vshrl.u32 %v62, 7
  %v64 = vsub.s32 0, %v63
  %v65 = vrot.slane %v60, %v64
  %v67 = vadd.f32 %v58, %v65
  %v68 = vadd.f32 %v59, %v65
  %v69 = vpack.c.bf16 %v68, %v67
  %v70 = vld [vmem:[%s3] sm:$0xff]
  %v71 = vld [vmem:[%s3 + $0x8] sm:$0xff]
  %v72 = vld [vmem:[%s3 + $0x10] sm:$0xff]
  %v73 = vld [vmem:[%s3 + $0x18] sm:$0xff]
  %v74 = vld [vmem:[%s3 + $0x20] sm:$0xff]
  %v75 = vld [vmem:[%s3 + $0x28] sm:$0xff]
  %v76 = vld [vmem:[%s3 + $0x30] sm:$0xff]
  %v77 = vld [vmem:[%s3 + $0x38] sm:$0xff]
  %v78 = vld [vmem:[%s4] sm:$0x3]
  %v80 = vlaneseq
  %v81 = vshrl.u32 %v80, 7
  %v82 = vsub.s32 0, %v81
  %v83 = vrot.slane %v78, %v82
  %v84 = vlaneseq
  %v85 = vshrl.u32 %v84, 7
  %v86 = vsub.s32 1, %v85
  %v87 = vrot.slane %v78, %v86
  %v98 = vunpack.c.l.b16 %v70
  %v99 = vunpack.c.h.b16 %v70
  %v100 = vunpack.c.l.b16 %v71
  %v101 = vunpack.c.h.b16 %v71
  %v102 = vunpack.c.l.b16 %v72
  %v103 = vunpack.c.h.b16 %v72
  %v104 = vunpack.c.l.b16 %v73
  %v105 = vunpack.c.h.b16 %v73
  %v106 = vunpack.c.l.b16 %v74
  %v107 = vunpack.c.h.b16 %v74
  %v108 = vunpack.c.l.b16 %v75
  %v109 = vunpack.c.h.b16 %v75
  %v110 = vunpack.c.l.b16 %v76
  %v111 = vunpack.c.h.b16 %v76
  %v112 = vunpack.c.l.b16 %v77
  %v113 = vunpack.c.h.b16 %v77
  %v114 = vpack.c.b16 %v100, %v98
  %v115 = vpack.c.b16 %v101, %v99
  %v116 = vpack.c.b16 %v104, %v102
  %v117 = vpack.c.b16 %v105, %v103
  %v118 = vpack.c.b16 %v108, %v106
  %v119 = vpack.c.b16 %v109, %v107
  %v120 = vpack.c.b16 %v112, %v110
  %v121 = vpack.c.b16 %v113, %v111
  %v131 = vsel %vm23, %v69, 0
  %133 = vmatprep.subr.bf16.mxu0 %v115
  %134 = vmatpush1.bf16.msra.mxu0 %v114
  %135 = vmatprep.subr.bf16.mxu0 %v117
  %136 = vmatpush1.bf16.msra.mxu0 %v116
  %137 = vmatprep.subr.bf16.mxu0 %v119
  %138 = vmatpush1.bf16.msra.mxu0 %v118
  %139 = vmatprep.subr.bf16.mxu0 %v121
  %140 = vmatpush1.bf16.msra.mxu0 %v120
  %141 = vmatprep.subr.bf16.mxu0 0
  %142 = vmatpush1.bf16.msra.mxu0 0
  %143 = vmatprep.subr.bf16.mxu0 0
  %144 = vmatpush1.bf16.msra.mxu0 0
  %145 = vmatprep.subr.bf16.mxu0 0
  %146 = vmatpush1.bf16.msra.mxu0 0
  %147 = vmatprep.subr.bf16.mxu0 0
  %148 = vmatpush1.bf16.msra.mxu0 0
  %149 = vmatprep.subr.bf16.mxu0 0
  %150 = vmatpush1.bf16.msra.mxu0 0
  %151 = vmatprep.subr.bf16.mxu0 0
  %152 = vmatpush1.bf16.msra.mxu0 0
  %153 = vmatprep.subr.bf16.mxu0 0
  %154 = vmatpush1.bf16.msra.mxu0 0
  %155 = vmatprep.subr.bf16.mxu0 0
  %156 = vmatpush1.bf16.msra.mxu0 0
  %157 = vmatprep.subr.bf16.mxu0 0
  %158 = vmatpush1.bf16.msra.mxu0 0
  %159 = vmatprep.subr.bf16.mxu0 0
  %160 = vmatpush1.bf16.msra.mxu0 0
  %161 = vmatprep.subr.bf16.mxu0 0
  %162 = vmatpush1.bf16.msra.mxu0 0
  %163 = vmatprep.subr.bf16.mxu0 0
  %164 = vmatpush1.bf16.msra.mxu0 0
  %165 = vmatprep.mubr.bf16.mxu0 0
  %166 = vmatmul.mubr.bf16.gmra.mrb[0].mxu0 %v131
  %v167 = vpop.f32.mrb[0].mxu0
  %v168 = vadd.f32 %v83, %v167
  %v169 = vpop.f32.mrb[0].mxu0
  %v170 = vadd.f32 %v87, %v169
  %v171 = vpop.f32.mrb[0].mxu0
  %v172 = vadd.f32 %v83, %v171
  %v173 = vpop.f32.mrb[0].mxu0
  %v174 = vadd.f32 %v87, %v173
  %175 = vdwg.mxu0
  %176 = vst [vmem:[%s5] sm:$0xff] %v168
  %177 = vst.msk [vmem:[%s5 + $0x8] sm:$0xff] %vm23, %v170
  %178 = vst [vmem:[%s5 + $0x10] sm:$0xff] %v172
  %179 = vst.msk [vmem:[%s5 + $0x18] sm:$0xff] %vm23, %v174
  // Predicated region
  $region22: #{vit_forward.13} parent=0 // pred_check
    _
  $region23: #{vit_forward.13} parent=0 // pred_check_branch
    %181 = sbr.rel (0) target = $region25
  $region24: #{vit_forward.13} parent=0 // pred_region
    _
  $region25: #{vit_forward.13} parent=0 // pred_fallthru
    _
  // Predicated region
  $region26: #{vit_forward.13} parent=0 // pred_check
    _
  $region27: #{vit_forward.13} parent=0 // pred_check_branch
    %183 = sbr.rel (0) target = $region29
  $region28: #{vit_forward.13} parent=0 // pred_region
    _
  $region29: #{vit_forward.13} parent=0 // pred_fallthru
    _

// kernel: vit_forward.12
$region0: #{vit_forward.12}
  #allocation0 [shape = 'u32[]', space=smem, size = 0x4, offset = 0x4, fixed_abs, tag = 'smem constant byte address 0x4 - core index']
  #allocation1 [shape = 'u32[144,128]{1,0:T(1,128)}', space=vmem, size = 0x12000, scoped, tag = 'internal scratch']
  %s0 = inlined_call_operand.vmem [shape: f32[16,384], index: 0, kind: input, shape index: {}]
  %s1 = inlined_call_operand.vmem [shape: bf16[384,64], index: 1, kind: input, shape index: {}]
  %s2 = inlined_call_operand.vmem [shape: f32[1,64], index: 2, kind: input, shape index: {}]
  %s3 = inlined_call_operand.vmem [shape: f32[16,64], index: 3, kind: output, shape index: {}]
  %s4 = sld [smem:[#allocation0]]
  $region22: #{vit_forward.12} parent=0
    _
  %s6 = ssub.s32 1, %s4
  %s7 = scalar_select 0, %s6, %s4
  // Predicated region
  $region2: #{vit_forward.12} parent=0 // pred_check
    _
  $region3: #{vit_forward.12} parent=0 // pred_check_branch
    %9 = sbr.rel (0) target = $region5
  $region4: #{vit_forward.12} parent=0 // pred_region
    _
  $region5: #{vit_forward.12} parent=0 // pred_fallthru
    _
  // Predicated region
  $region6: #{vit_forward.12} parent=0 // pred_check
    _
  $region7: #{vit_forward.12} parent=0 // pred_check_branch
    %11 = sbr.rel (0) target = $region9
  $region8: #{vit_forward.12} parent=0 // pred_region
    _
  $region9: #{vit_forward.12} parent=0 // pred_fallthru
    _
  // Predicated region
  $region10: #{vit_forward.12} parent=0 // pred_check
    _
  $region11: #{vit_forward.12} parent=0 // pred_check_branch
    %13 = sbr.rel (0) target = $region13
  $region12: #{vit_forward.12} parent=0 // pred_region
    _
  $region13: #{vit_forward.12} parent=0 // pred_fallthru
    _
  %v15 = vld [vmem:[%s0] sm:$0xff]
  %v16 = vld [vmem:[%s0 + $0x8] sm:$0xff]
  %v17 = vld [vmem:[%s0 + $0x10] sm:$0xff]
  %v18 = vld [vmem:[%s0 + $0x18] sm:$0xff]
  %v19 = vld [vmem:[%s0 + $0x20] sm:$0xff]
  %v20 = vld [vmem:[%s0 + $0x28] sm:$0xff]
  %v21 = vpack.c.bf16 %v18, %v15
  %v22 = vpack.c.bf16 %v19, %v16
  %v23 = vpack.c.bf16 %v20, %v17
  %v24 = vld [vmem:[%s1] sm:$0xf]
  %v25 = vld [vmem:[%s1 + $0x4] sm:$0xf]
  %v26 = vld [vmem:[%s1 + $0x8] sm:$0xf]
  %v27 = vld [vmem:[%s1 + $0xc] sm:$0xf]
  %v28 = vld [vmem:[%s1 + $0x10] sm:$0xf]
  %v29 = vld [vmem:[%s1 + $0x14] sm:$0xf]
  %v30 = vld [vmem:[%s1 + $0x18] sm:$0xf]
  %v31 = vld [vmem:[%s1 + $0x1c] sm:$0xf]
  %v32 = vld [vmem:[%s1 + $0x20] sm:$0xf]
  %v33 = vld [vmem:[%s1 + $0x24] sm:$0xf]
  %v34 = vld [vmem:[%s1 + $0x28] sm:$0xf]
  %v35 = vld [vmem:[%s1 + $0x2c] sm:$0xf]
  %v36 = vld [vmem:[%s1 + $0x30] sm:$0xf]
  %v37 = vld [vmem:[%s1 + $0x34] sm:$0xf]
  %v38 = vld [vmem:[%s1 + $0x38] sm:$0xf]
  %v39 = vld [vmem:[%s1 + $0x3c] sm:$0xf]
  %v40 = vld [vmem:[%s1 + $0x40] sm:$0xf]
  %v41 = vld [vmem:[%s1 + $0x44] sm:$0xf]
  %v42 = vld [vmem:[%s1 + $0x48] sm:$0xf]
  %v43 = vld [vmem:[%s1 + $0x4c] sm:$0xf]
  %v44 = vld [vmem:[%s1 + $0x50] sm:$0xf]
  %v45 = vld [vmem:[%s1 + $0x54] sm:$0xf]
  %v46 = vld [vmem:[%s1 + $0x58] sm:$0xf]
  %v47 = vld [vmem:[%s1 + $0x5c] sm:$0xf]
  %v48 = vld [vmem:[%s1 + $0x60] sm:$0xf]
  %v49 = vld [vmem:[%s1 + $0x64] sm:$0xf]
  %v50 = vld [vmem:[%s1 + $0x68] sm:$0xf]
  %v51 = vld [vmem:[%s1 + $0x6c] sm:$0xf]
  %v52 = vld [vmem:[%s1 + $0x70] sm:$0xf]
  %v53 = vld [vmem:[%s1 + $0x74] sm:$0xf]
  %v54 = vld [vmem:[%s1 + $0x78] sm:$0xf]
  %v55 = vld [vmem:[%s1 + $0x7c] sm:$0xf]
  %v56 = vld [vmem:[%s1 + $0x80] sm:$0xf]
  %v57 = vld [vmem:[%s1 + $0x84] sm:$0xf]
  %v58 = vld [vmem:[%s1 + $0x88] sm:$0xf]
  %v59 = vld [vmem:[%s1 + $0x8c] sm:$0xf]
  %v60 = vld [vmem:[%s1 + $0x90] sm:$0xf]
  %v61 = vld [vmem:[%s1 + $0x94] sm:$0xf]
  %v62 = vld [vmem:[%s1 + $0x98] sm:$0xf]
  %v63 = vld [vmem:[%s1 + $0x9c] sm:$0xf]
  %v64 = vld [vmem:[%s1 + $0xa0] sm:$0xf]
  %v65 = vld [vmem:[%s1 + $0xa4] sm:$0xf]
  %v66 = vld [vmem:[%s1 + $0xa8] sm:$0xf]
  %v67 = vld [vmem:[%s1 + $0xac] sm:$0xf]
  %v68 = vld [vmem:[%s1 + $0xb0] sm:$0xf]
  %v69 = vld [vmem:[%s1 + $0xb4] sm:$0xf]
  %v70 = vld [vmem:[%s1 + $0xb8] sm:$0xf]
  %v71 = vld [vmem:[%s1 + $0xbc] sm:$0xf]
  %v72 = vld [vmem:[%s2] sm:$0x1]
  %v74 = vlaneseq
  %v75 = vshrl.u32 %v74, 7
  %v76 = vsub.s32 0, %v75
  %v77 = vrot.slane %v72, %v76
  %v127 = vunpack.c.l.b16 %v24
  %v128 = vunpack.c.l.b16 %v25
  %v129 = vunpack.c.l.b16 %v26
  %v130 = vunpack.c.l.b16 %v27
  %v131 = vunpack.c.l.b16 %v28
  %v132 = vunpack.c.l.b16 %v29
  %v133 = vunpack.c.l.b16 %v30
  %v134 = vunpack.c.l.b16 %v31
  %v135 = vunpack.c.l.b16 %v32
  %v136 = vunpack.c.l.b16 %v33
  %v137 = vunpack.c.l.b16 %v34
  %v138 = vunpack.c.l.b16 %v35
  %v139 = vunpack.c.l.b16 %v36
  %v140 = vunpack.c.l.b16 %v37
  %v141 = vunpack.c.l.b16 %v38
  %v142 = vunpack.c.l.b16 %v39
  %v143 = vunpack.c.l.b16 %v40
  %v144 = vunpack.c.l.b16 %v41
  %v145 = vunpack.c.l.b16 %v42
  %v146 = vunpack.c.l.b16 %v43
  %v147 = vunpack.c.l.b16 %v44
  %v148 = vunpack.c.l.b16 %v45
  %v149 = vunpack.c.l.b16 %v46
  %v150 = vunpack.c.l.b16 %v47
  %v151 = vunpack.c.l.b16 %v48
  %v152 = vunpack.c.l.b16 %v49
  %v153 = vunpack.c.l.b16 %v50
  %v154 = vunpack.c.l.b16 %v51
  %v155 = vunpack.c.l.b16 %v52
  %v156 = vunpack.c.l.b16 %v53
  %v157 = vunpack.c.l.b16 %v54
  %v158 = vunpack.c.l.b16 %v55
  %v159 = vunpack.c.l.b16 %v56
  %v160 = vunpack.c.l.b16 %v57
  %v161 = vunpack.c.l.b16 %v58
  %v162 = vunpack.c.l.b16 %v59
  %v163 = vunpack.c.l.b16 %v60
  %v164 = vunpack.c.l.b16 %v61
  %v165 = vunpack.c.l.b16 %v62
  %v166 = vunpack.c.l.b16 %v63
  %v167 = vunpack.c.l.b16 %v64
  %v168 = vunpack.c.l.b16 %v65
  %v169 = vunpack.c.l.b16 %v66
  %v170 = vunpack.c.l.b16 %v67
  %v171 = vunpack.c.l.b16 %v68
  %v172 = vunpack.c.l.b16 %v69
  %v173 = vunpack.c.l.b16 %v70
  %v174 = vunpack.c.l.b16 %v71
  %v175 = vpack.c.b16 %v128, %v127
  %v176 = vpack.c.b16 %v130, %v129
  %v177 = vpack.c.b16 %v132, %v131
  %v178 = vpack.c.b16 %v134, %v133
  %v179 = vpack.c.b16 %v136, %v135
  %v180 = vpack.c.b16 %v138, %v137
  %v181 = vpack.c.b16 %v140, %v139
  %v182 = vpack.c.b16 %v142, %v141
  %v183 = vpack.c.b16 %v144, %v143
  %v184 = vpack.c.b16 %v146, %v145
  %v185 = vpack.c.b16 %v148, %v147
  %v186 = vpack.c.b16 %v150, %v149
  %v187 = vpack.c.b16 %v152, %v151
  %v188 = vpack.c.b16 %v154, %v153
  %v189 = vpack.c.b16 %v156, %v155
  %v190 = vpack.c.b16 %v158, %v157
  %v191 = vpack.c.b16 %v160, %v159
  %v192 = vpack.c.b16 %v162, %v161
  %v193 = vpack.c.b16 %v164, %v163
  %v194 = vpack.c.b16 %v166, %v165
  %v195 = vpack.c.b16 %v168, %v167
  %v196 = vpack.c.b16 %v170, %v169
  %v197 = vpack.c.b16 %v172, %v171
  %v198 = vpack.c.b16 %v174, %v173
  %223 = vmatprep.subr.bf16.mxu0 0
  %224 = vmatpush1.bf16.msra.mxu0 %v175
  %225 = vmatprep.subr.bf16.mxu0 0
  %226 = vmatpush1.bf16.msra.mxu0 %v176
  %227 = vmatprep.subr.bf16.mxu0 0
  %228 = vmatpush1.bf16.msra.mxu0 %v177
  %229 = vmatprep.subr.bf16.mxu0 0
  %230 = vmatpush1.bf16.msra.mxu0 %v178
  %231 = vmatprep.subr.bf16.mxu0 0
  %232 = vmatpush1.bf16.msra.mxu0 %v179
  %233 = vmatprep.subr.bf16.mxu0 0
  %234 = vmatpush1.bf16.msra.mxu0 %v180
  %235 = vmatprep.subr.bf16.mxu0 0
  %236 = vmatpush1.bf16.msra.mxu0 %v181
  %237 = vmatprep.subr.bf16.mxu0 0
  %238 = vmatpush1.bf16.msra.mxu0 %v182
  %239 = vmatprep.subr.bf16.mxu0 0
  %240 = vmatpush1.bf16.msra.mxu0 %v183
  %241 = vmatprep.subr.bf16.mxu0 0
  %242 = vmatpush1.bf16.msra.mxu0 %v184
  %243 = vmatprep.subr.bf16.mxu0 0
  %244 = vmatpush1.bf16.msra.mxu0 %v185
  %245 = vmatprep.subr.bf16.mxu0 0
  %246 = vmatpush1.bf16.msra.mxu0 %v186
  %247 = vmatprep.subr.bf16.mxu0 0
  %248 = vmatpush1.bf16.msra.mxu0 %v187
  %249 = vmatprep.subr.bf16.mxu0 0
  %250 = vmatpush1.bf16.msra.mxu0 %v188
  %251 = vmatprep.subr.bf16.mxu0 0
  %252 = vmatpush1.bf16.msra.mxu0 %v189
  %253 = vmatprep.subr.bf16.mxu0 0
  %254 = vmatpush1.bf16.msra.mxu0 %v190
  %255 = vmatprep.mubr.bf16.mxu0 %v22
  %256 = vmatmul.mubr.bf16.gmra.mrb[0].mxu0 %v21
  %v257 = vpop.f32.mrb[0].mxu0
  %v258 = vadd.f32 %v77, %v257
  %v259 = vpop.f32.mrb[0].mxu0
  %v260 = vpop.f32.mrb[0].mxu0
  %v261 = vadd.f32 %v77, %v260
  %v262 = vpop.f32.mrb[0].mxu0
  %263 = vdwg.mxu0
  %264 = vmatprep.subr.bf16.mxu0 0
  %265 = vmatpush1.bf16.msra.mxu0 %v191
  %266 = vmatprep.subr.bf16.mxu0 0
  %267 = vmatpush1.bf16.msra.mxu0 %v192
  %268 = vmatprep.subr.bf16.mxu0 0
  %269 = vmatpush1.bf16.msra.mxu0 %v193
  %270 = vmatprep.subr.bf16.mxu0 0
  %271 = vmatpush1.bf16.msra.mxu0 %v194
  %272 = vmatprep.subr.bf16.mxu0 0
  %273 = vmatpush1.bf16.msra.mxu0 %v195
  %274 = vmatprep.subr.bf16.mxu0 0
  %275 = vmatpush1.bf16.msra.mxu0 %v196
  %276 = vmatprep.subr.bf16.mxu0 0
  %277 = vmatpush1.bf16.msra.mxu0 %v197
  %278 = vmatprep.subr.bf16.mxu0 0
  %279 = vmatpush1.bf16.msra.mxu0 %v198
  %280 = vmatprep.subr.bf16.mxu0 0
  %281 = vmatpush1.bf16.msra.mxu0 0
  %282 = vmatprep.subr.bf16.mxu0 0
  %283 = vmatpush1.bf16.msra.mxu0 0
  %284 = vmatprep.subr.bf16.mxu0 0
  %285 = vmatpush1.bf16.msra.mxu0 0
  %286 = vmatprep.subr.bf16.mxu0 0
  %287 = vmatpush1.bf16.msra.mxu0 0
  %288 = vmatprep.subr.bf16.mxu0 0
  %289 = vmatpush1.bf16.msra.mxu0 0
  %290 = vmatprep.subr.bf16.mxu0 0
  %291 = vmatpush1.bf16.msra.mxu0 0
  %292 = vmatprep.subr.bf16.mxu0 0
  %293 = vmatpush1.bf16.msra.mxu0 0
  %294 = vmatprep.subr.bf16.mxu0 0
  %295 = vmatpush1.bf16.msra.mxu0 0
  %296 = vmatprep.mubr.bf16.mxu0 0
  %297 = vmatmul.mubr.bf16.gmra.mrb[0].mxu0 %v23
  %v298 = vpop.f32.mrb[0].mxu0
  %v299 = vadd.f32 %v258, %v298
  %v300 = vpop.f32.mrb[0].mxu0
  %v301 = vpop.f32.mrb[0].mxu0
  %v302 = vadd.f32 %v261, %v301
  %v303 = vpop.f32.mrb[0].mxu0
  %304 = vdwg.mxu0
  %vm305 = vcmask 523264
  %306 = vst.msk [vmem:[%s3] sm:$0xff] %vm305, %v299
  %307 = vst.msk [vmem:[%s3 + $0x8] sm:$0xff] %vm305, %v302
  // Predicated region
  $region14: #{vit_forward.12} parent=0 // pred_check
    _
  $region15: #{vit_forward.12} parent=0 // pred_check_branch
    %309 = sbr.rel (0) target = $region17
  $region16: #{vit_forward.12} parent=0 // pred_region
    _
  $region17: #{vit_forward.12} parent=0 // pred_fallthru
    _
  // Predicated region
  $region18: #{vit_forward.12} parent=0 // pred_check
    _
  $region19: #{vit_forward.12} parent=0 // pred_check_branch
    %311 = sbr.rel (0) target = $region21
  $region20: #{vit_forward.12} parent=0 // pred_region
    _
  $region21: #{vit_forward.12} parent=0 // pred_fallthru
    _

// kernel: vit_forward.14
$region0: #{vit_forward.14}
  #allocation0 [shape = 'u32[]', space=smem, size = 0x4, offset = 0x4, fixed_abs, tag = 'smem constant byte address 0x4 - core index']
  #allocation1 [shape = 'u32[144,128]{1,0:T(1,128)}', space=vmem, size = 0x12000, scoped, tag = 'internal scratch']
  #allocation2 [shape = 'f32[2,8,1]{2,1,0:T(8,128)}', space=vmem, size = 0x2000, scoped, tag = 'scratch operand']
  #allocation3 [shape = 'f32[2,8,1]{2,1,0:T(8,128)}', space=vmem, size = 0x2000, scoped, tag = 'scratch operand']
  #allocation4 [shape = 'f32[2,8,32]{2,1,0:T(8,128)}', space=vmem, size = 0x2000, scoped, tag = 'scratch operand']
  %s0 = inlined_call_operand.vmem [shape: f32[2,8,3,2,32], index: 0, kind: input, shape index: {}, may-alias: {0,1,2}]
  %s1 = inlined_call_operand.vmem [shape: f32[2,8,3,2,32], index: 1, kind: input, shape index: {}, may-alias: {0,1,2}]
  %s2 = inlined_call_operand.vmem [shape: f32[2,8,3,2,32], index: 2, kind: input, shape index: {}, may-alias: {0,1,2}]
  %s3 = inlined_call_operand.vmem [shape: f32[2,8,2,32], index: 3, kind: output, shape index: {}]
  %s4 = sld [smem:[#allocation0]]
  $region176: #{vit_forward.14} parent=0
    _
  %s6 = ssub.s32 1, %s4
  %s7 = scalar_select 0, %s6, %s4
  $region1: #{vit_forward.14} parent=0
    #allocation5 [shape = 'u8[16384]{0}', space=vmem, size = 0x4000, scoped, tag = 'input window, operand 0']
    #allocation6 [shape = 'u8[16384]{0}', space=vmem, size = 0x4000, scoped, tag = 'input window, operand 1']
    #allocation7 [shape = 'u8[16384]{0}', space=vmem, size = 0x4000, scoped, tag = 'input window, operand 2']
    loop: start=0, step=1, limit=4
    $region2: #{vit_forward.14} parent=1 // loop_pre_header
      _
    $region3: #{vit_forward.14} parent=1 // loop_header
      %s9 = sphi 0, %s13
      %p10 = scmp.ge.s32.totalorder %s9, 4
      %s16 = sphi 0, %s35
      %s17 = sphi 0, %s31
      %s18 = sphi 0, %s27
      %s19 = sphi 0, %s16
      %s20 = sphi 0, %s17
      %s21 = sphi 0, %s18
      %s22 = sphi 0, %s19
      %s23 = sphi 0, %s20
      %s24 = sphi 0, %s21
      %s40 = sphi 0, %s42
      %s43 = sphi 0, %s40
      %s44 = sphi 0, %s43
      %s60 = sphi 0, %s44
      %s68 = sphi 0, %s70
      %s71 = sphi 0, %s68
      %s72 = sphi 0, %s71
      %s88 = sphi 0, %s72
      %s96 = sphi 0, %s98
      %s99 = sphi 0, %s96
      %s100 = sphi 0, %s99
      %s116 = sphi 0, %s100
      %s124 = sphi 0, %s126
      %s127 = sphi 0, %s124
      %s128 = sphi 0, %s127
      %s144 = sphi 0, %s128
    $region4: #{vit_forward.14} parent=1 // loop_header_branch
      %12 = sbr.rel (%p10) target = $region8
    $region5: #{vit_forward.14} parent=1 // loop_body
      %s14 = ssub.s32 %s9, 1
      %s15 = ssub.s32 %s9, 2
      %s25 = sadd.s32 1, %s18
      %p26 = scmp.ge.s32.totalorder %s25, 1
      %s27 = scalar_select %p26, 0, %s25
      %s28 = sadd.s32 1, %s17
      %s29 = scalar_select %p26, %s28, %s17
      %p30 = scmp.ge.s32.totalorder %s29, 1
      %s31 = scalar_select %p30, 0, %s29
      %s32 = sadd.s32 1, %s16
      %s33 = scalar_select %p30, %s32, %s16
      %p34 = scmp.ge.s32.totalorder %s33, 2
      %s35 = scalar_select %p34, 0, %s33
      %s36 = ssub.s32 %s16, %s35
      %s37 = ssub.s32 %s17, %s31
      %s38 = sor.u32 %s36, %s37
      %p39 = scmp.eq.s32.totalorder %s38, 0
      %s41 = sadd.s32 %s40, 1
      %s42 = scalar_select %p39, %s40, %s41
      %p45 = pneg %p39
      %p46 = scmp.eq.s32.totalorder %s9, 1
      %p47 = por %p45, %p46
      %p48 = scmp.ne.s32.totalorder %s40, %s43
      %p49 = scmp.eq.s32.totalorder %s9, 0
      %p50 = por %p48, %p49
      %p51 = scmp.ne.s32.totalorder %s40, %s43
      %p52 = scmp.eq.s32.totalorder %s14, 1
      %p53 = por %p51, %p52
      %p54 = scmp.ne.s32.totalorder %s43, %s44
      %p55 = scmp.eq.s32.totalorder %s14, 0
      %p56 = por %p54, %p55
      %p57 = scmp.ne.s32.totalorder %s43, %s44
      %p58 = scmp.eq.s32.totalorder %s15, 1
      %p59 = por %p57, %p58
      %p61 = scmp.ne.s32.totalorder %s44, %s60
      %p62 = scmp.eq.s32.totalorder %s15, 0
      %p63 = por %p61, %p62
      %s64 = ssub.s32 %s16, %s35
      %s65 = ssub.s32 %s18, %s27
      %s66 = sor.u32 %s64, %s65
      %p67 = scmp.eq.s32.totalorder %s66, 0
      %s69 = sadd.s32 %s68, 1
      %s70 = scalar_select %p67, %s68, %s69
      %p73 = pneg %p67
      %p74 = scmp.eq.s32.totalorder %s9, 1
      %p75 = por %p73, %p74
      %p76 = scmp.ne.s32.totalorder %s68, %s71
      %p77 = scmp.eq.s32.totalorder %s9, 0
      %p78 = por %p76, %p77
      %p79 = scmp.ne.s32.totalorder %s68, %s71
      %p80 = scmp.eq.s32.totalorder %s14, 1
      %p81 = por %p79, %p80
      %p82 = scmp.ne.s32.totalorder %s71, %s72
      %p83 = scmp.eq.s32.totalorder %s14, 0
      %p84 = por %p82, %p83
      %p85 = scmp.ne.s32.totalorder %s71, %s72
      %p86 = scmp.eq.s32.totalorder %s15, 1
      %p87 = por %p85, %p86
      %p89 = scmp.ne.s32.totalorder %s72, %s88
      %p90 = scmp.eq.s32.totalorder %s15, 0
      %p91 = por %p89, %p90
      %s92 = ssub.s32 %s16, %s35
      %s93 = ssub.s32 %s18, %s27
      %s94 = sor.u32 %s92, %s93
      %p95 = scmp.eq.s32.totalorder %s94, 0
      %s97 = sadd.s32 %s96, 1
      %s98 = scalar_select %p95, %s96, %s97
      %p101 = pneg %p95
      %p102 = scmp.eq.s32.totalorder %s9, 1
      %p103 = por %p101, %p102
      %p104 = scmp.ne.s32.totalorder %s96, %s99
      %p105 = scmp.eq.s32.totalorder %s9, 0
      %p106 = por %p104, %p105
      %p107 = scmp.ne.s32.totalorder %s96, %s99
      %p108 = scmp.eq.s32.totalorder %s14, 1
      %p109 = por %p107, %p108
      %p110 = scmp.ne.s32.totalorder %s99, %s100
      %p111 = scmp.eq.s32.totalorder %s14, 0
      %p112 = por %p110, %p111
      %p113 = scmp.ne.s32.totalorder %s99, %s100
      %p114 = scmp.eq.s32.totalorder %s15, 1
      %p115 = por %p113, %p114
      %p117 = scmp.ne.s32.totalorder %s100, %s116
      %p118 = scmp.eq.s32.totalorder %s15, 0
      %p119 = por %p117, %p118
      %s120 = ssub.s32 %s16, %s35
      %s121 = ssub.s32 %s17, %s31
      %s122 = sor.u32 %s120, %s121
      %p123 = scmp.eq.s32.totalorder %s122, 0
      %s125 = sadd.s32 %s124, 1
      %s126 = scalar_select %p123, %s124, %s125
      %p129 = pneg %p123
      %p130 = scmp.eq.s32.totalorder %s9, 1
      %p131 = por %p129, %p130
      %p132 = scmp.ne.s32.totalorder %s124, %s127
      %p133 = scmp.eq.s32.totalorder %s9, 0
      %p134 = por %p132, %p133
      %p135 = scmp.ne.s32.totalorder %s124, %s127
      %p136 = scmp.eq.s32.totalorder %s14, 1
      %p137 = por %p135, %p136
      %p138 = scmp.ne.s32.totalorder %s127, %s128
      %p139 = scmp.eq.s32.totalorder %s14, 0
      %p140 = por %p138, %p139
      %p141 = scmp.ne.s32.totalorder %s127, %s128
      %p142 = scmp.eq.s32.totalorder %s15, 1
      %p143 = por %p141, %p142
      %p145 = scmp.ne.s32.totalorder %s128, %s144
      %p146 = scmp.eq.s32.totalorder %s15, 0
      %p147 = por %p145, %p146
      %p148 = scmp.le.s32.totalorder 1, %s9
      %p149 = scmp.lt.s32.totalorder %s9, 3
      %p150 = pnand %p148, %p149
      %p151 = pneg %p150
      // Predicated region
      $region9: #{vit_forward.14} parent=5 // pred_check
        _
      $region10: #{vit_forward.14} parent=5 // pred_check_branch
        %153 = sbr.rel (%p150) target = $region12
      $region11: #{vit_forward.14} parent=5 // pred_region
        %s154 = ssub.s32 %s9, 1
      $region12: #{vit_forward.14} parent=5 // pred_fallthru
        _
      %p155 = scmp.lt.s32.totalorder %s9, 2
      // Predicated region
      $region13: #{vit_forward.14} parent=5 // pred_check
        %p156 = pneg %p155
      $region14: #{vit_forward.14} parent=5 // pred_check_branch
        %158 = sbr.rel (%p156) target = $region16
      $region15: #{vit_forward.14} parent=5 // pred_region
        // Predicated region
        $region17: #{vit_forward.14} parent=15 // pred_check
          %p159 = pneg %p50
        $region18: #{vit_forward.14} parent=15 // pred_check_branch
          %161 = sbr.rel (%p159) target = $region20
        $region19: #{vit_forward.14} parent=15 // pred_region
          %s162 = sand.u32 %s40, 1
          %s163 = sand.u32 %s40, 1
          %s164 = smul.addr %s163, 16
          %s165 = scalar_lea.vmem [#allocation5], %s164
          %s166 = smul.u32 8, %s17
          %s167 = smul.addr %s166, 3
          %s168 = smul.addr %s16, 24
          %s169 = sadd.s32 %s167, %s168
          %s170 = smul.addr %s169, 2
          %s171 = scalar_lea.vmem %s0, %s170
          // Predicated region
          $region21: #{vit_forward.14} parent=19 // pred_check
            _
          $region22: #{vit_forward.14} parent=19 // pred_check_branch
            %173 = sbr.rel (0) target = $region24
          $region23: #{vit_forward.14} parent=19 // pred_region
            // Predicated region
            $region25: #{vit_forward.14} parent=23 // pred_check
              _
            $region26: #{vit_forward.14} parent=23 // pred_check_branch
              %175 = sbr.rel target = $region28
            $region27: #{vit_forward.14} parent=23 // pred_region
              // Predicated region
              $region40: #{vit_forward.14} parent=27 // pred_check
                _
              $region41: #{vit_forward.14} parent=27 // pred_check_branch
                %204 = sbr.rel (0) target = $region43
              $region42: #{vit_forward.14} parent=27 // pred_region
                loop: start=0, step=1, limit=1
                $region44: #{vit_forward.14} parent=42 // loop_pre_header
                  _
                $region45: #{vit_forward.14} parent=42 // loop_header
                  %s206 = sphi 0, %s210
                  %p207 = scmp.ge.s32.totalorder %s206, 1
                  %s211 = sphi %s171, %s171
                  %s212 = sphi %s165, %s165
                $region46: #{vit_forward.14} parent=42 // loop_header_branch
                  %209 = sbr.rel (%p207) target = $region50
                $region47: #{vit_forward.14} parent=42 // loop_body
                  _
                $region48: #{vit_forward.14} parent=42 // loop_footer
                  %s210 = sadd.s32 1, %s206
                $region49: #{vit_forward.14} parent=42 // loop_footer_branch
                  %205 = sbr.rel target = $region45
                $region50: #{vit_forward.14} parent=42 // loop_exit
                  _
                loop: start=0, step=1, limit=1
                $region51: #{vit_forward.14} parent=42 // loop_pre_header
                  _
                $region52: #{vit_forward.14} parent=42 // loop_header
                  %s215 = sphi 0, %s219
                  %p216 = scmp.ge.s32.totalorder %s215, 1
                  %s220 = sphi %s171, %s171
                  %s221 = sphi %s165, %s165
                $region53: #{vit_forward.14} parent=42 // loop_header_branch
                  %218 = sbr.rel (%p216) target = $region57
                $region54: #{vit_forward.14} parent=42 // loop_body
                  %v222 = vld [vmem:[%s220] sm:$0x3]
                  %223 = vst [vmem:[%s221] sm:$0x3] %v222
                  %v224 = vld [vmem:[%s220 + $0x6] sm:$0x3]
                  %225 = vst [vmem:[%s221 + $0x2] sm:$0x3] %v224
                  %v226 = vld [vmem:[%s220 + $0xc] sm:$0x3]
                  %227 = vst [vmem:[%s221 + $0x4] sm:$0x3] %v226
                  %v228 = vld [vmem:[%s220 + $0x12] sm:$0x3]
                  %229 = vst [vmem:[%s221 + $0x6] sm:$0x3] %v228
                  %v230 = vld [vmem:[%s220 + $0x18] sm:$0x3]
                  %231 = vst [vmem:[%s221 + $0x8] sm:$0x3] %v230
                  %v232 = vld [vmem:[%s220 + $0x1e] sm:$0x3]
                  %233 = vst [vmem:[%s221 + $0xa] sm:$0x3] %v232
                  %v234 = vld [vmem:[%s220 + $0x24] sm:$0x3]
                  %235 = vst [vmem:[%s221 + $0xc] sm:$0x3] %v234
                  %v236 = vld [vmem:[%s220 + $0x2a] sm:$0x3]
                  %237 = vst [vmem:[%s221 + $0xe] sm:$0x3] %v236
                $region55: #{vit_forward.14} parent=42 // loop_footer
                  %s219 = sadd.s32 1, %s215
                $region56: #{vit_forward.14} parent=42 // loop_footer_branch
                  %214 = sbr.rel target = $region52
                $region57: #{vit_forward.14} parent=42 // loop_exit
                  _
              $region43: #{vit_forward.14} parent=27 // pred_fallthru
                _
            $region28: #{vit_forward.14} parent=23 // pred_fallthru
              _
            // Predicated region
            $region29: #{vit_forward.14} parent=23 // pred_check
              _
            $region30: #{vit_forward.14} parent=23 // pred_check_branch
              %177 = sbr.rel (0) target = $region32
            $region31: #{vit_forward.14} parent=23 // pred_region
              loop: start=0, step=1, limit=1
              $region33: #{vit_forward.14} parent=31 // loop_pre_header
                _
              $region34: #{vit_forward.14} parent=31 // loop_header
                %s180 = sphi 0, %s184
                %p181 = scmp.ge.s32.totalorder %s180, 1
                %s185 = sphi %s171, %s171
                %s186 = sphi %s165, %s165
              $region35: #{vit_forward.14} parent=31 // loop_header_branch
                %183 = sbr.rel (%p181) target = $region39
              $region36: #{vit_forward.14} parent=31 // loop_body
                %v187 = vld [vmem:[%s185] sm:$0x3]
                %188 = vst [vmem:[%s186] sm:$0x3] %v187
                %v189 = vld [vmem:[%s185 + $0x6] sm:$0x3]
                %190 = vst [vmem:[%s186 + $0x2] sm:$0x3] %v189
                %v191 = vld [vmem:[%s185 + $0xc] sm:$0x3]
                %192 = vst [vmem:[%s186 + $0x4] sm:$0x3] %v191
                %v193 = vld [vmem:[%s185 + $0x12] sm:$0x3]
                %194 = vst [vmem:[%s186 + $0x6] sm:$0x3] %v193
                %v195 = vld [vmem:[%s185 + $0x18] sm:$0x3]
                %196 = vst [vmem:[%s186 + $0x8] sm:$0x3] %v195
                %v197 = vld [vmem:[%s185 + $0x1e] sm:$0x3]
                %198 = vst [vmem:[%s186 + $0xa] sm:$0x3] %v197
                %v199 = vld [vmem:[%s185 + $0x24] sm:$0x3]
                %200 = vst [vmem:[%s186 + $0xc] sm:$0x3] %v199
                %v201 = vld [vmem:[%s185 + $0x2a] sm:$0x3]
                %202 = vst [vmem:[%s186 + $0xe] sm:$0x3] %v201
              $region37: #{vit_forward.14} parent=31 // loop_footer
                %s184 = sadd.s32 1, %s180
              $region38: #{vit_forward.14} parent=31 // loop_footer_branch
                %179 = sbr.rel target = $region34
              $region39: #{vit_forward.14} parent=31 // loop_exit
                _
            $region32: #{vit_forward.14} parent=23 // pred_fallthru
              _
          $region24: #{vit_forward.14} parent=19 // pred_fallthru
            _
          %238 = vnop
        $region20: #{vit_forward.14} parent=15 // pred_fallthru
          _
        // Predicated region
        $region58: #{vit_forward.14} parent=15 // pred_check
          %p239 = pneg %p78
        $region59: #{vit_forward.14} parent=15 // pred_check_branch
          %241 = sbr.rel (%p239) target = $region61
        $region60: #{vit_forward.14} parent=15 // pred_region
          %s242 = sand.u32 %s68, 1
          %s243 = sand.u32 %s68, 1
          %s244 = smul.addr %s243, 16
          %s245 = scalar_lea.vmem [#allocation6], %s244
          %s246 = smul.u32 8, %s18
          %s247 = smul.addr %s246, 3
          %s248 = sadd.s32 1, %s247
          %s249 = smul.addr %s16, 24
          %s250 = sadd.s32 %s248, %s249
          %s251 = smul.addr %s250, 2
          %s252 = scalar_lea.vmem %s1, %s251
          // Predicated region
          $region62: #{vit_forward.14} parent=60 // pred_check
            _
          $region63: #{vit_forward.14} parent=60 // pred_check_branch
            %254 = sbr.rel (0) target = $region65
          $region64: #{vit_forward.14} parent=60 // pred_region
            // Predicated region
            $region66: #{vit_forward.14} parent=64 // pred_check
              _
            $region67: #{vit_forward.14} parent=64 // pred_check_branch
              %256 = sbr.rel target = $region69
            $region68: #{vit_forward.14} parent=64 // pred_region
              // Predicated region
              $region81: #{vit_forward.14} parent=68 // pred_check
                _
              $region82: #{vit_forward.14} parent=68 // pred_check_branch
                %285 = sbr.rel (0) target = $region84
              $region83: #{vit_forward.14} parent=68 // pred_region
                loop: start=0, step=1, limit=1
                $region85: #{vit_forward.14} parent=83 // loop_pre_header
                  _
                $region86: #{vit_forward.14} parent=83 // loop_header
                  %s287 = sphi 0, %s291
                  %p288 = scmp.ge.s32.totalorder %s287, 1
                  %s292 = sphi %s252, %s252
                  %s293 = sphi %s245, %s245
                $region87: #{vit_forward.14} parent=83 // loop_header_branch
                  %290 = sbr.rel (%p288) target = $region91
                $region88: #{vit_forward.14} parent=83 // loop_body
                  _
                $region89: #{vit_forward.14} parent=83 // loop_footer
                  %s291 = sadd.s32 1, %s287
                $region90: #{vit_forward.14} parent=83 // loop_footer_branch
                  %286 = sbr.rel target = $region86
                $region91: #{vit_forward.14} parent=83 // loop_exit
                  _
                loop: start=0, step=1, limit=1
                $region92: #{vit_forward.14} parent=83 // loop_pre_header
                  _
                $region93: #{vit_forward.14} parent=83 // loop_header
                  %s296 = sphi 0, %s300
                  %p297 = scmp.ge.s32.totalorder %s296, 1
                  %s301 = sphi %s252, %s252
                  %s302 = sphi %s245, %s245
                $region94: #{vit_forward.14} parent=83 // loop_header_branch
                  %299 = sbr.rel (%p297) target = $region98
                $region95: #{vit_forward.14} parent=83 // loop_body
                  %v303 = vld [vmem:[%s301] sm:$0x3]
                  %304 = vst [vmem:[%s302] sm:$0x3] %v303
                  %v305 = vld [vmem:[%s301 + $0x6] sm:$0x3]
                  %306 = vst [vmem:[%s302 + $0x2] sm:$0x3] %v305
                  %v307 = vld [vmem:[%s301 + $0xc] sm:$0x3]
                  %308 = vst [vmem:[%s302 + $0x4] sm:$0x3] %v307
                  %v309 = vld [vmem:[%s301 + $0x12] sm:$0x3]
                  %310 = vst [vmem:[%s302 + $0x6] sm:$0x3] %v309
                  %v311 = vld [vmem:[%s301 + $0x18] sm:$0x3]
                  %312 = vst [vmem:[%s302 + $0x8] sm:$0x3] %v311
                  %v313 = vld [vmem:[%s301 + $0x1e] sm:$0x3]
                  %314 = vst [vmem:[%s302 + $0xa] sm:$0x3] %v313
                  %v315 = vld [vmem:[%s301 + $0x24] sm:$0x3]
                  %316 = vst [vmem:[%s302 + $0xc] sm:$0x3] %v315
                  %v317 = vld [vmem:[%s301 + $0x2a] sm:$0x3]
                  %318 = vst [vmem:[%s302 + $0xe] sm:$0x3] %v317
                $region96: #{vit_forward.14} parent=83 // loop_footer
                  %s300 = sadd.s32 1, %s296
                $region97: #{vit_forward.14} parent=83 // loop_footer_branch
                  %295 = sbr.rel target = $region93
                $region98: #{vit_forward.14} parent=83 // loop_exit
                  _
              $region84: #{vit_forward.14} parent=68 // pred_fallthru
                _
            $region69: #{vit_forward.14} parent=64 // pred_fallthru
              _
            // Predicated region
            $region70: #{vit_forward.14} parent=64 // pred_check
              _
            $region71: #{vit_forward.14} parent=64 // pred_check_branch
              %258 = sbr.rel (0) target = $region73
            $region72: #{vit_forward.14} parent=64 // pred_region
              loop: start=0, step=1, limit=1
              $region74: #{vit_forward.14} parent=72 // loop_pre_header
                _
              $region75: #{vit_forward.14} parent=72 // loop_header
                %s261 = sphi 0, %s265
                %p262 = scmp.ge.s32.totalorder %s261, 1
                %s266 = sphi %s252, %s252
                %s267 = sphi %s245, %s245
              $region76: #{vit_forward.14} parent=72 // loop_header_branch
                %264 = sbr.rel (%p262) target = $region80
              $region77: #{vit_forward.14} parent=72 // loop_body
                %v268 = vld [vmem:[%s266] sm:$0x3]
                %269 = vst [vmem:[%s267] sm:$0x3] %v268
                %v270 = vld [vmem:[%s266 + $0x6] sm:$0x3]
                %271 = vst [vmem:[%s267 + $0x2] sm:$0x3] %v270
                %v272 = vld [vmem:[%s266 + $0xc] sm:$0x3]
                %273 = vst [vmem:[%s267 + $0x4] sm:$0x3] %v272
                %v274 = vld [vmem:[%s266 + $0x12] sm:$0x3]
                %275 = vst [vmem:[%s267 + $0x6] sm:$0x3] %v274
                %v276 = vld [vmem:[%s266 + $0x18] sm:$0x3]
                %277 = vst [vmem:[%s267 + $0x8] sm:$0x3] %v276
                %v278 = vld [vmem:[%s266 + $0x1e] sm:$0x3]
                %279 = vst [vmem:[%s267 + $0xa] sm:$0x3] %v278
                %v280 = vld [vmem:[%s266 + $0x24] sm:$0x3]
                %281 = vst [vmem:[%s267 + $0xc] sm:$0x3] %v280
                %v282 = vld [vmem:[%s266 + $0x2a] sm:$0x3]
                %283 = vst [vmem:[%s267 + $0xe] sm:$0x3] %v282
              $region78: #{vit_forward.14} parent=72 // loop_footer
                %s265 = sadd.s32 1, %s261
              $region79: #{vit_forward.14} parent=72 // loop_footer_branch
                %260 = sbr.rel target = $region75
              $region80: #{vit_forward.14} parent=72 // loop_exit
                _
            $region73: #{vit_forward.14} parent=64 // pred_fallthru
              _
          $region65: #{vit_forward.14} parent=60 // pred_fallthru
            _
          %319 = vnop
        $region61: #{vit_forward.14} parent=15 // pred_fallthru
          _
        // Predicated region
        $region99: #{vit_forward.14} parent=15 // pred_check
          %p320 = pneg %p106
        $region100: #{vit_forward.14} parent=15 // pred_check_branch
          %322 = sbr.rel (%p320) target = $region102
        $region101: #{vit_forward.14} parent=15 // pred_region
          %s323 = sand.u32 %s96, 1
          %s324 = sand.u32 %s96, 1
          %s325 = smul.addr %s324, 16
          %s326 = scalar_lea.vmem [#allocation7], %s325
          %s327 = smul.u32 8, %s18
          %s328 = smul.addr %s327, 3
          %s329 = sadd.s32 2, %s328
          %s330 = smul.addr %s16, 24
          %s331 = sadd.s32 %s329, %s330
          %s332 = smul.addr %s331, 2
          %s333 = scalar_lea.vmem %s2, %s332
          // Predicated region
          $region103: #{vit_forward.14} parent=101 // pred_check
            _
          $region104: #{vit_forward.14} parent=101 // pred_check_branch
            %335 = sbr.rel (0) target = $region106
          $region105: #{vit_forward.14} parent=101 // pred_region
            // Predicated region
            $region107: #{vit_forward.14} parent=105 // pred_check
              _
            $region108: #{vit_forward.14} parent=105 // pred_check_branch
              %337 = sbr.rel target = $region110
            $region109: #{vit_forward.14} parent=105 // pred_region
              // Predicated region
              $region122: #{vit_forward.14} parent=109 // pred_check
                _
              $region123: #{vit_forward.14} parent=109 // pred_check_branch
                %366 = sbr.rel (0) target = $region125
              $region124: #{vit_forward.14} parent=109 // pred_region
                loop: start=0, step=1, limit=1
                $region126: #{vit_forward.14} parent=124 // loop_pre_header
                  _
                $region127: #{vit_forward.14} parent=124 // loop_header
                  %s368 = sphi 0, %s372
                  %p369 = scmp.ge.s32.totalorder %s368, 1
                  %s373 = sphi %s333, %s333
                  %s374 = sphi %s326, %s326
                $region128: #{vit_forward.14} parent=124 // loop_header_branch
                  %371 = sbr.rel (%p369) target = $region132
                $region129: #{vit_forward.14} parent=124 // loop_body
                  _
                $region130: #{vit_forward.14} parent=124 // loop_footer
                  %s372 = sadd.s32 1, %s368
                $region131: #{vit_forward.14} parent=124 // loop_footer_branch
                  %367 = sbr.rel target = $region127
                $region132: #{vit_forward.14} parent=124 // loop_exit
                  _
                loop: start=0, step=1, limit=1
                $region133: #{vit_forward.14} parent=124 // loop_pre_header
                  _
                $region134: #{vit_forward.14} parent=124 // loop_header
                  %s377 = sphi 0, %s381
                  %p378 = scmp.ge.s32.totalorder %s377, 1
                  %s382 = sphi %s333, %s333
                  %s383 = sphi %s326, %s326
                $region135: #{vit_forward.14} parent=124 // loop_header_branch
                  %380 = sbr.rel (%p378) target = $region139
                $region136: #{vit_forward.14} parent=124 // loop_body
                  %v384 = vld [vmem:[%s382] sm:$0x3]
                  %385 = vst [vmem:[%s383] sm:$0x3] %v384
                  %v386 = vld [vmem:[%s382 + $0x6] sm:$0x3]
                  %387 = vst [vmem:[%s383 + $0x2] sm:$0x3] %v386
                  %v388 = vld [vmem:[%s382 + $0xc] sm:$0x3]
                  %389 = vst [vmem:[%s383 + $0x4] sm:$0x3] %v388
                  %v390 = vld [vmem:[%s382 + $0x12] sm:$0x3]
                  %391 = vst [vmem:[%s383 + $0x6] sm:$0x3] %v390
                  %v392 = vld [vmem:[%s382 + $0x18] sm:$0x3]
                  %393 = vst [vmem:[%s383 + $0x8] sm:$0x3] %v392
                  %v394 = vld [vmem:[%s382 + $0x1e] sm:$0x3]
                  %395 = vst [vmem:[%s383 + $0xa] sm:$0x3] %v394
                  %v396 = vld [vmem:[%s382 + $0x24] sm:$0x3]
                  %397 = vst [vmem:[%s383 + $0xc] sm:$0x3] %v396
                  %v398 = vld [vmem:[%s382 + $0x2a] sm:$0x3]
                  %399 = vst [vmem:[%s383 + $0xe] sm:$0x3] %v398
                $region137: #{vit_forward.14} parent=124 // loop_footer
                  %s381 = sadd.s32 1, %s377
                $region138: #{vit_forward.14} parent=124 // loop_footer_branch
                  %376 = sbr.rel target = $region134
                $region139: #{vit_forward.14} parent=124 // loop_exit
                  _
              $region125: #{vit_forward.14} parent=109 // pred_fallthru
                _
            $region110: #{vit_forward.14} parent=105 // pred_fallthru
              _
            // Predicated region
            $region111: #{vit_forward.14} parent=105 // pred_check
              _
            $region112: #{vit_forward.14} parent=105 // pred_check_branch
              %339 = sbr.rel (0) target = $region114
            $region113: #{vit_forward.14} parent=105 // pred_region
              loop: start=0, step=1, limit=1
              $region115: #{vit_forward.14} parent=113 // loop_pre_header
                _
              $region116: #{vit_forward.14} parent=113 // loop_header
                %s342 = sphi 0, %s346
                %p343 = scmp.ge.s32.totalorder %s342, 1
                %s347 = sphi %s333, %s333
                %s348 = sphi %s326, %s326
              $region117: #{vit_forward.14} parent=113 // loop_header_branch
                %345 = sbr.rel (%p343) target = $region121
              $region118: #{vit_forward.14} parent=113 // loop_body
                %v349 = vld [vmem:[%s347] sm:$0x3]
                %350 = vst [vmem:[%s348] sm:$0x3] %v349
                %v351 = vld [vmem:[%s347 + $0x6] sm:$0x3]
                %352 = vst [vmem:[%s348 + $0x2] sm:$0x3] %v351
                %v353 = vld [vmem:[%s347 + $0xc] sm:$0x3]
                %354 = vst [vmem:[%s348 + $0x4] sm:$0x3] %v353
                %v355 = vld [vmem:[%s347 + $0x12] sm:$0x3]
                %356 = vst [vmem:[%s348 + $0x6] sm:$0x3] %v355
                %v357 = vld [vmem:[%s347 + $0x18] sm:$0x3]
                %358 = vst [vmem:[%s348 + $0x8] sm:$0x3] %v357
                %v359 = vld [vmem:[%s347 + $0x1e] sm:$0x3]
                %360 = vst [vmem:[%s348 + $0xa] sm:$0x3] %v359
                %v361 = vld [vmem:[%s347 + $0x24] sm:$0x3]
                %362 = vst [vmem:[%s348 + $0xc] sm:$0x3] %v361
                %v363 = vld [vmem:[%s347 + $0x2a] sm:$0x3]
                %364 = vst [vmem:[%s348 + $0xe] sm:$0x3] %v363
              $region119: #{vit_forward.14} parent=113 // loop_footer
                %s346 = sadd.s32 1, %s342
              $region120: #{vit_forward.14} parent=113 // loop_footer_branch
                %341 = sbr.rel target = $region116
              $region121: #{vit_forward.14} parent=113 // loop_exit
                _
            $region114: #{vit_forward.14} parent=105 // pred_fallthru
              _
          $region106: #{vit_forward.14} parent=101 // pred_fallthru
            _
          %400 = vnop
        $region102: #{vit_forward.14} parent=15 // pred_fallthru
          _
      $region16: #{vit_forward.14} parent=5 // pred_fallthru
        _
      %p401 = scmp.le.s32.totalorder 1, %s9
      %p402 = scmp.lt.s32.totalorder %s9, 3
      %p403 = pnand %p401, %p402
      %p404 = pneg %p403
      // Predicated region
      $region140: #{vit_forward.14} parent=5 // pred_check
        _
      $region141: #{vit_forward.14} parent=5 // pred_check_branch
        %406 = sbr.rel (%p403) target = $region143
      $region142: #{vit_forward.14} parent=5 // pred_region
        %s407 = ssub.s32 %s9, 1
        %s408 = sand.u32 %s43, 1
        %s409 = sand.u32 %s43, 1
        %s410 = smul.addr %s409, 16
        %s411 = scalar_lea.vmem [#allocation5], %s410
        // Predicated region
        $region144: #{vit_forward.14} parent=142 // pred_check
          %p412 = pneg %p56
        $region145: #{vit_forward.14} parent=142 // pred_check_branch
          %414 = sbr.rel (%p412) target = $region147
        $region146: #{vit_forward.14} parent=142 // pred_region
          _
        $region147: #{vit_forward.14} parent=142 // pred_fallthru
          _
        %s415 = sand.u32 %s71, 1
        %s416 = sand.u32 %s71, 1
        %s417 = smul.addr %s416, 16
        %s418 = scalar_lea.vmem [#allocation6], %s417
        // Predicated region
        $region148: #{vit_forward.14} parent=142 // pred_check
          %p419 = pneg %p84
        $region149: #{vit_forward.14} parent=142 // pred_check_branch
          %421 = sbr.rel (%p419) target = $region151
        $region150: #{vit_forward.14} parent=142 // pred_region
          _
        $region151: #{vit_forward.14} parent=142 // pred_fallthru
          _
        %s422 = sand.u32 %s99, 1
        %s423 = sand.u32 %s99, 1
        %s424 = smul.addr %s423, 16
        %s425 = scalar_lea.vmem [#allocation7], %s424
        // Predicated region
        $region152: #{vit_forward.14} parent=142 // pred_check
          %p426 = pneg %p112
        $region153: #{vit_forward.14} parent=142 // pred_check_branch
          %428 = sbr.rel (%p426) target = $region155
        $region154: #{vit_forward.14} parent=142 // pred_region
          _
        $region155: #{vit_forward.14} parent=142 // pred_fallthru
          _
        %s429 = sand.u32 %s43, 1
        %s430 = sand.u32 %s43, 1
        %s431 = smul.addr %s430, 16
        %s432 = scalar_lea.vmem [#allocation5], %s431
        %p433 = pneg %p56
        %p434 = pneg %p53
        %s435 = sand.u32 %s71, 1
        %s436 = sand.u32 %s71, 1
        %s437 = smul.addr %s436, 16
        %s438 = scalar_lea.vmem [#allocation6], %s437
        %p439 = pneg %p84
        %p440 = pneg %p81
        %s441 = sand.u32 %s99, 1
        %s442 = sand.u32 %s99, 1
        %s443 = smul.addr %s442, 16
        %s444 = scalar_lea.vmem [#allocation7], %s443
        %p445 = pneg %p112
        %p446 = pneg %p109
        %p447 = pneg %p140
        %p448 = pneg %p137
        %s449 = smul.u32 8, %s20
        %p450 = scmp.lt.s32.totalorder %s19, 1
        %s451 = scalar_select %p450, %s19, 1
        %p452 = scmp.lt.s32.totalorder %s449, 7
        %s453 = scalar_select %p452, %s449, 7
        %s454 = smul.addr %s451, 8
        %s455 = sadd.s32 %s453, %s454
        %s456 = smul.addr %s455, 2
        %s457 = scalar_lea.vmem %s3, %s456
        %s458 = smul.u32 8, %s20
        %s459 = smul.u32 8, %s21
        %s460 = smul.u32 8, %s21
        %s461 = smul.u32 8, %s20
        %p462 = scmp.lt.s32.totalorder %s19, 1
        %s463 = scalar_select %p462, %s19, 1
        %p464 = scmp.lt.s32.totalorder %s461, 7
        %s465 = scalar_select %p464, %s461, 7
        %s466 = smul.addr %s463, 8
        %s467 = sadd.s32 %s465, %s466
        %s468 = smul.addr %s467, 2
        %s469 = scalar_lea.vmem %s3, %s468
        %s470 = smul.u32 8, %s20
        %p472 = scmp.eq.s32.totalorder %s21, 0
        // Predicated region
        $region156: #{vit_forward.14} parent=142 // pred_check
          %p473 = pneg %p472
        $region157: #{vit_forward.14} parent=142 // pred_check_branch
          %475 = sbr.rel (%p473) target = $region159
        $region158: #{vit_forward.14} parent=142 // pred_region
          %vm476 = vcmask 7168
          %477 = vst.msk [vmem:[#allocation2] sm:$0xff] %vm476, -inf
          %478 = vst.msk [vmem:[#allocation2 + $0x8] sm:$0xff] %vm476, -inf
          %479 = vst.msk [vmem:[#allocation3] sm:$0xff] %vm476, 0.0
          %480 = vst.msk [vmem:[#allocation3 + $0x8] sm:$0xff] %vm476, 0.0
          %vm481 = vcmask 261120
          %482 = vst.msk [vmem:[#allocation4] sm:$0xff] %vm481, 0.0
          %483 = vst.msk [vmem:[#allocation4 + $0x8] sm:$0xff] %vm481, 0.0
        $region159: #{vit_forward.14} parent=142 // pred_fallthru
          _
        %v484 = vld [vmem:[%s411] sm:$0x3]
        %v485 = vld [vmem:[%s411 + $0x2] sm:$0x3]
        %v486 = vld [vmem:[%s411 + $0x4] sm:$0x3]
        %v487 = vld [vmem:[%s411 + $0x6] sm:$0x3]
        %v488 = vld [vmem:[%s411 + $0x8] sm:$0x3]
        %v489 = vld [vmem:[%s411 + $0xa] sm:$0x3]
        %v490 = vld [vmem:[%s411 + $0xc] sm:$0x3]
        %v491 = vld [vmem:[%s411 + $0xe] sm:$0x3]
        %v492 = vld [vmem:[%s418] sm:$0x3]
        %v493 = vld [vmem:[%s418 + $0x2] sm:$0x3]
        %v494 = vld [vmem:[%s418 + $0x4] sm:$0x3]
        %v495 = vld [vmem:[%s418 + $0x6] sm:$0x3]
        %v496 = vld [vmem:[%s418 + $0x8] sm:$0x3]
        %v497 = vld [vmem:[%s418 + $0xa] sm:$0x3]
        %v498 = vld [vmem:[%s418 + $0xc] sm:$0x3]
        %v499 = vld [vmem:[%s418 + $0xe] sm:$0x3]
        %v500 = vld [vmem:[%s425] sm:$0x3]
        %v501 = vld [vmem:[%s425 + $0x2] sm:$0x3]
        %v502 = vld [vmem:[%s425 + $0x4] sm:$0x3]
        %v503 = vld [vmem:[%s425 + $0x6] sm:$0x3]
        %v504 = vld [vmem:[%s425 + $0x8] sm:$0x3]
        %v505 = vld [vmem:[%s425 + $0xa] sm:$0x3]
        %v506 = vld [vmem:[%s425 + $0xc] sm:$0x3]
        %v507 = vld [vmem:[%s425 + $0xe] sm:$0x3]
        %v508 = vpack.c.bf16 %v484, %v484
        %v509 = vpack.c.bf16 %v485, %v485
        %v510 = vpack.c.bf16 %v486, %v486
        %v511 = vpack.c.bf16 %v487, %v487
        %v512 = vpack.c.bf16 %v488, %v488
        %v513 = vpack.c.bf16 %v489, %v489
        %v514 = vpack.c.bf16 %v490, %v490
        %v515 = vpack.c.bf16 %v491, %v491
        %v516 = vpack.c.bf16 %v492, %v492
        %v517 = vpack.c.bf16 %v493, %v493
        %v518 = vpack.c.bf16 %v494, %v494
        %v519 = vpack.c.bf16 %v495, %v495
        %v520 = vpack.c.bf16 %v496, %v496
        %v521 = vpack.c.bf16 %v497, %v497
        %v522 = vpack.c.bf16 %v498, %v498
        %v523 = vpack.c.bf16 %v499, %v499
        %v524 = vpack.c.bf16 %v500, %v500
        %v525 = vpack.c.bf16 %v501, %v501
        %v526 = vpack.c.bf16 %v502, %v502
        %v527 = vpack.c.bf16 %v503, %v503
        %v528 = vpack.c.bf16 %v504, %v504
        %v529 = vpack.c.bf16 %v505, %v505
        %v530 = vpack.c.bf16 %v506, %v506
        %v531 = vpack.c.bf16 %v507, %v507
        %v540 = vunpack.c.l.b16 %v508
        %v541 = vunpack.c.l.b16 %v509
        %v542 = vunpack.c.l.b16 %v510
        %v543 = vunpack.c.l.b16 %v511
        %v544 = vunpack.c.l.b16 %v512
        %v545 = vunpack.c.l.b16 %v513
        %v546 = vunpack.c.l.b16 %v514
        %v547 = vunpack.c.l.b16 %v515
        %v548 = vrot.slane %v541, 7
        %vm549 = vcmask 1041409
        %v550 = vsel %vm549, %v548, %v540
        %v551 = vrot.slane %v542, 6
        %vm552 = vcmask 1042434
        %v553 = vsel %vm552, %v551, %v550
        %v554 = vrot.slane %v543, 5
        %vm555 = vcmask 1043459
        %v556 = vsel %vm555, %v554, %v553
        %v557 = vrot.slane %v544, 4
        %vm558 = vcmask 1044484
        %v559 = vsel %vm558, %v557, %v556
        %v560 = vrot.slane %v545, 3
        %vm561 = vcmask 1045509
        %v562 = vsel %vm561, %v560, %v559
        %v563 = vrot.slane %v546, 2
        %vm564 = vcmask 1046534
        %v565 = vsel %vm564, %v563, %v562
        %v566 = vrot.slane %v547, 1
        %vm567 = vcmask 1047559
        %v568 = vsel %vm567, %v566, %v565
        %v569 = vpack.c.b16 %v568, %v568
        %v578 = vunpack.c.l.b16 %v516
        %v579 = vunpack.c.l.b16 %v517
        %v580 = vunpack.c.l.b16 %v518
        %v581 = vunpack.c.l.b16 %v519
        %v582 = vunpack.c.l.b16 %v520
        %v583 = vunpack.c.l.b16 %v521
        %v584 = vunpack.c.l.b16 %v522
        %v585 = vunpack.c.l.b16 %v523
        %v586 = vrot.slane %v579, 7
        %v587 = vsel %vm549, %v586, %v578
        %v588 = vrot.slane %v580, 6
        %v589 = vsel %vm552, %v588, %v587
        %v590 = vrot.slane %v581, 5
        %v591 = vsel %vm555, %v590, %v589
        %v592 = vrot.slane %v582, 4
        %v593 = vsel %vm558, %v592, %v591
        %v594 = vrot.slane %v583, 3
        %v595 = vsel %vm561, %v594, %v593
        %v596 = vrot.slane %v584, 2
        %v597 = vsel %vm564, %v596, %v595
        %v598 = vrot.slane %v585, 1
        %v599 = vsel %vm567, %v598, %v597
        %v600 = vpack.c.b16 %v599, %v599
        %vm601 = vcmask 261120
        %v603 = vsel %vm601, %v569, 0
        %v606 = vsel %vm601, %v600, 0
        %608 = vmatprep.subr.bf16.mxu0 0
        %609 = vmatpush1.bf16.xpose.msra.mxu0 %v606
        %610 = vmatprep.subr.bf16.mxu0 0
        %611 = vmatpush1.bf16.xpose.msra.mxu0 0
        %612 = vmatprep.subr.bf16.mxu0 0
        %613 = vmatpush1.bf16.xpose.msra.mxu0 0
        %614 = vmatprep.subr.bf16.mxu0 0
        %615 = vmatpush1.bf16.xpose.msra.mxu0 0
        %616 = vmatprep.subr.bf16.mxu0 0
        %617 = vmatpush1.bf16.xpose.msra.mxu0 0
        %618 = vmatprep.subr.bf16.mxu0 0
        %619 = vmatpush1.bf16.xpose.msra.mxu0 0
        %620 = vmatprep.subr.bf16.mxu0 0
        %621 = vmatpush1.bf16.xpose.msra.mxu0 0
        %622 = vmatprep.subr.bf16.mxu0 0
        %623 = vmatpush1.bf16.xpose.msra.mxu0 0
        %624 = vmatprep.subr.bf16.mxu0 0
        %625 = vmatpush1.bf16.xpose.msra.mxu0 0
        %626 = vmatprep.subr.bf16.mxu0 0
        %627 = vmatpush1.bf16.xpose.msra.mxu0 0
        %628 = vmatprep.subr.bf16.mxu0 0
        %629 = vmatpush1.bf16.xpose.msra.mxu0 0
        %630 = vmatprep.subr.bf16.mxu0 0
        %631 = vmatpush1.bf16.xpose.msra.mxu0 0
        %632 = vmatprep.subr.bf16.mxu0 0
        %633 = vmatpush1.bf16.xpose.msra.mxu0 0
        %634 = vmatprep.subr.bf16.mxu0 0
        %635 = vmatpush1.bf16.xpose.msra.mxu0 0
        %636 = vmatprep.subr.bf16.mxu0 0
        %637 = vmatpush1.bf16.xpose.msra.mxu0 0
        %638 = vmatprep.subr.bf16.mxu0 0
        %639 = vmatpush1.bf16.xpose.msra.mxu0 0
        %640 = vmatprep.mubr.bf16.mxu0 0
        %641 = vmatmul.mubr.bf16.gmra.mrb[0].mxu0 %v603
        %v642 = vpop.f32.mrb[0].mxu0
        %v643 = vadd.f32 0.0, %v642
        %v644 = vpop.f32.mrb[0].mxu0
        %v645 = vpop.f32.mrb[0].mxu0
        %v646 = vpop.f32.mrb[0].mxu0
        %647 = vdwg.mxu0
        %v648 = vmul.f32 %v643, 0.17677669
        %v649 = vld [vmem:[#allocation2] sm:$0xff]
        %vm650 = vcmask 64512
        %v651 = vsel %vm650, %v648, -inf
        %652 = vmax.xlane.f32.xlu0 %v651
        %v653 = vpop.xlane.xlu0 %652
        %v654 = vmax.f32 %v649, %v653
        %v655 = vsub.f32 %v649, %v654
        %v656 = vmul.f32 %v655, 1.442695
        %v657 = vpow.pop %v656
        %659 = vset.pattern.permute.xlu0 0
        %660 = vperm.xlu0 %659, %v654
        %v661 = vpop.permute.xlu0 %660
        %v663 = vsub.f32 %v648, %v661
        %v664 = vmul.f32 %v663, 1.442695
        %v665 = vpow.pop %v664
        %v666 = vld [vmem:[#allocation3] sm:$0xff]
        %v667 = vmul.f32 %v657, %v666
        %v668 = vsel %vm650, %v665, 0.0
        %669 = vadd.xlane.f32.xlu0 %v668
        %v670 = vpop.xlane.xlu0 %669
        %v671 = vadd.f32 %v667, %v670
        %vm672 = vcmask 7168
        %673 = vst.msk [vmem:[#allocation3] sm:$0xff] %vm672, %v671
        %v674 = vld [vmem:[#allocation4] sm:$0xff]
        %676 = vset.pattern.permute.xlu0 0
        %677 = vperm.xlu0 %676, %v657
        %v678 = vpop.permute.xlu0 %677
        %v680 = vmul.f32 %v678, %v674
        %v681 = vpack.c.bf16 %v665, %v665
        %v690 = vunpack.c.l.b16 %v524
        %v691 = vunpack.c.l.b16 %v525
        %v692 = vunpack.c.l.b16 %v526
        %v693 = vunpack.c.l.b16 %v527
        %v694 = vunpack.c.l.b16 %v528
        %v695 = vunpack.c.l.b16 %v529
        %v696 = vunpack.c.l.b16 %v530
        %v697 = vunpack.c.l.b16 %v531
        %v698 = vrot.slane %v691, 7
        %v699 = vsel %vm549, %v698, %v690
        %v700 = vrot.slane %v692, 6
        %v701 = vsel %vm552, %v700, %v699
        %v702 = vrot.slane %v693, 5
        %v703 = vsel %vm555, %v702, %v701
        %v704 = vrot.slane %v694, 4
        %v705 = vsel %vm558, %v704, %v703
        %v706 = vrot.slane %v695, 3
        %v707 = vsel %vm561, %v706, %v705
        %v708 = vrot.slane %v696, 2
        %v709 = vsel %vm564, %v708, %v707
        %v710 = vrot.slane %v697, 1
        %v711 = vsel %vm567, %v710, %v709
        %v712 = vpack.c.b16 %v711, %v711
        %v714 = vsel %vm650, %v681, 0
        %vm716 = vcmask 1043456
        %v718 = vsel %vm716, %v712, 0
        %720 = vmatprep.subr.bf16.mxu0 0
        %721 = vmatpush1.bf16.msra.mxu0 %v718
        %722 = vmatprep.subr.bf16.mxu0 0
        %723 = vmatpush1.bf16.msra.mxu0 0
        %724 = vmatprep.subr.bf16.mxu0 0
        %725 = vmatpush1.bf16.msra.mxu0 0
        %726 = vmatprep.subr.bf16.mxu0 0
        %727 = vmatpush1.bf16.msra.mxu0 0
        %728 = vmatprep.subr.bf16.mxu0 0
        %729 = vmatpush1.bf16.msra.mxu0 0
        %730 = vmatprep.subr.bf16.mxu0 0
        %731 = vmatpush1.bf16.msra.mxu0 0
        %732 = vmatprep.subr.bf16.mxu0 0
        %733 = vmatpush1.bf16.msra.mxu0 0
        %734 = vmatprep.subr.bf16.mxu0 0
        %735 = vmatpush1.bf16.msra.mxu0 0
        %736 = vmatprep.subr.bf16.mxu0 0
        %737 = vmatpush1.bf16.msra.mxu0 0
        %738 = vmatprep.subr.bf16.mxu0 0
        %739 = vmatpush1.bf16.msra.mxu0 0
        %740 = vmatprep.subr.bf16.mxu0 0
        %741 = vmatpush1.bf16.msra.mxu0 0
        %742 = vmatprep.subr.bf16.mxu0 0
        %743 = vmatpush1.bf16.msra.mxu0 0
        %744 = vmatprep.subr.bf16.mxu0 0
        %745 = vmatpush1.bf16.msra.mxu0 0
        %746 = vmatprep.subr.bf16.mxu0 0
        %747 = vmatpush1.bf16.msra.mxu0 0
        %748 = vmatprep.subr.bf16.mxu0 0
        %749 = vmatpush1.bf16.msra.mxu0 0
        %750 = vmatprep.subr.bf16.mxu0 0
        %751 = vmatpush1.bf16.msra.mxu0 0
        %752 = vmatprep.mubr.bf16.mxu0 0
        %753 = vmatmul.mubr.bf16.gmra.mrb[0].mxu0 %v714
        %v754 = vpop.f32.mrb[0].mxu0
        %v755 = vadd.f32 0.0, %v754
        %v756 = vpop.f32.mrb[0].mxu0
        %v757 = vpop.f32.mrb[0].mxu0
        %v758 = vpop.f32.mrb[0].mxu0
        %759 = vdwg.mxu0
        %v760 = vadd.f32 %v680, %v755
        %761 = vst.msk [vmem:[#allocation4] sm:$0xff] %vm601, %v760
        %762 = vst.msk [vmem:[#allocation2] sm:$0xff] %vm672, %v654
        %v763 = vrot.slane %v540, 1
        %v764 = vsel %vm549, %v541, %v763
        %v765 = vrot.slane %v542, 7
        %v766 = vsel %vm552, %v765, %v764
        %v767 = vrot.slane %v543, 6
        %v768 = vsel %vm555, %v767, %v766
        %v769 = vrot.slane %v544, 5
        %v770 = vsel %vm558, %v769, %v768
        %v771 = vrot.slane %v545, 4
        %v772 = vsel %vm561, %v771, %v770
        %v773 = vrot.slane %v546, 3
        %v774 = vsel %vm564, %v773, %v772
        %v775 = vrot.slane %v547, 2
        %v776 = vsel %vm567, %v775, %v774
        %v777 = vpack.c.b16 %v776, %v776
        %v778 = vrot.slane %v578, 1
        %v779 = vsel %vm549, %v579, %v778
        %v780 = vrot.slane %v580, 7
        %v781 = vsel %vm552, %v780, %v779
        %v782 = vrot.slane %v581, 6
        %v783 = vsel %vm555, %v782, %v781
        %v784 = vrot.slane %v582, 5
        %v785 = vsel %vm558, %v784, %v783
        %v786 = vrot.slane %v583, 4
        %v787 = vsel %vm561, %v786, %v785
        %v788 = vrot.slane %v584, 3
        %v789 = vsel %vm564, %v788, %v787
        %v790 = vrot.slane %v585, 2
        %v791 = vsel %vm567, %v790, %v789
        %v792 = vpack.c.b16 %v791, %v791
        %v794 = vsel %vm601, %v777, 0
        %v797 = vsel %vm601, %v792, 0
        %799 = vmatprep.subr.bf16.mxu0 0
        %800 = vmatpush1.bf16.xpose.msra.mxu0 %v797
        %801 = vmatprep.subr.bf16.mxu0 0
        %802 = vmatpush1.bf16.xpose.msra.mxu0 0
        %803 = vmatprep.subr.bf16.mxu0 0
        %804 = vmatpush1.bf16.xpose.msra.mxu0 0
        %805 = vmatprep.subr.bf16.mxu0 0
        %806 = vmatpush1.bf16.xpose.msra.mxu0 0
        %807 = vmatprep.subr.bf16.mxu0 0
        %808 = vmatpush1.bf16.xpose.msra.mxu0 0
        %809 = vmatprep.subr.bf16.mxu0 0
        %810 = vmatpush1.bf16.xpose.msra.mxu0 0
        %811 = vmatprep.subr.bf16.mxu0 0
        %812 = vmatpush1.bf16.xpose.msra.mxu0 0
        %813 = vmatprep.subr.bf16.mxu0 0
        %814 = vmatpush1.bf16.xpose.msra.mxu0 0
        %815 = vmatprep.subr.bf16.mxu0 0
        %816 = vmatpush1.bf16.xpose.msra.mxu0 0
        %817 = vmatprep.subr.bf16.mxu0 0
        %818 = vmatpush1.bf16.xpose.msra.mxu0 0
        %819 = vmatprep.subr.bf16.mxu0 0
        %820 = vmatpush1.bf16.xpose.msra.mxu0 0
        %821 = vmatprep.subr.bf16.mxu0 0
        %822 = vmatpush1.bf16.xpose.msra.mxu0 0
        %823 = vmatprep.subr.bf16.mxu0 0
        %824 = vmatpush1.bf16.xpose.msra.mxu0 0
        %825 = vmatprep.subr.bf16.mxu0 0
        %826 = vmatpush1.bf16.xpose.msra.mxu0 0
        %827 = vmatprep.subr.bf16.mxu0 0
        %828 = vmatpush1.bf16.xpose.msra.mxu0 0
        %829 = vmatprep.subr.bf16.mxu0 0
        %830 = vmatpush1.bf16.xpose.msra.mxu0 0
        %831 = vmatprep.mubr.bf16.mxu0 0
        %832 = vmatmul.mubr.bf16.gmra.mrb[0].mxu0 %v794
        %v833 = vpop.f32.mrb[0].mxu0
        %v834 = vadd.f32 0.0, %v833
        %v835 = vpop.f32.mrb[0].mxu0
        %v836 = vpop.f32.mrb[0].mxu0
        %v837 = vpop.f32.mrb[0].mxu0
        %838 = vdwg.mxu0
        %v839 = vmul.f32 %v834, 0.17677669
        %s840 = scalar_lea.vmem [#allocation2], 8
        %v841 = vld [vmem:[%s840] sm:$0xff]
        %v842 = vsel %vm650, %v839, -inf
        %843 = vmax.xlane.f32.xlu0 %v842
        %v844 = vpop.xlane.xlu0 %843
        %v845 = vmax.f32 %v841, %v844
        %v846 = vsub.f32 %v841, %v845
        %v847 = vmul.f32 %v846, 1.442695
        %v848 = vpow.pop %v847
        %850 = vset.pattern.permute.xlu0 0
        %851 = vperm.xlu0 %850, %v845
        %v852 = vpop.permute.xlu0 %851
        %v854 = vsub.f32 %v839, %v852
        %v855 = vmul.f32 %v854, 1.442695
        %v856 = vpow.pop %v855
        %s857 = scalar_lea.vmem [#allocation3], 8
        %v858 = vld [vmem:[%s857] sm:$0xff]
        %v859 = vmul.f32 %v848, %v858
        %v860 = vsel %vm650, %v856, 0.0
        %861 = vadd.xlane.f32.xlu0 %v860
        %v862 = vpop.xlane.xlu0 %861
        %v863 = vadd.f32 %v859, %v862
        %864 = vst.msk [vmem:[%s857] sm:$0xff] %vm672, %v863
        %s865 = scalar_lea.vmem [#allocation4], 8
        %v866 = vld [vmem:[%s865] sm:$0xff]
        %868 = vset.pattern.permute.xlu0 0
        %869 = vperm.xlu0 %868, %v848
        %v870 = vpop.permute.xlu0 %869
        %v872 = vmul.f32 %v870, %v866
        %v873 = vpack.c.bf16 %v856, %v856
        %v874 = vrot.slane %v690, 1
        %v875 = vsel %vm549, %v691, %v874
        %v876 = vrot.slane %v692, 7
        %v877 = vsel %vm552, %v876, %v875
        %v878 = vrot.slane %v693, 6
        %v879 = vsel %vm555, %v878, %v877
        %v880 = vrot.slane %v694, 5
        %v881 = vsel %vm558, %v880, %v879
        %v882 = vrot.slane %v695, 4
        %v883 = vsel %vm561, %v882, %v881
        %v884 = vrot.slane %v696, 3
        %v885 = vsel %vm564, %v884, %v883
        %v886 = vrot.slane %v697, 2
        %v887 = vsel %vm567, %v886, %v885
        %v888 = vpack.c.b16 %v887, %v887
        %v890 = vsel %vm650, %v873, 0
        %v893 = vsel %vm716, %v888, 0
        %895 = vmatprep.subr.bf16.mxu0 0
        %896 = vmatpush1.bf16.msra.mxu0 %v893
        %897 = vmatprep.subr.bf16.mxu0 0
        %898 = vmatpush1.bf16.msra.mxu0 0
        %899 = vmatprep.subr.bf16.mxu0 0
        %900 = vmatpush1.bf16.msra.mxu0 0
        %901 = vmatprep.subr.bf16.mxu0 0
        %902 = vmatpush1.bf16.msra.mxu0 0
        %903 = vmatprep.subr.bf16.mxu0 0
        %904 = vmatpush1.bf16.msra.mxu0 0
        %905 = vmatprep.subr.bf16.mxu0 0
        %906 = vmatpush1.bf16.msra.mxu0 0
        %907 = vmatprep.subr.bf16.mxu0 0
        %908 = vmatpush1.bf16.msra.mxu0 0
        %909 = vmatprep.subr.bf16.mxu0 0
        %910 = vmatpush1.bf16.msra.mxu0 0
        %911 = vmatprep.subr.bf16.mxu0 0
        %912 = vmatpush1.bf16.msra.mxu0 0
        %913 = vmatprep.subr.bf16.mxu0 0
        %914 = vmatpush1.bf16.msra.mxu0 0
        %915 = vmatprep.subr.bf16.mxu0 0
        %916 = vmatpush1.bf16.msra.mxu0 0
        %917 = vmatprep.subr.bf16.mxu0 0
        %918 = vmatpush1.bf16.msra.mxu0 0
        %919 = vmatprep.subr.bf16.mxu0 0
        %920 = vmatpush1.bf16.msra.mxu0 0
        %921 = vmatprep.subr.bf16.mxu0 0
        %922 = vmatpush1.bf16.msra.mxu0 0
        %923 = vmatprep.subr.bf16.mxu0 0
        %924 = vmatpush1.bf16.msra.mxu0 0
        %925 = vmatprep.subr.bf16.mxu0 0
        %926 = vmatpush1.bf16.msra.mxu0 0
        %927 = vmatprep.mubr.bf16.mxu0 0
        %928 = vmatmul.mubr.bf16.gmra.mrb[0].mxu0 %v890
        %v929 = vpop.f32.mrb[0].mxu0
        %v930 = vadd.f32 0.0, %v929
        %v931 = vpop.f32.mrb[0].mxu0
        %v932 = vpop.f32.mrb[0].mxu0
        %v933 = vpop.f32.mrb[0].mxu0
        %934 = vdwg.mxu0
        %v935 = vadd.f32 %v872, %v930
        %936 = vst.msk [vmem:[%s865] sm:$0xff] %vm601, %v935
        %937 = vst.msk [vmem:[%s840] sm:$0xff] %vm672, %v845
        // Predicated region
        $region160: #{vit_forward.14} parent=142 // pred_check
          %p938 = pneg %p472
        $region161: #{vit_forward.14} parent=142 // pred_check_branch
          %940 = sbr.rel (%p938) target = $region163
        $region162: #{vit_forward.14} parent=142 // pred_region
          %v941 = vld [vmem:[#allocation3] sm:$0xff]
          %v942 = vrcp.pop %v941
          %v943 = vld [vmem:[#allocation4] sm:$0xff]
          %945 = vset.pattern.permute.xlu0 0
          %946 = vperm.xlu0 %945, %v942
          %v947 = vpop.permute.xlu0 %946
          %v949 = vmul.f32 %v943, %v947
          %v951 = vcombine.high %v949, %v949
          %v953 = vunpack.c.l.s4 1966171168
          %v954 = vunpack.c.0.s8 %v953
          %v955 = vlaneseq
          %v956 = vshrl.u32 %v955, 7
          %v957 = vsub.s32 %v954, %v956
          %v958 = vrot.slane %v949, %v957
          %v960 = vunpack.c.l.s4 1966171168
          %v961 = vunpack.c.0.s8 %v960
          %v962 = vlaneseq
          %v963 = vshrl.u32 %v962, 7
          %v964 = vsub.s32 %v961, %v963
          %v965 = vrot.slane %v951, %v964
          %v966 = vcombine.high %v958, %v958
          %v967 = vcombine.high %v965, %v965
          %v969 = vunpack.c.l.s4 1966171168
          %v970 = vunpack.c.0.s8 %v969
          %v971 = vlaneseq
          %v972 = vshrl.u32 %v971, 7
          %v973 = vsub.s32 %v970, %v972
          %v974 = vrot.slane %v958, %v973
          %v976 = vunpack.c.l.s4 1966171168
          %v977 = vunpack.c.0.s8 %v976
          %v978 = vlaneseq
          %v979 = vshrl.u32 %v978, 7
          %v980 = vsub.s32 %v977, %v979
          %v981 = vrot.slane %v965, %v980
          %v983 = vunpack.c.l.s4 1966171168
          %v984 = vunpack.c.0.s8 %v983
          %v985 = vlaneseq
          %v986 = vshrl.u32 %v985, 7
          %v987 = vsub.s32 %v984, %v986
          %v988 = vrot.slane %v966, %v987
          %v990 = vunpack.c.l.s4 1966171168
          %v991 = vunpack.c.0.s8 %v990
          %v992 = vlaneseq
          %v993 = vshrl.u32 %v992, 7
          %v994 = vsub.s32 %v991, %v993
          %v995 = vrot.slane %v967, %v994
          %v996 = vcombine.high %v974, %v974
          %v997 = vcombine.high %v981, %v981
          %v998 = vcombine.high %v988, %v988
          %v999 = vcombine.high %v995, %v995
          %vm1008 = vcmask 253952
          %1009 = vst.msk [vmem:[%s469] sm:$0x1] %vm1008, %v974
          %1010 = vst.msk [vmem:[%s469 + $0x2] sm:$0x1] %vm1008, %v988
          %1011 = vst.msk [vmem:[%s469 + $0x4] sm:$0x1] %vm1008, %v996
          %1012 = vst.msk [vmem:[%s469 + $0x6] sm:$0x1] %vm1008, %v998
          %1013 = vst.msk [vmem:[%s469 + $0x8] sm:$0x1] %vm1008, %v981
          %1014 = vst.msk [vmem:[%s469 + $0xa] sm:$0x1] %vm1008, %v995
          %1015 = vst.msk [vmem:[%s469 + $0xc] sm:$0x1] %vm1008, %v997
          %1016 = vst.msk [vmem:[%s469 + $0xe] sm:$0x1] %vm1008, %v999
          %v1017 = vld [vmem:[%s857] sm:$0xff]
          %v1018 = vrcp.pop %v1017
          %v1019 = vld [vmem:[%s865] sm:$0xff]
          %1021 = vset.pattern.permute.xlu0 0
          %1022 = vperm.xlu0 %1021, %v1018
          %v1023 = vpop.permute.xlu0 %1022
          %v1025 = vmul.f32 %v1019, %v1023
          %v1027 = vcombine.high %v1025, %v1025
          %v1029 = vunpack.c.l.s4 1966171168
          %v1030 = vunpack.c.0.s8 %v1029
          %v1031 = vlaneseq
          %v1032 = vshrl.u32 %v1031, 7
          %v1033 = vsub.s32 %v1030, %v1032
          %v1034 = vrot.slane %v1025, %v1033
          %v1036 = vunpack.c.l.s4 1966171168
          %v1037 = vunpack.c.0.s8 %v1036
          %v1038 = vlaneseq
          %v1039 = vshrl.u32 %v1038, 7
          %v1040 = vsub.s32 %v1037, %v1039
          %v1041 = vrot.slane %v1027, %v1040
          %v1042 = vcombine.high %v1034, %v1034
          %v1043 = vcombine.high %v1041, %v1041
          %v1045 = vunpack.c.l.s4 1966171168
          %v1046 = vunpack.c.0.s8 %v1045
          %v1047 = vlaneseq
          %v1048 = vshrl.u32 %v1047, 7
          %v1049 = vsub.s32 %v1046, %v1048
          %v1050 = vrot.slane %v1034, %v1049
          %v1052 = vunpack.c.l.s4 1966171168
          %v1053 = vunpack.c.0.s8 %v1052
          %v1054 = vlaneseq
          %v1055 = vshrl.u32 %v1054, 7
          %v1056 = vsub.s32 %v1053, %v1055
          %v1057 = vrot.slane %v1041, %v1056
          %v1059 = vunpack.c.l.s4 1966171168
          %v1060 = vunpack.c.0.s8 %v1059
          %v1061 = vlaneseq
          %v1062 = vshrl.u32 %v1061, 7
          %v1063 = vsub.s32 %v1060, %v1062
          %v1064 = vrot.slane %v1042, %v1063
          %v1066 = vunpack.c.l.s4 1966171168
          %v1067 = vunpack.c.0.s8 %v1066
          %v1068 = vlaneseq
          %v1069 = vshrl.u32 %v1068, 7
          %v1070 = vsub.s32 %v1067, %v1069
          %v1071 = vrot.slane %v1043, %v1070
          %v1072 = vcombine.high %v1050, %v1050
          %v1073 = vcombine.high %v1057, %v1057
          %v1074 = vcombine.high %v1064, %v1064
          %v1075 = vcombine.high %v1071, %v1071
          %1084 = vst.msk [vmem:[%s469 + $0x1] sm:$0x1] %vm1008, %v1050
          %1085 = vst.msk [vmem:[%s469 + $0x3] sm:$0x1] %vm1008, %v1064
          %1086 = vst.msk [vmem:[%s469 + $0x5] sm:$0x1] %vm1008, %v1072
          %1087 = vst.msk [vmem:[%s469 + $0x7] sm:$0x1] %vm1008, %v1074
          %1088 = vst.msk [vmem:[%s469 + $0x9] sm:$0x1] %vm1008, %v1057
          %1089 = vst.msk [vmem:[%s469 + $0xb] sm:$0x1] %vm1008, %v1071
          %1090 = vst.msk [vmem:[%s469 + $0xd] sm:$0x1] %vm1008, %v1073
          %1091 = vst.msk [vmem:[%s469 + $0xf] sm:$0x1] %vm1008, %v1075
        $region163: #{vit_forward.14} parent=142 // pred_fallthru
          _
        %s1092 = smul.u32 8, %s20
        %p1093 = scmp.lt.s32.totalorder %s19, 1
        %s1094 = scalar_select %p1093, %s19, 1
        %p1095 = scmp.lt.s32.totalorder %s1092, 7
        %s1096 = scalar_select %p1095, %s1092, 7
        %s1097 = smul.addr %s1094, 8
        %s1098 = sadd.s32 %s1096, %s1097
        %s1099 = smul.addr %s1098, 2
        %s1100 = scalar_lea.vmem %s3, %s1099
        // Predicated region
        $region164: #{vit_forward.14} parent=142 // pred_check
          %p1101 = pneg %p137
        $region165: #{vit_forward.14} parent=142 // pred_check_branch
          %1103 = sbr.rel (%p1101) target = $region167
        $region166: #{vit_forward.14} parent=142 // pred_region
          %s1104 = smul.u32 8, %s20
        $region167: #{vit_forward.14} parent=142 // pred_fallthru
          _
      $region143: #{vit_forward.14} parent=5 // pred_fallthru
        _
      %p1105 = scmp.le.s32.totalorder 2, %s9
      // Predicated region
      $region168: #{vit_forward.14} parent=5 // pred_check
        %p1106 = pneg %p1105
      $region169: #{vit_forward.14} parent=5 // pred_check_branch
        %1108 = sbr.rel (%p1106) target = $region171
      $region170: #{vit_forward.14} parent=5 // pred_region
        %s1109 = ssub.s32 %s9, 2
        // Predicated region
        $region172: #{vit_forward.14} parent=170 // pred_check
          %p1110 = pneg %p143
        $region173: #{vit_forward.14} parent=170 // pred_check_branch
          %1112 = sbr.rel (%p1110) target = $region175
        $region174: #{vit_forward.14} parent=170 // pred_region
          %s1113 = smul.u32 8, %s23
          %p1114 = scmp.lt.s32.totalorder %s22, 1
          %s1115 = scalar_select %p1114, %s22, 1
          %p1116 = scmp.lt.s32.totalorder %s1113, 7
          %s1117 = scalar_select %p1116, %s1113, 7
          %s1118 = smul.addr %s1115, 8
          %s1119 = sadd.s32 %s1117, %s1118
          %s1120 = smul.addr %s1119, 2
          %s1121 = scalar_lea.vmem %s3, %s1120
        $region175: #{vit_forward.14} parent=170 // pred_fallthru
          _
      $region171: #{vit_forward.14} parent=5 // pred_fallthru
        _
    $region6: #{vit_forward.14} parent=1 // loop_footer
      %s13 = sadd.s32 1, %s9
    $region7: #{vit_forward.14} parent=1 // loop_footer_branch
      %8 = sbr.rel target = $region3
    $region8: #{vit_forward.14} parent=1 // loop_exit
      _

// kernel: vit_forward.15
$region0: #{vit_forward.15}
  #allocation0 [shape = 'u32[]', space=smem, size = 0x4, offset = 0x4, fixed_abs, tag = 'smem constant byte address 0x4 - core index']
  #allocation1 [shape = 'u32[144,128]{1,0:T(1,128)}', space=vmem, size = 0x12000, scoped, tag = 'internal scratch']
  %s0 = inlined_call_operand.vmem [shape: f32[16,64], index: 0, kind: input, shape index: {}]
  %s1 = inlined_call_operand.vmem [shape: bf16[64,64], index: 1, kind: input, shape index: {}]
  %s2 = inlined_call_operand.vmem [shape: f32[1,64], index: 2, kind: input, shape index: {}]
  %s3 = inlined_call_operand.vmem [shape: f32[16,64], index: 3, kind: input, shape index: {}]
  %s4 = inlined_call_operand.vmem [shape: f32[16,1], index: 4, kind: input, shape index: {}]
  %s5 = inlined_call_operand.vmem [shape: f32[16,64], index: 5, kind: output, shape index: {}]
  %s6 = sld [smem:[#allocation0]]
  $region30: #{vit_forward.15} parent=0
    _
  %s8 = ssub.s32 1, %s6
  %s9 = scalar_select 0, %s8, %s6
  // Predicated region
  $region2: #{vit_forward.15} parent=0 // pred_check
    _
  $region3: #{vit_forward.15} parent=0 // pred_check_branch
    %11 = sbr.rel (0) target = $region5
  $region4: #{vit_forward.15} parent=0 // pred_region
    _
  $region5: #{vit_forward.15} parent=0 // pred_fallthru
    _
  // Predicated region
  $region6: #{vit_forward.15} parent=0 // pred_check
    _
  $region7: #{vit_forward.15} parent=0 // pred_check_branch
    %13 = sbr.rel (0) target = $region9
  $region8: #{vit_forward.15} parent=0 // pred_region
    _
  $region9: #{vit_forward.15} parent=0 // pred_fallthru
    _
  // Predicated region
  $region10: #{vit_forward.15} parent=0 // pred_check
    _
  $region11: #{vit_forward.15} parent=0 // pred_check_branch
    %15 = sbr.rel (0) target = $region13
  $region12: #{vit_forward.15} parent=0 // pred_region
    _
  $region13: #{vit_forward.15} parent=0 // pred_fallthru
    _
  // Predicated region
  $region14: #{vit_forward.15} parent=0 // pred_check
    _
  $region15: #{vit_forward.15} parent=0 // pred_check_branch
    %17 = sbr.rel (0) target = $region17
  $region16: #{vit_forward.15} parent=0 // pred_region
    _
  $region17: #{vit_forward.15} parent=0 // pred_fallthru
    _
  // Predicated region
  $region18: #{vit_forward.15} parent=0 // pred_check
    _
  $region19: #{vit_forward.15} parent=0 // pred_check_branch
    %19 = sbr.rel (0) target = $region21
  $region20: #{vit_forward.15} parent=0 // pred_region
    _
  $region21: #{vit_forward.15} parent=0 // pred_fallthru
    _
  %v21 = vld [vmem:[%s0] sm:$0xff]
  %v22 = vld [vmem:[%s0 + $0x8] sm:$0xff]
  %v23 = vpack.c.bf16 %v22, %v21
  %v24 = vld [vmem:[%s1] sm:$0xf]
  %v25 = vld [vmem:[%s1 + $0x4] sm:$0xf]
  %v26 = vld [vmem:[%s1 + $0x8] sm:$0xf]
  %v27 = vld [vmem:[%s1 + $0xc] sm:$0xf]
  %v28 = vld [vmem:[%s1 + $0x10] sm:$0xf]
  %v29 = vld [vmem:[%s1 + $0x14] sm:$0xf]
  %v30 = vld [vmem:[%s1 + $0x18] sm:$0xf]
  %v31 = vld [vmem:[%s1 + $0x1c] sm:$0xf]
  %v32 = vld [vmem:[%s2] sm:$0x1]
  %v34 = vlaneseq
  %v35 = vshrl.u32 %v34, 7
  %v36 = vsub.s32 0, %v35
  %v37 = vrot.slane %v32, %v36
  %v47 = vunpack.c.l.b16 %v24
  %v48 = vunpack.c.l.b16 %v25
  %v49 = vunpack.c.l.b16 %v26
  %v50 = vunpack.c.l.b16 %v27
  %v51 = vunpack.c.l.b16 %v28
  %v52 = vunpack.c.l.b16 %v29
  %v53 = vunpack.c.l.b16 %v30
  %v54 = vunpack.c.l.b16 %v31
  %v55 = vpack.c.b16 %v48, %v47
  %v56 = vpack.c.b16 %v50, %v49
  %v57 = vpack.c.b16 %v52, %v51
  %v58 = vpack.c.b16 %v54, %v53
  %vm63 = vcmask 523264
  %v65 = vsel %vm63, %v23, 0
  %67 = vmatprep.subr.bf16.mxu0 0
  %68 = vmatpush1.bf16.msra.mxu0 %v55
  %69 = vmatprep.subr.bf16.mxu0 0
  %70 = vmatpush1.bf16.msra.mxu0 %v56
  %71 = vmatprep.subr.bf16.mxu0 0
  %72 = vmatpush1.bf16.msra.mxu0 %v57
  %73 = vmatprep.subr.bf16.mxu0 0
  %74 = vmatpush1.bf16.msra.mxu0 %v58
  %75 = vmatprep.subr.bf16.mxu0 0
  %76 = vmatpush1.bf16.msra.mxu0 0
  %77 = vmatprep.subr.bf16.mxu0 0
  %78 = vmatpush1.bf16.msra.mxu0 0
  %79 = vmatprep.subr.bf16.mxu0 0
  %80 = vmatpush1.bf16.msra.mxu0 0
  %81 = vmatprep.subr.bf16.mxu0 0
  %82 = vmatpush1.bf16.msra.mxu0 0
  %83 = vmatprep.subr.bf16.mxu0 0
  %84 = vmatpush1.bf16.msra.mxu0 0
  %85 = vmatprep.subr.bf16.mxu0 0
  %86 = vmatpush1.bf16.msra.mxu0 0
  %87 = vmatprep.subr.bf16.mxu0 0
  %88 = vmatpush1.bf16.msra.mxu0 0
  %89 = vmatprep.subr.bf16.mxu0 0
  %90 = vmatpush1.bf16.msra.mxu0 0
  %91 = vmatprep.subr.bf16.mxu0 0
  %92 = vmatpush1.bf16.msra.mxu0 0
  %93 = vmatprep.subr.bf16.mxu0 0
  %94 = vmatpush1.bf16.msra.mxu0 0
  %95 = vmatprep.subr.bf16.mxu0 0
  %96 = vmatpush1.bf16.msra.mxu0 0
  %97 = vmatprep.subr.bf16.mxu0 0
  %98 = vmatpush1.bf16.msra.mxu0 0
  %99 = vmatprep.mubr.bf16.mxu0 0
  %100 = vmatmul.mubr.bf16.gmra.mrb[0].mxu0 %v65
  %v101 = vpop.f32.mrb[0].mxu0
  %v102 = vadd.f32 %v37, %v101
  %v103 = vpop.f32.mrb[0].mxu0
  %v104 = vpop.f32.mrb[0].mxu0
  %v105 = vadd.f32 %v37, %v104
  %v106 = vpop.f32.mrb[0].mxu0
  %107 = vdwg.mxu0
  %v108 = vld [vmem:[%s3] sm:$0xff]
  %v109 = vld [vmem:[%s3 + $0x8] sm:$0xff]
  %v110 = vld [vmem:[%s4] sm:$0xff]
  %v111 = vld [vmem:[%s4 + $0x8] sm:$0xff]
  %113 = vset.pattern.permute.xlu0 0
  %114 = vperm.xlu0 %113, %v110
  %v115 = vpop.permute.xlu0 %114
  %118 = vset.pattern.permute.xlu0 0
  %119 = vperm.xlu0 %118, %v111
  %v120 = vpop.permute.xlu0 %119
  %v122 = vmul.f32 %v115, %v102
  %v123 = vmul.f32 %v120, %v105
  %v124 = vadd.f32 %v108, %v122
  %v125 = vadd.f32 %v109, %v123
  %126 = vst.msk [vmem:[%s5] sm:$0xff] %vm63, %v124
  %127 = vst.msk [vmem:[%s5 + $0x8] sm:$0xff] %vm63, %v125
  // Predicated region
  $region22: #{vit_forward.15} parent=0 // pred_check
    _
  $region23: #{vit_forward.15} parent=0 // pred_check_branch
    %129 = sbr.rel (0) target = $region25
  $region24: #{vit_forward.15} parent=0 // pred_region
    _
  $region25: #{vit_forward.15} parent=0 // pred_fallthru
    _
  // Predicated region
  $region26: #{vit_forward.15} parent=0 // pred_check
    _
  $region27: #{vit_forward.15} parent=0 // pred_check_branch
    %131 = sbr.rel (0) target = $region29
  $region28: #{vit_forward.15} parent=0 // pred_region
    _
  $region29: #{vit_forward.15} parent=0 // pred_fallthru
    _

// kernel: vit_forward.16
$region0: #{vit_forward.16}
  #allocation0 [shape = 'u32[]', space=smem, size = 0x4, offset = 0x4, fixed_abs, tag = 'smem constant byte address 0x4 - core index']
  #allocation1 [shape = 'u32[144,128]{1,0:T(1,128)}', space=vmem, size = 0x12000, scoped, tag = 'internal scratch']
  %s0 = inlined_call_operand.vmem [shape: f32[16,64], index: 0, kind: input, shape index: {}]
  %s1 = inlined_call_operand.vmem [shape: f32[1,64], index: 1, kind: input, shape index: {}]
  %s2 = inlined_call_operand.vmem [shape: f32[1,64], index: 2, kind: input, shape index: {}]
  %s3 = inlined_call_operand.vmem [shape: bf16[64,256], index: 3, kind: input, shape index: {}]
  %s4 = inlined_call_operand.vmem [shape: f32[1,256], index: 4, kind: input, shape index: {}]
  %s5 = inlined_call_operand.vmem [shape: f32[16,256], index: 5, kind: output, shape index: {}]
  %s6 = sld [smem:[#allocation0]]
  $region30: #{vit_forward.16} parent=0
    _
  %s8 = ssub.s32 1, %s6
  %s9 = scalar_select 0, %s8, %s6
  // Predicated region
  $region2: #{vit_forward.16} parent=0 // pred_check
    _
  $region3: #{vit_forward.16} parent=0 // pred_check_branch
    %11 = sbr.rel (0) target = $region5
  $region4: #{vit_forward.16} parent=0 // pred_region
    _
  $region5: #{vit_forward.16} parent=0 // pred_fallthru
    _
  // Predicated region
  $region6: #{vit_forward.16} parent=0 // pred_check
    _
  $region7: #{vit_forward.16} parent=0 // pred_check_branch
    %13 = sbr.rel (0) target = $region9
  $region8: #{vit_forward.16} parent=0 // pred_region
    _
  $region9: #{vit_forward.16} parent=0 // pred_fallthru
    _
  // Predicated region
  $region10: #{vit_forward.16} parent=0 // pred_check
    _
  $region11: #{vit_forward.16} parent=0 // pred_check_branch
    %15 = sbr.rel (0) target = $region13
  $region12: #{vit_forward.16} parent=0 // pred_region
    _
  $region13: #{vit_forward.16} parent=0 // pred_fallthru
    _
  // Predicated region
  $region14: #{vit_forward.16} parent=0 // pred_check
    _
  $region15: #{vit_forward.16} parent=0 // pred_check_branch
    %17 = sbr.rel (0) target = $region17
  $region16: #{vit_forward.16} parent=0 // pred_region
    _
  $region17: #{vit_forward.16} parent=0 // pred_fallthru
    _
  // Predicated region
  $region18: #{vit_forward.16} parent=0 // pred_check
    _
  $region19: #{vit_forward.16} parent=0 // pred_check_branch
    %19 = sbr.rel (0) target = $region21
  $region20: #{vit_forward.16} parent=0 // pred_region
    _
  $region21: #{vit_forward.16} parent=0 // pred_fallthru
    _
  %v21 = vld [vmem:[%s0] sm:$0xff]
  %v22 = vld [vmem:[%s0 + $0x8] sm:$0xff]
  %vm23 = vcmask 523264
  %v24 = vsel %vm23, %v21, 0.0
  %25 = vadd.xlane.f32.xlu0 %v24
  %v26 = vpop.xlane.xlu0 %25
  %v27 = vsel %vm23, %v22, 0.0
  %28 = vadd.xlane.f32.xlu0 %v27
  %v29 = vpop.xlane.xlu0 %28
  %v30 = vrcp.pop 64.0
  %v31 = vmul.f32 %v26, %v30
  %v32 = vmul.f32 %v29, %v30
  %v33 = vsub.f32 %v21, %v31
  %v34 = vsub.f32 %v22, %v32
  %v35 = vmul.f32 %v33, %v33
  %v36 = vmul.f32 %v34, %v34
  %v37 = vsel %vm23, %v35, 0.0
  %38 = vadd.xlane.f32.xlu0 %v37
  %v39 = vpop.xlane.xlu0 %38
  %v40 = vsel %vm23, %v36, 0.0
  %41 = vadd.xlane.f32.xlu0 %v40
  %v42 = vpop.xlane.xlu0 %41
  %v43 = vmul.f32 %v39, %v30
  %v44 = vmul.f32 %v42, %v30
  %v45 = vadd.f32 %v43, 1e-06
  %v46 = vadd.f32 %v44, 1e-06
  %v47 = vrsqrt.pop %v45
  %v48 = vrsqrt.pop %v46
  %v49 = vmul.f32 %v33, %v47
  %v50 = vmul.f32 %v34, %v48
  %v51 = vld [vmem:[%s1] sm:$0x1]
  %v53 = vlaneseq
  %v54 = vshrl.u32 %v53, 7
  %v55 = vsub.s32 0, %v54
  %v56 = vrot.slane %v51, %v55
  %v58 = vmul.f32 %v49, %v56
  %v59 = vmul.f32 %v50, %v56
  %v60 = vld [vmem:[%s2] sm:$0x1]
  %v62 = vlaneseq
  %v63 = vshrl.u32 %v62, 7
  %v64 = vsub.s32 0, %v63
  %v65 = vrot.slane %v60, %v64
  %v67 = vadd.f32 %v58, %v65
  %v68 = vadd.f32 %v59, %v65
  %v69 = vpack.c.bf16 %v68, %v67
  %v70 = vld [vmem:[%s3] sm:$0xff]
  %v71 = vld [vmem:[%s3 + $0x8] sm:$0xff]
  %v72 = vld [vmem:[%s3 + $0x10] sm:$0xff]
  %v73 = vld [vmem:[%s3 + $0x18] sm:$0xff]
  %v74 = vld [vmem:[%s3 + $0x20] sm:$0xff]
  %v75 = vld [vmem:[%s3 + $0x28] sm:$0xff]
  %v76 = vld [vmem:[%s3 + $0x30] sm:$0xff]
  %v77 = vld [vmem:[%s3 + $0x38] sm:$0xff]
  %v78 = vld [vmem:[%s4] sm:$0x3]
  %v80 = vlaneseq
  %v81 = vshrl.u32 %v80, 7
  %v82 = vsub.s32 0, %v81
  %v83 = vrot.slane %v78, %v82
  %v84 = vlaneseq
  %v85 = vshrl.u32 %v84, 7
  %v86 = vsub.s32 1, %v85
  %v87 = vrot.slane %v78, %v86
  %v98 = vunpack.c.l.b16 %v70
  %v99 = vunpack.c.h.b16 %v70
  %v100 = vunpack.c.l.b16 %v71
  %v101 = vunpack.c.h.b16 %v71
  %v102 = vunpack.c.l.b16 %v72
  %v103 = vunpack.c.h.b16 %v72
  %v104 = vunpack.c.l.b16 %v73
  %v105 = vunpack.c.h.b16 %v73
  %v106 = vunpack.c.l.b16 %v74
  %v107 = vunpack.c.h.b16 %v74
  %v108 = vunpack.c.l.b16 %v75
  %v109 = vunpack.c.h.b16 %v75
  %v110 = vunpack.c.l.b16 %v76
  %v111 = vunpack.c.h.b16 %v76
  %v112 = vunpack.c.l.b16 %v77
  %v113 = vunpack.c.h.b16 %v77
  %v114 = vpack.c.b16 %v100, %v98
  %v115 = vpack.c.b16 %v101, %v99
  %v116 = vpack.c.b16 %v104, %v102
  %v117 = vpack.c.b16 %v105, %v103
  %v118 = vpack.c.b16 %v108, %v106
  %v119 = vpack.c.b16 %v109, %v107
  %v120 = vpack.c.b16 %v112, %v110
  %v121 = vpack.c.b16 %v113, %v111
  %v131 = vsel %vm23, %v69, 0
  %133 = vmatprep.subr.bf16.mxu0 %v115
  %134 = vmatpush1.bf16.msra.mxu0 %v114
  %135 = vmatprep.subr.bf16.mxu0 %v117
  %136 = vmatpush1.bf16.msra.mxu0 %v116
  %137 = vmatprep.subr.bf16.mxu0 %v119
  %138 = vmatpush1.bf16.msra.mxu0 %v118
  %139 = vmatprep.subr.bf16.mxu0 %v121
  %140 = vmatpush1.bf16.msra.mxu0 %v120
  %141 = vmatprep.subr.bf16.mxu0 0
  %142 = vmatpush1.bf16.msra.mxu0 0
  %143 = vmatprep.subr.bf16.mxu0 0
  %144 = vmatpush1.bf16.msra.mxu0 0
  %145 = vmatprep.subr.bf16.mxu0 0
  %146 = vmatpush1.bf16.msra.mxu0 0
  %147 = vmatprep.subr.bf16.mxu0 0
  %148 = vmatpush1.bf16.msra.mxu0 0
  %149 = vmatprep.subr.bf16.mxu0 0
  %150 = vmatpush1.bf16.msra.mxu0 0
  %151 = vmatprep.subr.bf16.mxu0 0
  %152 = vmatpush1.bf16.msra.mxu0 0
  %153 = vmatprep.subr.bf16.mxu0 0
  %154 = vmatpush1.bf16.msra.mxu0 0
  %155 = vmatprep.subr.bf16.mxu0 0
  %156 = vmatpush1.bf16.msra.mxu0 0
  %157 = vmatprep.subr.bf16.mxu0 0
  %158 = vmatpush1.bf16.msra.mxu0 0
  %159 = vmatprep.subr.bf16.mxu0 0
  %160 = vmatpush1.bf16.msra.mxu0 0
  %161 = vmatprep.subr.bf16.mxu0 0
  %162 = vmatpush1.bf16.msra.mxu0 0
  %163 = vmatprep.subr.bf16.mxu0 0
  %164 = vmatpush1.bf16.msra.mxu0 0
  %165 = vmatprep.mubr.bf16.mxu0 0
  %166 = vmatmul.mubr.bf16.gmra.mrb[0].mxu0 %v131
  %v167 = vpop.f32.mrb[0].mxu0
  %v168 = vadd.f32 %v83, %v167
  %v169 = vpop.f32.mrb[0].mxu0
  %v170 = vadd.f32 %v87, %v169
  %v171 = vpop.f32.mrb[0].mxu0
  %v172 = vadd.f32 %v83, %v171
  %v173 = vpop.f32.mrb[0].mxu0
  %v174 = vadd.f32 %v87, %v173
  %175 = vdwg.mxu0
  %v176 = vmul.f32 %v168, %v168
  %v177 = vmul.f32 %v170, %v170
  %v178 = vmul.f32 %v172, %v172
  %v179 = vmul.f32 %v174, %v174
  %v180 = vmul.f32 %v168, %v176
  %v181 = vmul.f32 %v170, %v177
  %v182 = vmul.f32 %v172, %v178
  %v183 = vmul.f32 %v174, %v179
  %v184 = vmul.f32 %v180, 0.044715
  %v185 = vmul.f32 %v181, 0.044715
  %v186 = vmul.f32 %v182, 0.044715
  %v187 = vmul.f32 %v183, 0.044715
  %v188 = vadd.f32 %v168, %v184
  %v189 = vadd.f32 %v170, %v185
  %v190 = vadd.f32 %v172, %v186
  %v191 = vadd.f32 %v174, %v187
  %v192 = vmul.f32 %v188, 0.7978846
  %v193 = vmul.f32 %v189, 0.7978846
  %v194 = vmul.f32 %v190, 0.7978846
  %v195 = vmul.f32 %v191, 0.7978846
  %v196 = vtanh.pop %v192
  %v197 = vtanh.pop %v193
  %v198 = vtanh.pop %v194
  %v199 = vtanh.pop %v195
  %v200 = vadd.f32 %v196, 1.0
  %v201 = vadd.f32 %v197, 1.0
  %v202 = vadd.f32 %v198, 1.0
  %v203 = vadd.f32 %v199, 1.0
  %v204 = vmul.f32 %v200, 0.5
  %v205 = vmul.f32 %v201, 0.5
  %v206 = vmul.f32 %v202, 0.5
  %v207 = vmul.f32 %v203, 0.5
  %v208 = vmul.f32 %v168, %v204
  %v209 = vmul.f32 %v170, %v205
  %v210 = vmul.f32 %v172, %v206
  %v211 = vmul.f32 %v174, %v207
  %212 = vst [vmem:[%s5] sm:$0xff] %v208
  %213 = vst [vmem:[%s5 + $0x8] sm:$0xff] %v209
  %214 = vst [vmem:[%s5 + $0x10] sm:$0xff] %v210
  %215 = vst [vmem:[%s5 + $0x18] sm:$0xff] %v211
  // Predicated region
  $region22: #{vit_forward.16} parent=0 // pred_check
    _
  $region23: #{vit_forward.16} parent=0 // pred_check_branch
    %217 = sbr.rel (0) target = $region25
  $region24: #{vit_forward.16} parent=0 // pred_region
    _
  $region25: #{vit_forward.16} parent=0 // pred_fallthru
    _
  // Predicated region
  $region26: #{vit_forward.16} parent=0 // pred_check
    _
  $region27: #{vit_forward.16} parent=0 // pred_check_branch
    %219 = sbr.rel (0) target = $region29
  $region28: #{vit_forward.16} parent=0 // pred_region
    _
  $region29: #{vit_forward.16} parent=0 // pred_fallthru
    _

// kernel: vit_forward.17
$region0: #{vit_forward.17}
  #allocation0 [shape = 'u32[]', space=smem, size = 0x4, offset = 0x4, fixed_abs, tag = 'smem constant byte address 0x4 - core index']
  #allocation1 [shape = 'u32[144,128]{1,0:T(1,128)}', space=vmem, size = 0x12000, scoped, tag = 'internal scratch']
  %s0 = inlined_call_operand.vmem [shape: f32[16,256], index: 0, kind: input, shape index: {}]
  %s1 = inlined_call_operand.vmem [shape: bf16[256,64], index: 1, kind: input, shape index: {}]
  %s2 = inlined_call_operand.vmem [shape: f32[1,64], index: 2, kind: input, shape index: {}]
  %s3 = inlined_call_operand.vmem [shape: f32[16,64], index: 3, kind: input, shape index: {}]
  %s4 = inlined_call_operand.vmem [shape: f32[16,1], index: 4, kind: input, shape index: {}]
  %s5 = inlined_call_operand.vmem [shape: f32[16,64], index: 5, kind: output, shape index: {}]
  %s6 = sld [smem:[#allocation0]]
  $region30: #{vit_forward.17} parent=0
    _
  %s8 = ssub.s32 1, %s6
  %s9 = scalar_select 0, %s8, %s6
  // Predicated region
  $region2: #{vit_forward.17} parent=0 // pred_check
    _
  $region3: #{vit_forward.17} parent=0 // pred_check_branch
    %11 = sbr.rel (0) target = $region5
  $region4: #{vit_forward.17} parent=0 // pred_region
    _
  $region5: #{vit_forward.17} parent=0 // pred_fallthru
    _
  // Predicated region
  $region6: #{vit_forward.17} parent=0 // pred_check
    _
  $region7: #{vit_forward.17} parent=0 // pred_check_branch
    %13 = sbr.rel (0) target = $region9
  $region8: #{vit_forward.17} parent=0 // pred_region
    _
  $region9: #{vit_forward.17} parent=0 // pred_fallthru
    _
  // Predicated region
  $region10: #{vit_forward.17} parent=0 // pred_check
    _
  $region11: #{vit_forward.17} parent=0 // pred_check_branch
    %15 = sbr.rel (0) target = $region13
  $region12: #{vit_forward.17} parent=0 // pred_region
    _
  $region13: #{vit_forward.17} parent=0 // pred_fallthru
    _
  // Predicated region
  $region14: #{vit_forward.17} parent=0 // pred_check
    _
  $region15: #{vit_forward.17} parent=0 // pred_check_branch
    %17 = sbr.rel (0) target = $region17
  $region16: #{vit_forward.17} parent=0 // pred_region
    _
  $region17: #{vit_forward.17} parent=0 // pred_fallthru
    _
  // Predicated region
  $region18: #{vit_forward.17} parent=0 // pred_check
    _
  $region19: #{vit_forward.17} parent=0 // pred_check_branch
    %19 = sbr.rel (0) target = $region21
  $region20: #{vit_forward.17} parent=0 // pred_region
    _
  $region21: #{vit_forward.17} parent=0 // pred_fallthru
    _
  %v21 = vld [vmem:[%s0] sm:$0xff]
  %v22 = vld [vmem:[%s0 + $0x8] sm:$0xff]
  %v23 = vld [vmem:[%s0 + $0x10] sm:$0xff]
  %v24 = vld [vmem:[%s0 + $0x18] sm:$0xff]
  %v25 = vpack.c.bf16 %v23, %v21
  %v26 = vpack.c.bf16 %v24, %v22
  %v27 = vld [vmem:[%s1] sm:$0xf]
  %v28 = vld [vmem:[%s1 + $0x4] sm:$0xf]
  %v29 = vld [vmem:[%s1 + $0x8] sm:$0xf]
  %v30 = vld [vmem:[%s1 + $0xc] sm:$0xf]
  %v31 = vld [vmem:[%s1 + $0x10] sm:$0xf]
  %v32 = vld [vmem:[%s1 + $0x14] sm:$0xf]
  %v33 = vld [vmem:[%s1 + $0x18] sm:$0xf]
  %v34 = vld [vmem:[%s1 + $0x1c] sm:$0xf]
  %v35 = vld [vmem:[%s1 + $0x20] sm:$0xf]
  %v36 = vld [vmem:[%s1 + $0x24] sm:$0xf]
  %v37 = vld [vmem:[%s1 + $0x28] sm:$0xf]
  %v38 = vld [vmem:[%s1 + $0x2c] sm:$0xf]
  %v39 = vld [vmem:[%s1 + $0x30] sm:$0xf]
  %v40 = vld [vmem:[%s1 + $0x34] sm:$0xf]
  %v41 = vld [vmem:[%s1 + $0x38] sm:$0xf]
  %v42 = vld [vmem:[%s1 + $0x3c] sm:$0xf]
  %v43 = vld [vmem:[%s1 + $0x40] sm:$0xf]
  %v44 = vld [vmem:[%s1 + $0x44] sm:$0xf]
  %v45 = vld [vmem:[%s1 + $0x48] sm:$0xf]
  %v46 = vld [vmem:[%s1 + $0x4c] sm:$0xf]
  %v47 = vld [vmem:[%s1 + $0x50] sm:$0xf]
  %v48 = vld [vmem:[%s1 + $0x54] sm:$0xf]
  %v49 = vld [vmem:[%s1 + $0x58] sm:$0xf]
  %v50 = vld [vmem:[%s1 + $0x5c] sm:$0xf]
  %v51 = vld [vmem:[%s1 + $0x60] sm:$0xf]
  %v52 = vld [vmem:[%s1 + $0x64] sm:$0xf]
  %v53 = vld [vmem:[%s1 + $0x68] sm:$0xf]
  %v54 = vld [vmem:[%s1 + $0x6c] sm:$0xf]
  %v55 = vld [vmem:[%s1 + $0x70] sm:$0xf]
  %v56 = vld [vmem:[%s1 + $0x74] sm:$0xf]
  %v57 = vld [vmem:[%s1 + $0x78] sm:$0xf]
  %v58 = vld [vmem:[%s1 + $0x7c] sm:$0xf]
  %v59 = vld [vmem:[%s2] sm:$0x1]
  %v61 = vlaneseq
  %v62 = vshrl.u32 %v61, 7
  %v63 = vsub.s32 0, %v62
  %v64 = vrot.slane %v59, %v63
  %v98 = vunpack.c.l.b16 %v27
  %v99 = vunpack.c.l.b16 %v28
  %v100 = vunpack.c.l.b16 %v29
  %v101 = vunpack.c.l.b16 %v30
  %v102 = vunpack.c.l.b16 %v31
  %v103 = vunpack.c.l.b16 %v32
  %v104 = vunpack.c.l.b16 %v33
  %v105 = vunpack.c.l.b16 %v34
  %v106 = vunpack.c.l.b16 %v35
  %v107 = vunpack.c.l.b16 %v36
  %v108 = vunpack.c.l.b16 %v37
  %v109 = vunpack.c.l.b16 %v38
  %v110 = vunpack.c.l.b16 %v39
  %v111 = vunpack.c.l.b16 %v40
  %v112 = vunpack.c.l.b16 %v41
  %v113 = vunpack.c.l.b16 %v42
  %v114 = vunpack.c.l.b16 %v43
  %v115 = vunpack.c.l.b16 %v44
  %v116 = vunpack.c.l.b16 %v45
  %v117 = vunpack.c.l.b16 %v46
  %v118 = vunpack.c.l.b16 %v47
  %v119 = vunpack.c.l.b16 %v48
  %v120 = vunpack.c.l.b16 %v49
  %v121 = vunpack.c.l.b16 %v50
  %v122 = vunpack.c.l.b16 %v51
  %v123 = vunpack.c.l.b16 %v52
  %v124 = vunpack.c.l.b16 %v53
  %v125 = vunpack.c.l.b16 %v54
  %v126 = vunpack.c.l.b16 %v55
  %v127 = vunpack.c.l.b16 %v56
  %v128 = vunpack.c.l.b16 %v57
  %v129 = vunpack.c.l.b16 %v58
  %v130 = vpack.c.b16 %v99, %v98
  %v131 = vpack.c.b16 %v101, %v100
  %v132 = vpack.c.b16 %v103, %v102
  %v133 = vpack.c.b16 %v105, %v104
  %v134 = vpack.c.b16 %v107, %v106
  %v135 = vpack.c.b16 %v109, %v108
  %v136 = vpack.c.b16 %v111, %v110
  %v137 = vpack.c.b16 %v113, %v112
  %v138 = vpack.c.b16 %v115, %v114
  %v139 = vpack.c.b16 %v117, %v116
  %v140 = vpack.c.b16 %v119, %v118
  %v141 = vpack.c.b16 %v121, %v120
  %v142 = vpack.c.b16 %v123, %v122
  %v143 = vpack.c.b16 %v125, %v124
  %v144 = vpack.c.b16 %v127, %v126
  %v145 = vpack.c.b16 %v129, %v128
  %162 = vmatprep.subr.bf16.mxu0 0
  %163 = vmatpush1.bf16.msra.mxu0 %v130
  %164 = vmatprep.subr.bf16.mxu0 0
  %165 = vmatpush1.bf16.msra.mxu0 %v131
  %166 = vmatprep.subr.bf16.mxu0 0
  %167 = vmatpush1.bf16.msra.mxu0 %v132
  %168 = vmatprep.subr.bf16.mxu0 0
  %169 = vmatpush1.bf16.msra.mxu0 %v133
  %170 = vmatprep.subr.bf16.mxu0 0
  %171 = vmatpush1.bf16.msra.mxu0 %v134
  %172 = vmatprep.subr.bf16.mxu0 0
  %173 = vmatpush1.bf16.msra.mxu0 %v135
  %174 = vmatprep.subr.bf16.mxu0 0
  %175 = vmatpush1.bf16.msra.mxu0 %v136
  %176 = vmatprep.subr.bf16.mxu0 0
  %177 = vmatpush1.bf16.msra.mxu0 %v137
  %178 = vmatprep.subr.bf16.mxu0 0
  %179 = vmatpush1.bf16.msra.mxu0 %v138
  %180 = vmatprep.subr.bf16.mxu0 0
  %181 = vmatpush1.bf16.msra.mxu0 %v139
  %182 = vmatprep.subr.bf16.mxu0 0
  %183 = vmatpush1.bf16.msra.mxu0 %v140
  %184 = vmatprep.subr.bf16.mxu0 0
  %185 = vmatpush1.bf16.msra.mxu0 %v141
  %186 = vmatprep.subr.bf16.mxu0 0
  %187 = vmatpush1.bf16.msra.mxu0 %v142
  %188 = vmatprep.subr.bf16.mxu0 0
  %189 = vmatpush1.bf16.msra.mxu0 %v143
  %190 = vmatprep.subr.bf16.mxu0 0
  %191 = vmatpush1.bf16.msra.mxu0 %v144
  %192 = vmatprep.subr.bf16.mxu0 0
  %193 = vmatpush1.bf16.msra.mxu0 %v145
  %194 = vmatprep.mubr.bf16.mxu0 %v26
  %195 = vmatmul.mubr.bf16.gmra.mrb[0].mxu0 %v25
  %v196 = vpop.f32.mrb[0].mxu0
  %v197 = vadd.f32 %v64, %v196
  %v198 = vpop.f32.mrb[0].mxu0
  %v199 = vpop.f32.mrb[0].mxu0
  %v200 = vadd.f32 %v64, %v199
  %v201 = vpop.f32.mrb[0].mxu0
  %202 = vdwg.mxu0
  %v203 = vld [vmem:[%s3] sm:$0xff]
  %v204 = vld [vmem:[%s3 + $0x8] sm:$0xff]
  %v205 = vld [vmem:[%s4] sm:$0xff]
  %v206 = vld [vmem:[%s4 + $0x8] sm:$0xff]
  %208 = vset.pattern.permute.xlu0 0
  %209 = vperm.xlu0 %208, %v205
  %v210 = vpop.permute.xlu0 %209
  %213 = vset.pattern.permute.xlu0 0
  %214 = vperm.xlu0 %213, %v206
  %v215 = vpop.permute.xlu0 %214
  %v217 = vmul.f32 %v210, %v197
  %v218 = vmul.f32 %v215, %v200
  %v219 = vadd.f32 %v203, %v217
  %v220 = vadd.f32 %v204, %v218
  %vm221 = vcmask 523264
  %222 = vst.msk [vmem:[%s5] sm:$0xff] %vm221, %v219
  %223 = vst.msk [vmem:[%s5 + $0x8] sm:$0xff] %vm221, %v220
  // Predicated region
  $region22: #{vit_forward.17} parent=0 // pred_check
    _
  $region23: #{vit_forward.17} parent=0 // pred_check_branch
    %225 = sbr.rel (0) target = $region25
  $region24: #{vit_forward.17} parent=0 // pred_region
    _
  $region25: #{vit_forward.17} parent=0 // pred_fallthru
    _
  // Predicated region
  $region26: #{vit_forward.17} parent=0 // pred_check
    _
  $region27: #{vit_forward.17} parent=0 // pred_check_branch
    %227 = sbr.rel (0) target = $region29
  $region28: #{vit_forward.17} parent=0 // pred_region
    _
  $region29: #{vit_forward.17} parent=0 // pred_fallthru
    _

// kernel: vit_forward.23
$region0: #{vit_forward.23}
  #allocation0 [shape = 'u32[]', space=smem, size = 0x4, offset = 0x4, fixed_abs, tag = 'smem constant byte address 0x4 - core index']
  #allocation1 [shape = 'u32[144,128]{1,0:T(1,128)}', space=vmem, size = 0x12000, scoped, tag = 'internal scratch']
  %s0 = inlined_call_operand.vmem [shape: f32[8,64], index: 0, kind: input, shape index: {}]
  %s1 = inlined_call_operand.vmem [shape: f32[1,64], index: 1, kind: input, shape index: {}]
  %s2 = inlined_call_operand.vmem [shape: f32[1,64], index: 2, kind: input, shape index: {}]
  %s3 = inlined_call_operand.vmem [shape: bf16[64,10], index: 3, kind: input, shape index: {}]
  %s4 = inlined_call_operand.vmem [shape: f32[1,10], index: 4, kind: input, shape index: {}]
  %s5 = inlined_call_operand.vmem [shape: f32[8,10], index: 5, kind: output, shape index: {}]
  %s6 = sld [smem:[#allocation0]]
  $region30: #{vit_forward.23} parent=0
    _
  %s8 = ssub.s32 1, %s6
  %s9 = scalar_select 0, %s8, %s6
  // Predicated region
  $region2: #{vit_forward.23} parent=0 // pred_check
    _
  $region3: #{vit_forward.23} parent=0 // pred_check_branch
    %11 = sbr.rel (0) target = $region5
  $region4: #{vit_forward.23} parent=0 // pred_region
    _
  $region5: #{vit_forward.23} parent=0 // pred_fallthru
    _
  // Predicated region
  $region6: #{vit_forward.23} parent=0 // pred_check
    _
  $region7: #{vit_forward.23} parent=0 // pred_check_branch
    %13 = sbr.rel (0) target = $region9
  $region8: #{vit_forward.23} parent=0 // pred_region
    _
  $region9: #{vit_forward.23} parent=0 // pred_fallthru
    _
  // Predicated region
  $region10: #{vit_forward.23} parent=0 // pred_check
    _
  $region11: #{vit_forward.23} parent=0 // pred_check_branch
    %15 = sbr.rel (0) target = $region13
  $region12: #{vit_forward.23} parent=0 // pred_region
    _
  $region13: #{vit_forward.23} parent=0 // pred_fallthru
    _
  // Predicated region
  $region14: #{vit_forward.23} parent=0 // pred_check
    _
  $region15: #{vit_forward.23} parent=0 // pred_check_branch
    %17 = sbr.rel (0) target = $region17
  $region16: #{vit_forward.23} parent=0 // pred_region
    _
  $region17: #{vit_forward.23} parent=0 // pred_fallthru
    _
  // Predicated region
  $region18: #{vit_forward.23} parent=0 // pred_check
    _
  $region19: #{vit_forward.23} parent=0 // pred_check_branch
    %19 = sbr.rel (0) target = $region21
  $region20: #{vit_forward.23} parent=0 // pred_region
    _
  $region21: #{vit_forward.23} parent=0 // pred_fallthru
    _
  %v21 = vld [vmem:[%s0] sm:$0xff]
  %vm22 = vcmask 523264
  %v23 = vsel %vm22, %v21, 0.0
  %24 = vadd.xlane.f32.xlu0 %v23
  %v25 = vpop.xlane.xlu0 %24
  %v26 = vrcp.pop 64.0
  %v27 = vmul.f32 %v25, %v26
  %v28 = vsub.f32 %v21, %v27
  %v29 = vmul.f32 %v28, %v28
  %v30 = vsel %vm22, %v29, 0.0
  %31 = vadd.xlane.f32.xlu0 %v30
  %v32 = vpop.xlane.xlu0 %31
  %v33 = vmul.f32 %v32, %v26
  %v34 = vadd.f32 %v33, 1e-06
  %v35 = vrsqrt.pop %v34
  %v36 = vmul.f32 %v28, %v35
  %v37 = vld [vmem:[%s1] sm:$0x1]
  %v39 = vlaneseq
  %v40 = vshrl.u32 %v39, 7
  %v41 = vsub.s32 0, %v40
  %v42 = vrot.slane %v37, %v41
  %v44 = vmul.f32 %v36, %v42
  %v45 = vld [vmem:[%s2] sm:$0x1]
  %v47 = vlaneseq
  %v48 = vshrl.u32 %v47, 7
  %v49 = vsub.s32 0, %v48
  %v50 = vrot.slane %v45, %v49
  %v52 = vadd.f32 %v44, %v50
  %v53 = vpack.c.bf16 %v52, %v52
  %v54 = vld [vmem:[%s3] sm:$0xf]
  %v55 = vld [vmem:[%s3 + $0x4] sm:$0xf]
  %v56 = vld [vmem:[%s3 + $0x8] sm:$0xf]
  %v57 = vld [vmem:[%s3 + $0xc] sm:$0xf]
  %v58 = vld [vmem:[%s3 + $0x10] sm:$0xf]
  %v59 = vld [vmem:[%s3 + $0x14] sm:$0xf]
  %v60 = vld [vmem:[%s3 + $0x18] sm:$0xf]
  %v61 = vld [vmem:[%s3 + $0x1c] sm:$0xf]
  %v62 = vld [vmem:[%s4] sm:$0x1]
  %v64 = vlaneseq
  %v65 = vshrl.u32 %v64, 7
  %v66 = vsub.s32 0, %v65
  %v67 = vrot.slane %v62, %v66
  %v77 = vunpack.c.l.b16 %v54
  %v78 = vunpack.c.l.b16 %v55
  %v79 = vunpack.c.l.b16 %v56
  %v80 = vunpack.c.l.b16 %v57
  %v81 = vunpack.c.l.b16 %v58
  %v82 = vunpack.c.l.b16 %v59
  %v83 = vunpack.c.l.b16 %v60
  %v84 = vunpack.c.l.b16 %v61
  %v85 = vpack.c.b16 %v78, %v77
  %v86 = vpack.c.b16 %v80, %v79
  %v87 = vpack.c.b16 %v82, %v81
  %v88 = vpack.c.b16 %v84, %v83
  %v94 = vsel %vm22, %v53, 0
  %96 = vmatprep.subr.bf16.mxu0 0
  %97 = vmatpush1.bf16.msra.mxu0 %v85
  %98 = vmatprep.subr.bf16.mxu0 0
  %99 = vmatpush1.bf16.msra.mxu0 %v86
  %100 = vmatprep.subr.bf16.mxu0 0
  %101 = vmatpush1.bf16.msra.mxu0 %v87
  %102 = vmatprep.subr.bf16.mxu0 0
  %103 = vmatpush1.bf16.msra.mxu0 %v88
  %104 = vmatprep.subr.bf16.mxu0 0
  %105 = vmatpush1.bf16.msra.mxu0 0
  %106 = vmatprep.subr.bf16.mxu0 0
  %107 = vmatpush1.bf16.msra.mxu0 0
  %108 = vmatprep.subr.bf16.mxu0 0
  %109 = vmatpush1.bf16.msra.mxu0 0
  %110 = vmatprep.subr.bf16.mxu0 0
  %111 = vmatpush1.bf16.msra.mxu0 0
  %112 = vmatprep.subr.bf16.mxu0 0
  %113 = vmatpush1.bf16.msra.mxu0 0
  %114 = vmatprep.subr.bf16.mxu0 0
  %115 = vmatpush1.bf16.msra.mxu0 0
  %116 = vmatprep.subr.bf16.mxu0 0
  %117 = vmatpush1.bf16.msra.mxu0 0
  %118 = vmatprep.subr.bf16.mxu0 0
  %119 = vmatpush1.bf16.msra.mxu0 0
  %120 = vmatprep.subr.bf16.mxu0 0
  %121 = vmatpush1.bf16.msra.mxu0 0
  %122 = vmatprep.subr.bf16.mxu0 0
  %123 = vmatpush1.bf16.msra.mxu0 0
  %124 = vmatprep.subr.bf16.mxu0 0
  %125 = vmatpush1.bf16.msra.mxu0 0
  %126 = vmatprep.subr.bf16.mxu0 0
  %127 = vmatpush1.bf16.msra.mxu0 0
  %128 = vmatprep.mubr.bf16.mxu0 0
  %129 = vmatmul.mubr.bf16.gmra.mrb[0].mxu0 %v94
  %v130 = vpop.f32.mrb[0].mxu0
  %v131 = vadd.f32 %v67, %v130
  %v132 = vpop.f32.mrb[0].mxu0
  %v133 = vpop.f32.mrb[0].mxu0
  %v134 = vpop.f32.mrb[0].mxu0
  %135 = vdwg.mxu0
  %vm136 = vcmask 80896
  %137 = vst.msk [vmem:[%s5] sm:$0xff] %vm136, %v131
  // Predicated region
  $region22: #{vit_forward.23} parent=0 // pred_check
    _
  $region23: #{vit_forward.23} parent=0 // pred_check_branch
    %139 = sbr.rel (0) target = $region25
  $region24: #{vit_forward.23} parent=0 // pred_region
    _
  $region25: #{vit_forward.23} parent=0 // pred_fallthru
    _
  // Predicated region
  $region26: #{vit_forward.23} parent=0 // pred_check
    _
  $region27: #{vit_forward.23} parent=0 // pred_check_branch
    %141 = sbr.rel (0) target = $region29
  $region28: #{vit_forward.23} parent=0 // pred_region
    _
  $region29: #{vit_forward.23} parent=0 // pred_fallthru
    _

</llo_original>
